<compile_context>
chip_gen: v5e
topology: v5e:2x2
jax: 0.10.0
libtpu: 0.0.40
codegen_flags: <defaults>
</compile_context>

<pallas_src>
import functools

import jax
import jax.numpy as jnp
from jax import lax
from jax.experimental import pallas as pl
from jax.experimental.pallas import tpu as pltpu


def _round_up(x, m):
    return (x + m - 1) // m * m


# M (= N*D*H*W, the lane axis) below which a pallas_call launch costs more than
# the math: fall back to plain XLA (which fuses the BN/ReLU elementwise for free).
_PALLAS_MIN_M = 256


# ---------------------------------------------------------------------------
# Pallas kernel: channels-first MXU matmul with fused BN+ReLU prologue/epilogue
#   A: (K, tm)   B: (Cout, K)   out: (Cout, tm)   (f32 accumulation)
#   prologue : relu(A * in_scale + in_shift)   per K-row   (pre-activation BN)
#   epilogue : relu(O * out_scale + out_shift) per Cout-row (post-conv BN)
# Grid is over M only; K and Cout ride as full-dim blocks.
# ---------------------------------------------------------------------------
def _make_cf_matmul_kernel(fuse_in, fuse_out):
    def kernel(*refs):
        a_ref, b_ref = refs[0], refs[1]
        idx = 2
        if fuse_in:
            isc_ref, ish_ref = refs[idx], refs[idx + 1]
            idx += 2
        if fuse_out:
            osc_ref, osh_ref = refs[idx], refs[idx + 1]
            idx += 2
        # refs[idx] (when present) is the aliased destination block: it is only
        # overwritten through o_ref, never read.
        o_ref = refs[-1]

        a = a_ref[...]
        if fuse_in:
            # pre-activation BN+ReLU in A's dtype (bf16 activations stay bf16 on
            # v6e/v7x; the f32 dense-block buffer keeps the v5e-friendly f32 path)
            a = jnp.maximum(a * isc_ref[...] + ish_ref[...], 0.0)
        acc = jnp.dot(b_ref[...], a.astype(b_ref.dtype),
                      preferred_element_type=jnp.float32)
        if fuse_out:
            acc = jnp.maximum(acc * osc_ref[...] + osh_ref[...], 0.0)
        o_ref[...] = acc.astype(o_ref.dtype)

    return kernel


def matmul_cf(a, b, *, k=None, in_scale=None, in_shift=None,
              out_scale=None, out_shift=None, dst=None, dst_row_offset=0,
              out_dtype=jnp.bfloat16):
    """Channels-first conv-as-matmul with fused BN+ReLU prologue/epilogue.

    a   : (Ka, M) activations / patches; only rows [:k] are used (k <= Ka).
    b   : (Cout, k) weight.
    out : (Cout, M), or, if `dst` is given, `dst` with rows
          [dst_row_offset : dst_row_offset + Cout] overwritten in place through
          input_output_aliases (the remaining rows keep their contents).
    """
    Ka, M = a.shape
    Cout, kb = b.shape
    k = Ka if k is None else k
    assert kb == k and k <= Ka
    fuse_in = in_scale is not None
    fuse_out = out_scale is not None
    odt = dst.dtype if dst is not None else out_dtype

    isc = in_scale.reshape(k, 1).astype(a.dtype) if fuse_in else None
    ish = in_shift.reshape(k, 1).astype(a.dtype) if fuse_in else None
    osc = out_scale.reshape(Cout, 1).astype(jnp.float32) if fuse_out else None
    osh = out_shift.reshape(Cout, 1).astype(jnp.float32) if fuse_out else None

    use_pallas = (M >= _PALLAS_MIN_M and M % 128 == 0
                  and (k == Ka or k % 8 == 0)
                  and (dst is None or (dst_row_offset % Cout == 0
                                       and dst.shape[0] % Cout == 0
                                       and dst.shape[1] == M)))
    if not use_pallas:
        # Tiny late-stage matmuls: plain XLA (launch overhead > math).
        x = a[:k] if k < Ka else a
        if fuse_in:
            x = jnp.maximum(x * isc + ish, 0.0)
        o = jnp.dot(b, x.astype(b.dtype), preferred_element_type=jnp.float32)
        if fuse_out:
            o = jnp.maximum(o * osc + osh, 0.0)
        o = o.astype(odt)
        if dst is None:
            return o
        return dst.at[dst_row_offset:dst_row_offset + Cout, :].set(o)

    # lane axis carries M; >=2 M-tiles keeps both v7x TensorCores busy.
    tm = max(128, min(512, _round_up(pl.cdiv(M, 2), 128)))
    grid_m = pl.cdiv(M, tm)

    operands = [a, b]
    in_specs = [pl.BlockSpec((k, tm), lambda i: (0, i)),
                pl.BlockSpec((Cout, k), lambda i: (0, 0))]
    if fuse_in:
        operands += [isc, ish]
        in_specs += [pl.BlockSpec((k, 1), lambda i: (0, 0))] * 2
    if fuse_out:
        operands += [osc, osh]
        in_specs += [pl.BlockSpec((Cout, 1), lambda i: (0, 0))] * 2

    io_aliases = {}
    if dst is None:
        out_shape = jax.ShapeDtypeStruct((Cout, M), odt)
        out_specs = pl.BlockSpec((Cout, tm), lambda i: (0, i))
    else:
        row_blk = dst_row_offset // Cout
        out_shape = jax.ShapeDtypeStruct(dst.shape, dst.dtype)
        out_specs = pl.BlockSpec((Cout, tm), lambda i: (row_blk, i))
        # aliased destination (same blocks as the output); rows outside the grid
        # keep their previous contents = earlier layers' accumulated features.
        in_specs.append(pl.BlockSpec((Cout, tm), lambda i: (row_blk, i)))
        operands.append(dst)
        io_aliases = {len(operands) - 1: 0}

    return pl.pallas_call(
        _make_cf_matmul_kernel(fuse_in, fuse_out),
        out_shape=out_shape,
        grid=(grid_m,),
        in_specs=in_specs,
        out_specs=out_specs,
        input_output_aliases=io_aliases,
        compiler_params=pltpu.CompilerParams(
            dimension_semantics=("parallel",)),
    )(*operands)


# ---------------------------------------------------------------------------
# XLA glue: patch extraction and pooling (channels-first layout)
# ---------------------------------------------------------------------------
def conv_patches_cf(x_cf, ksz, strides, padding):
    # (C, N, D, H, W) -> (C*prod(ksz), N, Do, Ho, Wo); the patch-channel axis is
    # ordered (c, kd, kh, kw), matching a plain reshape of the PyTorch
    # (Cout, Cin, kd, kh, kw) weight to (Cout, Cin*kd*kh*kw).
    # TODO(synk): a tap-decomposed K-grid matmul would avoid materializing this.
    return lax.conv_general_dilated_patches(
        x_cf, filter_shape=tuple(ksz), window_strides=tuple(strides),
        padding=tuple(padding),
        dimension_numbers=("CNDHW", "OIDHW", "CNDHW"))


def max_pool3d_k3s2p1_cf(x):
    # TODO(synk): overlapping strided 3-D max window kept as lax.reduce_window glue.
    return lax.reduce_window(
        x, jnp.array(-jnp.inf, x.dtype), lax.max,
        window_dimensions=(1, 1, 3, 3, 3),
        window_strides=(1, 1, 2, 2, 2),
        padding=((0, 0), (0, 0), (1, 1), (1, 1), (1, 1)))


def avg_pool3d_k2s2_cf(x):
    # TODO(synk): 2x2x2 average pool kept as XLA reshape+mean glue (floor mode).
    C, N, D, H, W = x.shape
    x = x[:, :, :D // 2 * 2, :H // 2 * 2, :W // 2 * 2].astype(jnp.float32)
    x = x.reshape(C, N, D // 2, 2, H // 2, 2, W // 2, 2)
    return x.mean(axis=(3, 5, 7)).astype(jnp.bfloat16)


# ---------------------------------------------------------------------------
# Model pieces (mirror DenseNet.forward)
# ---------------------------------------------------------------------------
def stem(params, x_ncdhw, *, conv1_t_size, conv1_t_stride):
    # NCDHW -> channels-first (C, N, D, H, W), bf16 activations in HBM.
    x = jnp.transpose(x_ncdhw, (1, 0, 2, 3, 4)).astype(jnp.bfloat16)
    p = conv_patches_cf(x, (conv1_t_size, 7, 7), (conv1_t_stride, 2, 2),
                        ((conv1_t_size // 2, conv1_t_size // 2), (3, 3), (3, 3)))
    K, N, Do, Ho, Wo = p.shape
    # stem conv with fused norm1 + ReLU epilogue
    y = matmul_cf(p.reshape(K, N * Do * Ho * Wo), params['conv1_w'],
                  out_scale=params['norm1_scale'],
                  out_shift=params['norm1_shift'])
    return y.reshape(-1, N, Do, Ho, Wo)


def dense_block(x_cf, layers):
    C0, N, D, H, W = x_cf.shape
    M = N * D * H * W
    Cf = C0 + sum(l['conv2_w'].shape[0] for l in layers)
    # Per-block feature buffer; conv2 of each layer writes its growth_rate rows
    # in place, conv1 of the next layer reads the first `nin` rows.
    buf = jnp.concatenate(
        [x_cf.reshape(C0, M).astype(jnp.float32),
         jnp.zeros((Cf - C0, M), jnp.float32)], axis=0)
    for layer in layers:
        nin = layer['conv1_w'].shape[1]
        # norm1+ReLU (A prologue) -> 1x1 conv -> norm2+ReLU (epilogue): one kernel
        h = matmul_cf(buf, layer['conv1_w'], k=nin,
                      in_scale=layer['norm1_scale'], in_shift=layer['norm1_shift'],
                      out_scale=layer['norm2_scale'], out_shift=layer['norm2_shift'])
        h = h.reshape(-1, N, D, H, W)
        # conv2 3x3x3 (input already activated); drop_rate == 0 -> dropout identity.
        p = conv_patches_cf(h, (3, 3, 3), (1, 1, 1), ((1, 1), (1, 1), (1, 1)))
        buf = matmul_cf(p.reshape(p.shape[0], M), layer['conv2_w'],
                        dst=buf, dst_row_offset=nin)
    return buf.reshape(Cf, N, D, H, W)


def transition(x_cf, t):
    C, N, D, H, W = x_cf.shape
    # norm + ReLU (prologue) -> 1x1 conv -> avg pool
    y = matmul_cf(x_cf.reshape(C, N * D * H * W), t['conv_w'],
                  in_scale=t['norm_scale'], in_shift=t['norm_shift'])
    return avg_pool3d_k2s2_cf(y.reshape(-1, N, D, H, W))


def head(params, x_cf):
    # TODO(synk): norm5+ReLU+GAP+classifier stay as plain XLA — at (C=32,
    # spatial=1x2x2) a Pallas launch is pure overhead; a spatially tiled Pallas
    # GAP (VMEM budgeted for v7x's 64 MiB) is only worthwhile at larger configs.
    C = x_cf.shape[0]
    x = x_cf.astype(jnp.float32)
    s = params['norm5_scale'].reshape(C, 1, 1, 1, 1)
    b = params['norm5_shift'].reshape(C, 1, 1, 1, 1)
    y = jnp.maximum(x * s + b, 0.0)
    feat = y.mean(axis=(2, 3, 4)).T                      # (N, C)
    return feat @ params['fc_w'].T + params['fc_b'][None, :]


def densenet_forward(params, x_ncdhw, *, conv1_t_size, conv1_t_stride, no_max_pool):
    x = stem(params, x_ncdhw, conv1_t_size=conv1_t_size,
             conv1_t_stride=conv1_t_stride)
    if not no_max_pool:
        x = max_pool3d_k3s2p1_cf(x)
    for block in params['blocks']:
        x = dense_block(x, block['layers'])
        if 'trans' in block:
            x = transition(x, block['trans'])
    return head(params, x)


# ---------------------------------------------------------------------------
# Parameter construction: BN folded to scale/shift; conv weights pre-reshaped to
# (Cout, Cin*kd*kh*kw) rows (matching the patch ordering) and pre-cast to bf16.
# ---------------------------------------------------------------------------
def _bn_affine(key, c, eps=1e-5):
    k1, k2, k3, k4 = jax.random.split(key, 4)
    gamma = 1.0 + 0.1 * jax.random.normal(k1, (c,), jnp.float32)
    beta = 0.1 * jax.random.normal(k2, (c,), jnp.float32)
    mean = 0.1 * jax.random.normal(k3, (c,), jnp.float32)
    var = 0.5 + jax.random.uniform(k4, (c,), jnp.float32)
    scale = gamma * lax.rsqrt(var + eps)
    shift = beta - mean * scale
    return scale, shift


def _init_conv_w(key, cout, cin, ksz):
    fan_in = cin * ksz[0] * ksz[1] * ksz[2]
    w = jax.random.normal(key, (cout, cin) + tuple(ksz), jnp.float32) * (2.0 / fan_in) ** 0.5
    # PyTorch (Cout, Cin, kd, kh, kw) -> (Cout, Cin*kd*kh*kw); the row ordering
    # (c, kd, kh, kw) matches conv_general_dilated_patches' channel ordering.
    return w.reshape(cout, -1).astype(jnp.bfloat16)


def build_densenet_params(key, *, n_input_channels, conv1_t_size, growth_rate,
                          block_config, num_init_features, bn_size, num_classes):
    keys = iter(jax.random.split(key, 4096))
    params = {}
    params['conv1_w'] = _init_conv_w(next(keys), num_init_features,
                                     n_input_channels, (conv1_t_size, 7, 7))
    params['norm1_scale'], params['norm1_shift'] = _bn_affine(next(keys),
                                                              num_init_features)
    num_features = num_init_features
    blocks = []
    for i, num_layers in enumerate(block_config):
        layers = []
        for l in range(num_layers):
            nin = num_features + l * growth_rate
            n1s, n1b = _bn_affine(next(keys), nin)
            c1 = _init_conv_w(next(keys), bn_size * growth_rate, nin, (1, 1, 1))
            n2s, n2b = _bn_affine(next(keys), bn_size * growth_rate)
            c2 = _init_conv_w(next(keys), growth_rate, bn_size * growth_rate,
                              (3, 3, 3))
            layers.append({'norm1_scale': n1s, 'norm1_shift': n1b, 'conv1_w': c1,
                           'norm2_scale': n2s, 'norm2_shift': n2b, 'conv2_w': c2})
        num_features += num_layers * growth_rate
        block = {'layers': layers}
        if i != len(block_config) - 1:
            ts, tb = _bn_affine(next(keys), num_features)
            tw = _init_conv_w(next(keys), num_features // 2, num_features,
                              (1, 1, 1))
            block['trans'] = {'norm_scale': ts, 'norm_shift': tb, 'conv_w': tw}
            num_features //= 2
        blocks.append(block)
    params['blocks'] = blocks
    params['norm5_scale'], params['norm5_shift'] = _bn_affine(next(keys),
                                                              num_features)
    params['fc_w'] = jax.random.normal(next(keys), (num_classes, num_features),
                                       jnp.float32) * (1.0 / num_features) ** 0.5
    params['fc_b'] = 0.01 * jax.random.normal(next(keys), (num_classes,),
                                              jnp.float32)
    return params


if __name__ == "__main__":
    key = jax.random.PRNGKey(0)
    kp, kx = jax.random.split(key)

    cfg = dict(n_input_channels=2, conv1_t_size=3, conv1_t_stride=1,
               no_max_pool=False, growth_rate=8, block_config=(2, 2, 2),
               num_init_features=16, bn_size=2, num_classes=2)

    params = build_densenet_params(
        kp,
        n_input_channels=cfg['n_input_channels'],
        conv1_t_size=cfg['conv1_t_size'],
        growth_rate=cfg['growth_rate'],
        block_config=cfg['block_config'],
        num_init_features=cfg['num_init_features'],
        bn_size=cfg['bn_size'],
        num_classes=cfg['num_classes'])

    # small NCDHW input: (batch=2, channels=2, D=8, H=32, W=32)
    x = jax.random.normal(kx, (2, cfg['n_input_channels'], 8, 32, 32), jnp.float32)

    fwd = jax.jit(functools.partial(
        densenet_forward,
        conv1_t_size=cfg['conv1_t_size'],
        conv1_t_stride=cfg['conv1_t_stride'],
        no_max_pool=cfg['no_max_pool']))

    out = fwd(params, x)
    jax.block_until_ready(out)
    assert out.shape == (2, cfg['num_classes']), out.shape
    assert bool(jnp.all(jnp.isfinite(out)))
    print("KERNEL_OK")
</pallas_src>

<mosaic_0001>
module attributes {stable_mosaic.version = 11 : i64} {
  func.func @kernel(%arg0: i32, %arg1: memref<294x512xbf16, #tpu.memory_space<vmem>>, %arg2: memref<16x294xbf16, #tpu.memory_space<vmem>>, %arg3: memref<16x1xf32, #tpu.memory_space<vmem>>, %arg4: memref<16x1xf32, #tpu.memory_space<vmem>>, %arg5: memref<16x512xbf16, #tpu.memory_space<vmem>>) attributes {dimension_semantics = [#tpu.dimension_semantics<parallel>], iteration_bounds = array<i64: 8>, scalar_prefetch = 0 : i64, scratch_operands = 0 : i64, tpu.core_type = #tpu.core_type<tc>, window_params = [{transform_indices = @transform_0, window_bounds = array<i64: 294, 512>}, {pipeline_mode = #tpu.pipeline_mode<synchronous>, transform_indices = @transform_1, window_bounds = array<i64: 16, 294>}, {pipeline_mode = #tpu.pipeline_mode<synchronous>, transform_indices = @transform_2, window_bounds = array<i64: 16, 1>}, {pipeline_mode = #tpu.pipeline_mode<synchronous>, transform_indices = @transform_3, window_bounds = array<i64: 16, 1>}, {transform_indices = @transform_4, window_bounds = array<i64: 16, 512>}]} {
    %c0 = arith.constant 0 : index
    %c0_0 = arith.constant 0 : index
    %0 = vector.load %arg1[%c0, %c0_0] : memref<294x512xbf16, #tpu.memory_space<vmem>>, vector<294x512xbf16>
    %c0_1 = arith.constant 0 : index
    %c0_2 = arith.constant 0 : index
    %1 = vector.load %arg2[%c0_1, %c0_2] : memref<16x294xbf16, #tpu.memory_space<vmem>>, vector<16x294xbf16>
    %cst = arith.constant dense<0.000000e+00> : vector<16x512xf32>
    %2 = tpu.matmul %1, %0, %cst {dimension_numbers = #tpu.dot_dimension_numbers<[1], [0], [0], [1], [0, 0, 1, 1], [], []>} : vector<16x294xbf16>, vector<294x512xbf16>, vector<16x512xf32> -> vector<16x512xf32>
    %c0_3 = arith.constant 0 : index
    %c0_4 = arith.constant 0 : index
    %3 = vector.load %arg3[%c0_3, %c0_4] : memref<16x1xf32, #tpu.memory_space<vmem>>, vector<16x1xf32>
    %4 = vector.broadcast %3 : vector<16x1xf32> to vector<16x512xf32>
    %5 = arith.mulf %2, %4 : vector<16x512xf32>
    %c0_5 = arith.constant 0 : index
    %c0_6 = arith.constant 0 : index
    %6 = vector.load %arg4[%c0_5, %c0_6] : memref<16x1xf32, #tpu.memory_space<vmem>>, vector<16x1xf32>
    %7 = vector.broadcast %6 : vector<16x1xf32> to vector<16x512xf32>
    %8 = arith.addf %5, %7 : vector<16x512xf32>
    %cst_7 = arith.constant 0.000000e+00 : f32
    %9 = vector.broadcast %cst_7 : f32 to vector<16x512xf32>
    %10 = arith.maximumf %8, %9 : vector<16x512xf32>
    %11 = arith.truncf %10 : vector<16x512xf32> to vector<16x512xbf16>
    %c0_8 = arith.constant 0 : index
    %c0_9 = arith.constant 0 : index
    %12 = vector.load %arg5[%c0_8, %c0_9] : memref<16x512xbf16, #tpu.memory_space<vmem>>, vector<16x512xbf16>
    tpu.vector_store %arg5[%c0_8, %c0_9], %11 {strides = array<i32>} : memref<16x512xbf16, #tpu.memory_space<vmem>>, vector<16x512xbf16>,
    return
  }
  func.func @transform_0(%arg0: i32) -> (i32, i32) {
    %c0_i32 = arith.constant 0 : i32
    %c0_i32_0 = arith.constant 0 : i32
    return %c0_i32, %arg0 : i32, i32
  }
  func.func @transform_1(%arg0: i32) -> (i32, i32) {
    %c0_i32 = arith.constant 0 : i32
    %c0_i32_0 = arith.constant 0 : i32
    %c0_i32_1 = arith.constant 0 : i32
    return %c0_i32, %c0_i32_0 : i32, i32
  }
  func.func @transform_2(%arg0: i32) -> (i32, i32) {
    %c0_i32 = arith.constant 0 : i32
    %c0_i32_0 = arith.constant 0 : i32
    %c0_i32_1 = arith.constant 0 : i32
    return %c0_i32, %c0_i32_0 : i32, i32
  }
  func.func @transform_3(%arg0: i32) -> (i32, i32) {
    %c0_i32 = arith.constant 0 : i32
    %c0_i32_0 = arith.constant 0 : i32
    %c0_i32_1 = arith.constant 0 : i32
    return %c0_i32, %c0_i32_0 : i32, i32
  }
  func.func @transform_4(%arg0: i32) -> (i32, i32) {
    %c0_i32 = arith.constant 0 : i32
    %c0_i32_0 = arith.constant 0 : i32
    return %c0_i32, %arg0 : i32, i32
  }
}

module attributes {stable_mosaic.version = 11 : i64} {
  func.func @kernel(%arg0: i32, %arg1: memref<16x256xf32, #tpu.memory_space<vmem>>, %arg2: memref<16x16xbf16, #tpu.memory_space<vmem>>, %arg3: memref<16x1xf32, #tpu.memory_space<vmem>>, %arg4: memref<16x1xf32, #tpu.memory_space<vmem>>, %arg5: memref<16x1xf32, #tpu.memory_space<vmem>>, %arg6: memref<16x1xf32, #tpu.memory_space<vmem>>, %arg7: memref<16x256xbf16, #tpu.memory_space<vmem>>) attributes {dimension_semantics = [#tpu.dimension_semantics<parallel>], iteration_bounds = array<i64: 2>, scalar_prefetch = 0 : i64, scratch_operands = 0 : i64, tpu.core_type = #tpu.core_type<tc>, window_params = [{transform_indices = @transform_0, window_bounds = array<i64: 16, 256>}, {pipeline_mode = #tpu.pipeline_mode<synchronous>, transform_indices = @transform_1, window_bounds = array<i64: 16, 16>}, {pipeline_mode = #tpu.pipeline_mode<synchronous>, transform_indices = @transform_2, window_bounds = array<i64: 16, 1>}, {pipeline_mode = #tpu.pipeline_mode<synchronous>, transform_indices = @transform_3, window_bounds = array<i64: 16, 1>}, {pipeline_mode = #tpu.pipeline_mode<synchronous>, transform_indices = @transform_4, window_bounds = array<i64: 16, 1>}, {pipeline_mode = #tpu.pipeline_mode<synchronous>, transform_indices = @transform_5, window_bounds = array<i64: 16, 1>}, {transform_indices = @transform_6, window_bounds = array<i64: 16, 256>}]} {
    %c0 = arith.constant 0 : index
    %c0_0 = arith.constant 0 : index
    %0 = vector.load %arg1[%c0, %c0_0] : memref<16x256xf32, #tpu.memory_space<vmem>>, vector<16x256xf32>
    %c0_1 = arith.constant 0 : index
    %c0_2 = arith.constant 0 : index
    %1 = vector.load %arg3[%c0_1, %c0_2] : memref<16x1xf32, #tpu.memory_space<vmem>>, vector<16x1xf32>
    %2 = vector.broadcast %1 : vector<16x1xf32> to vector<16x256xf32>
    %3 = arith.mulf %0, %2 : vector<16x256xf32>
    %c0_3 = arith.constant 0 : index
    %c0_4 = arith.constant 0 : index
    %4 = vector.load %arg4[%c0_3, %c0_4] : memref<16x1xf32, #tpu.memory_space<vmem>>, vector<16x1xf32>
    %5 = vector.broadcast %4 : vector<16x1xf32> to vector<16x256xf32>
    %6 = arith.addf %3, %5 : vector<16x256xf32>
    %cst = arith.constant 0.000000e+00 : f32
    %7 = vector.broadcast %cst : f32 to vector<16x256xf32>
    %8 = arith.maximumf %6, %7 : vector<16x256xf32>
    %c0_5 = arith.constant 0 : index
    %c0_6 = arith.constant 0 : index
    %9 = vector.load %arg2[%c0_5, %c0_6] : memref<16x16xbf16, #tpu.memory_space<vmem>>, vector<16x16xbf16>
    %10 = arith.truncf %8 : vector<16x256xf32> to vector<16x256xbf16>
    %cst_7 = arith.constant dense<0.000000e+00> : vector<16x256xf32>
    %11 = tpu.matmul %9, %10, %cst_7 {dimension_numbers = #tpu.dot_dimension_numbers<[1], [0], [0], [1], [0, 0, 1, 1], [], []>} : vector<16x16xbf16>, vector<16x256xbf16>, vector<16x256xf32> -> vector<16x256xf32>
    %c0_8 = arith.constant 0 : index
    %c0_9 = arith.constant 0 : index
    %12 = vector.load %arg5[%c0_8, %c0_9] : memref<16x1xf32, #tpu.memory_space<vmem>>, vector<16x1xf32>
    %13 = vector.broadcast %12 : vector<16x1xf32> to vector<16x256xf32>
    %14 = arith.mulf %11, %13 : vector<16x256xf32>
    %c0_10 = arith.constant 0 : index
    %c0_11 = arith.constant 0 : index
    %15 = vector.load %arg6[%c0_10, %c0_11] : memref<16x1xf32, #tpu.memory_space<vmem>>, vector<16x1xf32>
    %16 = vector.broadcast %15 : vector<16x1xf32> to vector<16x256xf32>
    %17 = arith.addf %14, %16 : vector<16x256xf32>
    %cst_12 = arith.constant 0.000000e+00 : f32
    %18 = vector.broadcast %cst_12 : f32 to vector<16x256xf32>
    %19 = arith.maximumf %17, %18 : vector<16x256xf32>
    %20 = arith.truncf %19 : vector<16x256xf32> to vector<16x256xbf16>
    %c0_13 = arith.constant 0 : index
    %c0_14 = arith.constant 0 : index
    %21 = vector.load %arg7[%c0_13, %c0_14] : memref<16x256xbf16, #tpu.memory_space<vmem>>, vector<16x256xbf16>
    tpu.vector_store %arg7[%c0_13, %c0_14], %20 {strides = array<i32>} : memref<16x256xbf16, #tpu.memory_space<vmem>>, vector<16x256xbf16>,
    return
  }
  func.func @transform_0(%arg0: i32) -> (i32, i32) {
    %c0_i32 = arith.constant 0 : i32
    %c0_i32_0 = arith.constant 0 : i32
    return %c0_i32, %arg0 : i32, i32
  }
  func.func @transform_1(%arg0: i32) -> (i32, i32) {
    %c0_i32 = arith.constant 0 : i32
    %c0_i32_0 = arith.constant 0 : i32
    %c0_i32_1 = arith.constant 0 : i32
    return %c0_i32, %c0_i32_0 : i32, i32
  }
  func.func @transform_2(%arg0: i32) -> (i32, i32) {
    %c0_i32 = arith.constant 0 : i32
    %c0_i32_0 = arith.constant 0 : i32
    %c0_i32_1 = arith.constant 0 : i32
    return %c0_i32, %c0_i32_0 : i32, i32
  }
  func.func @transform_3(%arg0: i32) -> (i32, i32) {
    %c0_i32 = arith.constant 0 : i32
    %c0_i32_0 = arith.constant 0 : i32
    %c0_i32_1 = arith.constant 0 : i32
    return %c0_i32, %c0_i32_0 : i32, i32
  }
  func.func @transform_4(%arg0: i32) -> (i32, i32) {
    %c0_i32 = arith.constant 0 : i32
    %c0_i32_0 = arith.constant 0 : i32
    %c0_i32_1 = arith.constant 0 : i32
    return %c0_i32, %c0_i32_0 : i32, i32
  }
  func.func @transform_5(%arg0: i32) -> (i32, i32) {
    %c0_i32 = arith.constant 0 : i32
    %c0_i32_0 = arith.constant 0 : i32
    %c0_i32_1 = arith.constant 0 : i32
    return %c0_i32, %c0_i32_0 : i32, i32
  }
  func.func @transform_6(%arg0: i32) -> (i32, i32) {
    %c0_i32 = arith.constant 0 : i32
    %c0_i32_0 = arith.constant 0 : i32
    return %c0_i32, %arg0 : i32, i32
  }
}

module attributes {stable_mosaic.version = 11 : i64} {
  func.func @kernel(%arg0: i32, %arg1: memref<432x256xbf16, #tpu.memory_space<vmem>>, %arg2: memref<8x432xbf16, #tpu.memory_space<vmem>>, %arg3: memref<8x256xf32, #tpu.memory_space<vmem>>, %arg4: memref<8x256xf32, #tpu.memory_space<vmem>>) attributes {dimension_semantics = [#tpu.dimension_semantics<parallel>], iteration_bounds = array<i64: 2>, scalar_prefetch = 0 : i64, scratch_operands = 0 : i64, tpu.core_type = #tpu.core_type<tc>, window_params = [{transform_indices = @transform_0, window_bounds = array<i64: 432, 256>}, {pipeline_mode = #tpu.pipeline_mode<synchronous>, transform_indices = @transform_1, window_bounds = array<i64: 8, 432>}, {transform_indices = @transform_2, window_bounds = array<i64: 8, 256>}, {transform_indices = @transform_3, window_bounds = array<i64: 8, 256>}]} {
    %c0 = arith.constant 0 : index
    %c0_0 = arith.constant 0 : index
    %0 = vector.load %arg1[%c0, %c0_0] : memref<432x256xbf16, #tpu.memory_space<vmem>>, vector<432x256xbf16>
    %c0_1 = arith.constant 0 : index
    %c0_2 = arith.constant 0 : index
    %1 = vector.load %arg2[%c0_1, %c0_2] : memref<8x432xbf16, #tpu.memory_space<vmem>>, vector<8x432xbf16>
    %cst = arith.constant dense<0.000000e+00> : vector<8x256xf32>
    %2 = tpu.matmul %1, %0, %cst {dimension_numbers = #tpu.dot_dimension_numbers<[1], [0], [0], [1], [0, 0, 1, 1], [], []>} : vector<8x432xbf16>, vector<432x256xbf16>, vector<8x256xf32> -> vector<8x256xf32>
    %c0_3 = arith.constant 0 : index
    %c0_4 = arith.constant 0 : index
    %3 = vector.load %arg4[%c0_3, %c0_4] : memref<8x256xf32, #tpu.memory_space<vmem>>, vector<8x256xf32>
    tpu.vector_store %arg4[%c0_3, %c0_4], %2 {strides = array<i32>} : memref<8x256xf32, #tpu.memory_space<vmem>>, vector<8x256xf32>,
    return
  }
  func.func @transform_0(%arg0: i32) -> (i32, i32) {
    %c0_i32 = arith.constant 0 : i32
    %c0_i32_0 = arith.constant 0 : i32
    return %c0_i32, %arg0 : i32, i32
  }
  func.func @transform_1(%arg0: i32) -> (i32, i32) {
    %c0_i32 = arith.constant 0 : i32
    %c0_i32_0 = arith.constant 0 : i32
    %c0_i32_1 = arith.constant 0 : i32
    return %c0_i32, %c0_i32_0 : i32, i32
  }
  func.func @transform_2(%arg0: i32) -> (i32, i32) {
    %c2_i32 = arith.constant 2 : i32
    %c0_i32 = arith.constant 0 : i32
    return %c2_i32, %arg0 : i32, i32
  }
  func.func @transform_3(%arg0: i32) -> (i32, i32) {
    %c2_i32 = arith.constant 2 : i32
    %c0_i32 = arith.constant 0 : i32
    return %c2_i32, %arg0 : i32, i32
  }
}

module attributes {stable_mosaic.version = 11 : i64} {
  func.func @kernel(%arg0: i32, %arg1: memref<24x256xf32, #tpu.memory_space<vmem>>, %arg2: memref<16x24xbf16, #tpu.memory_space<vmem>>, %arg3: memref<24x1xf32, #tpu.memory_space<vmem>>, %arg4: memref<24x1xf32, #tpu.memory_space<vmem>>, %arg5: memref<16x1xf32, #tpu.memory_space<vmem>>, %arg6: memref<16x1xf32, #tpu.memory_space<vmem>>, %arg7: memref<16x256xbf16, #tpu.memory_space<vmem>>) attributes {dimension_semantics = [#tpu.dimension_semantics<parallel>], iteration_bounds = array<i64: 2>, scalar_prefetch = 0 : i64, scratch_operands = 0 : i64, tpu.core_type = #tpu.core_type<tc>, window_params = [{transform_indices = @transform_0, window_bounds = array<i64: 24, 256>}, {pipeline_mode = #tpu.pipeline_mode<synchronous>, transform_indices = @transform_1, window_bounds = array<i64: 16, 24>}, {pipeline_mode = #tpu.pipeline_mode<synchronous>, transform_indices = @transform_2, window_bounds = array<i64: 24, 1>}, {pipeline_mode = #tpu.pipeline_mode<synchronous>, transform_indices = @transform_3, window_bounds = array<i64: 24, 1>}, {pipeline_mode = #tpu.pipeline_mode<synchronous>, transform_indices = @transform_4, window_bounds = array<i64: 16, 1>}, {pipeline_mode = #tpu.pipeline_mode<synchronous>, transform_indices = @transform_5, window_bounds = array<i64: 16, 1>}, {transform_indices = @transform_6, window_bounds = array<i64: 16, 256>}]} {
    %c0 = arith.constant 0 : index
    %c0_0 = arith.constant 0 : index
    %0 = vector.load %arg1[%c0, %c0_0] : memref<24x256xf32, #tpu.memory_space<vmem>>, vector<24x256xf32>
    %c0_1 = arith.constant 0 : index
    %c0_2 = arith.constant 0 : index
    %1 = vector.load %arg3[%c0_1, %c0_2] : memref<24x1xf32, #tpu.memory_space<vmem>>, vector<24x1xf32>
    %2 = vector.broadcast %1 : vector<24x1xf32> to vector<24x256xf32>
    %3 = arith.mulf %0, %2 : vector<24x256xf32>
    %c0_3 = arith.constant 0 : index
    %c0_4 = arith.constant 0 : index
    %4 = vector.load %arg4[%c0_3, %c0_4] : memref<24x1xf32, #tpu.memory_space<vmem>>, vector<24x1xf32>
    %5 = vector.broadcast %4 : vector<24x1xf32> to vector<24x256xf32>
    %6 = arith.addf %3, %5 : vector<24x256xf32>
    %cst = arith.constant 0.000000e+00 : f32
    %7 = vector.broadcast %cst : f32 to vector<24x256xf32>
    %8 = arith.maximumf %6, %7 : vector<24x256xf32>
    %c0_5 = arith.constant 0 : index
    %c0_6 = arith.constant 0 : index
    %9 = vector.load %arg2[%c0_5, %c0_6] : memref<16x24xbf16, #tpu.memory_space<vmem>>, vector<16x24xbf16>
    %10 = arith.truncf %8 : vector<24x256xf32> to vector<24x256xbf16>
    %cst_7 = arith.constant dense<0.000000e+00> : vector<16x256xf32>
    %11 = tpu.matmul %9, %10, %cst_7 {dimension_numbers = #tpu.dot_dimension_numbers<[1], [0], [0], [1], [0, 0, 1, 1], [], []>} : vector<16x24xbf16>, vector<24x256xbf16>, vector<16x256xf32> -> vector<16x256xf32>
    %c0_8 = arith.constant 0 : index
    %c0_9 = arith.constant 0 : index
    %12 = vector.load %arg5[%c0_8, %c0_9] : memref<16x1xf32, #tpu.memory_space<vmem>>, vector<16x1xf32>
    %13 = vector.broadcast %12 : vector<16x1xf32> to vector<16x256xf32>
    %14 = arith.mulf %11, %13 : vector<16x256xf32>
    %c0_10 = arith.constant 0 : index
    %c0_11 = arith.constant 0 : index
    %15 = vector.load %arg6[%c0_10, %c0_11] : memref<16x1xf32, #tpu.memory_space<vmem>>, vector<16x1xf32>
    %16 = vector.broadcast %15 : vector<16x1xf32> to vector<16x256xf32>
    %17 = arith.addf %14, %16 : vector<16x256xf32>
    %cst_12 = arith.constant 0.000000e+00 : f32
    %18 = vector.broadcast %cst_12 : f32 to vector<16x256xf32>
    %19 = arith.maximumf %17, %18 : vector<16x256xf32>
    %20 = arith.truncf %19 : vector<16x256xf32> to vector<16x256xbf16>
    %c0_13 = arith.constant 0 : index
    %c0_14 = arith.constant 0 : index
    %21 = vector.load %arg7[%c0_13, %c0_14] : memref<16x256xbf16, #tpu.memory_space<vmem>>, vector<16x256xbf16>
    tpu.vector_store %arg7[%c0_13, %c0_14], %20 {strides = array<i32>} : memref<16x256xbf16, #tpu.memory_space<vmem>>, vector<16x256xbf16>,
    return
  }
  func.func @transform_0(%arg0: i32) -> (i32, i32) {
    %c0_i32 = arith.constant 0 : i32
    %c0_i32_0 = arith.constant 0 : i32
    return %c0_i32, %arg0 : i32, i32
  }
  func.func @transform_1(%arg0: i32) -> (i32, i32) {
    %c0_i32 = arith.constant 0 : i32
    %c0_i32_0 = arith.constant 0 : i32
    %c0_i32_1 = arith.constant 0 : i32
    return %c0_i32, %c0_i32_0 : i32, i32
  }
  func.func @transform_2(%arg0: i32) -> (i32, i32) {
    %c0_i32 = arith.constant 0 : i32
    %c0_i32_0 = arith.constant 0 : i32
    %c0_i32_1 = arith.constant 0 : i32
    return %c0_i32, %c0_i32_0 : i32, i32
  }
  func.func @transform_3(%arg0: i32) -> (i32, i32) {
    %c0_i32 = arith.constant 0 : i32
    %c0_i32_0 = arith.constant 0 : i32
    %c0_i32_1 = arith.constant 0 : i32
    return %c0_i32, %c0_i32_0 : i32, i32
  }
  func.func @transform_4(%arg0: i32) -> (i32, i32) {
    %c0_i32 = arith.constant 0 : i32
    %c0_i32_0 = arith.constant 0 : i32
    %c0_i32_1 = arith.constant 0 : i32
    return %c0_i32, %c0_i32_0 : i32, i32
  }
  func.func @transform_5(%arg0: i32) -> (i32, i32) {
    %c0_i32 = arith.constant 0 : i32
    %c0_i32_0 = arith.constant 0 : i32
    %c0_i32_1 = arith.constant 0 : i32
    return %c0_i32, %c0_i32_0 : i32, i32
  }
  func.func @transform_6(%arg0: i32) -> (i32, i32) {
    %c0_i32 = arith.constant 0 : i32
    %c0_i32_0 = arith.constant 0 : i32
    return %c0_i32, %arg0 : i32, i32
  }
}

module attributes {stable_mosaic.version = 11 : i64} {
  func.func @kernel(%arg0: i32, %arg1: memref<432x256xbf16, #tpu.memory_space<vmem>>, %arg2: memref<8x432xbf16, #tpu.memory_space<vmem>>, %arg3: memref<8x256xf32, #tpu.memory_space<vmem>>, %arg4: memref<8x256xf32, #tpu.memory_space<vmem>>) attributes {dimension_semantics = [#tpu.dimension_semantics<parallel>], iteration_bounds = array<i64: 2>, scalar_prefetch = 0 : i64, scratch_operands = 0 : i64, tpu.core_type = #tpu.core_type<tc>, window_params = [{transform_indices = @transform_0, window_bounds = array<i64: 432, 256>}, {pipeline_mode = #tpu.pipeline_mode<synchronous>, transform_indices = @transform_1, window_bounds = array<i64: 8, 432>}, {transform_indices = @transform_2, window_bounds = array<i64: 8, 256>}, {transform_indices = @transform_3, window_bounds = array<i64: 8, 256>}]} {
    %c0 = arith.constant 0 : index
    %c0_0 = arith.constant 0 : index
    %0 = vector.load %arg1[%c0, %c0_0] : memref<432x256xbf16, #tpu.memory_space<vmem>>, vector<432x256xbf16>
    %c0_1 = arith.constant 0 : index
    %c0_2 = arith.constant 0 : index
    %1 = vector.load %arg2[%c0_1, %c0_2] : memref<8x432xbf16, #tpu.memory_space<vmem>>, vector<8x432xbf16>
    %cst = arith.constant dense<0.000000e+00> : vector<8x256xf32>
    %2 = tpu.matmul %1, %0, %cst {dimension_numbers = #tpu.dot_dimension_numbers<[1], [0], [0], [1], [0, 0, 1, 1], [], []>} : vector<8x432xbf16>, vector<432x256xbf16>, vector<8x256xf32> -> vector<8x256xf32>
    %c0_3 = arith.constant 0 : index
    %c0_4 = arith.constant 0 : index
    %3 = vector.load %arg4[%c0_3, %c0_4] : memref<8x256xf32, #tpu.memory_space<vmem>>, vector<8x256xf32>
    tpu.vector_store %arg4[%c0_3, %c0_4], %2 {strides = array<i32>} : memref<8x256xf32, #tpu.memory_space<vmem>>, vector<8x256xf32>,
    return
  }
  func.func @transform_0(%arg0: i32) -> (i32, i32) {
    %c0_i32 = arith.constant 0 : i32
    %c0_i32_0 = arith.constant 0 : i32
    return %c0_i32, %arg0 : i32, i32
  }
  func.func @transform_1(%arg0: i32) -> (i32, i32) {
    %c0_i32 = arith.constant 0 : i32
    %c0_i32_0 = arith.constant 0 : i32
    %c0_i32_1 = arith.constant 0 : i32
    return %c0_i32, %c0_i32_0 : i32, i32
  }
  func.func @transform_2(%arg0: i32) -> (i32, i32) {
    %c3_i32 = arith.constant 3 : i32
    %c0_i32 = arith.constant 0 : i32
    return %c3_i32, %arg0 : i32, i32
  }
  func.func @transform_3(%arg0: i32) -> (i32, i32) {
    %c3_i32 = arith.constant 3 : i32
    %c0_i32 = arith.constant 0 : i32
    return %c3_i32, %arg0 : i32, i32
  }
}

module attributes {stable_mosaic.version = 11 : i64} {
  func.func @kernel(%arg0: i32, %arg1: memref<32x256xf32, #tpu.memory_space<vmem>>, %arg2: memref<16x32xbf16, #tpu.memory_space<vmem>>, %arg3: memref<32x1xf32, #tpu.memory_space<vmem>>, %arg4: memref<32x1xf32, #tpu.memory_space<vmem>>, %arg5: memref<16x256xbf16, #tpu.memory_space<vmem>>) attributes {dimension_semantics = [#tpu.dimension_semantics<parallel>], iteration_bounds = array<i64: 2>, scalar_prefetch = 0 : i64, scratch_operands = 0 : i64, tpu.core_type = #tpu.core_type<tc>, window_params = [{transform_indices = @transform_0, window_bounds = array<i64: 32, 256>}, {pipeline_mode = #tpu.pipeline_mode<synchronous>, transform_indices = @transform_1, window_bounds = array<i64: 16, 32>}, {pipeline_mode = #tpu.pipeline_mode<synchronous>, transform_indices = @transform_2, window_bounds = array<i64: 32, 1>}, {pipeline_mode = #tpu.pipeline_mode<synchronous>, transform_indices = @transform_3, window_bounds = array<i64: 32, 1>}, {transform_indices = @transform_4, window_bounds = array<i64: 16, 256>}]} {
    %c0 = arith.constant 0 : index
    %c0_0 = arith.constant 0 : index
    %0 = vector.load %arg1[%c0, %c0_0] : memref<32x256xf32, #tpu.memory_space<vmem>>, vector<32x256xf32>
    %c0_1 = arith.constant 0 : index
    %c0_2 = arith.constant 0 : index
    %1 = vector.load %arg3[%c0_1, %c0_2] : memref<32x1xf32, #tpu.memory_space<vmem>>, vector<32x1xf32>
    %2 = vector.broadcast %1 : vector<32x1xf32> to vector<32x256xf32>
    %3 = arith.mulf %0, %2 : vector<32x256xf32>
    %c0_3 = arith.constant 0 : index
    %c0_4 = arith.constant 0 : index
    %4 = vector.load %arg4[%c0_3, %c0_4] : memref<32x1xf32, #tpu.memory_space<vmem>>, vector<32x1xf32>
    %5 = vector.broadcast %4 : vector<32x1xf32> to vector<32x256xf32>
    %6 = arith.addf %3, %5 : vector<32x256xf32>
    %cst = arith.constant 0.000000e+00 : f32
    %7 = vector.broadcast %cst : f32 to vector<32x256xf32>
    %8 = arith.maximumf %6, %7 : vector<32x256xf32>
    %c0_5 = arith.constant 0 : index
    %c0_6 = arith.constant 0 : index
    %9 = vector.load %arg2[%c0_5, %c0_6] : memref<16x32xbf16, #tpu.memory_space<vmem>>, vector<16x32xbf16>
    %10 = arith.truncf %8 : vector<32x256xf32> to vector<32x256xbf16>
    %cst_7 = arith.constant dense<0.000000e+00> : vector<16x256xf32>
    %11 = tpu.matmul %9, %10, %cst_7 {dimension_numbers = #tpu.dot_dimension_numbers<[1], [0], [0], [1], [0, 0, 1, 1], [], []>} : vector<16x32xbf16>, vector<32x256xbf16>, vector<16x256xf32> -> vector<16x256xf32>
    %12 = arith.truncf %11 : vector<16x256xf32> to vector<16x256xbf16>
    %c0_8 = arith.constant 0 : index
    %c0_9 = arith.constant 0 : index
    %13 = vector.load %arg5[%c0_8, %c0_9] : memref<16x256xbf16, #tpu.memory_space<vmem>>, vector<16x256xbf16>
    tpu.vector_store %arg5[%c0_8, %c0_9], %12 {strides = array<i32>} : memref<16x256xbf16, #tpu.memory_space<vmem>>, vector<16x256xbf16>,
    return
  }
  func.func @transform_0(%arg0: i32) -> (i32, i32) {
    %c0_i32 = arith.constant 0 : i32
    %c0_i32_0 = arith.constant 0 : i32
    return %c0_i32, %arg0 : i32, i32
  }
  func.func @transform_1(%arg0: i32) -> (i32, i32) {
    %c0_i32 = arith.constant 0 : i32
    %c0_i32_0 = arith.constant 0 : i32
    %c0_i32_1 = arith.constant 0 : i32
    return %c0_i32, %c0_i32_0 : i32, i32
  }
  func.func @transform_2(%arg0: i32) -> (i32, i32) {
    %c0_i32 = arith.constant 0 : i32
    %c0_i32_0 = arith.constant 0 : i32
    %c0_i32_1 = arith.constant 0 : i32
    return %c0_i32, %c0_i32_0 : i32, i32
  }
  func.func @transform_3(%arg0: i32) -> (i32, i32) {
    %c0_i32 = arith.constant 0 : i32
    %c0_i32_0 = arith.constant 0 : i32
    %c0_i32_1 = arith.constant 0 : i32
    return %c0_i32, %c0_i32_0 : i32, i32
  }
  func.func @transform_4(%arg0: i32) -> (i32, i32) {
    %c0_i32 = arith.constant 0 : i32
    %c0_i32_0 = arith.constant 0 : i32
    return %c0_i32, %arg0 : i32, i32
  }
}

</mosaic_0001>

<llo_original>
// kernel: densenet_forward.6
$region0: #{densenet_forward.6}
  #allocation0 [shape = 'u32[]', space=smem, size = 0x4, offset = 0x4, fixed_abs, tag = 'smem constant byte address 0x4 - core index']
  #allocation1 [shape = 'u32[72,128]{1,0:T(1,128)}', space=vmem, size = 0x9000, scoped, tag = 'internal scratch']
  %s0 = inlined_call_operand.vmem [shape: bf16[294,4096], index: 0, kind: input, shape index: {}]
  %s1 = inlined_call_operand.vmem [shape: bf16[16,294], index: 1, kind: input, shape index: {}]
  %s2 = inlined_call_operand.vmem [shape: f32[16,1], index: 2, kind: input, shape index: {}]
  %s3 = inlined_call_operand.vmem [shape: f32[16,1], index: 3, kind: input, shape index: {}]
  %s4 = inlined_call_operand.vmem [shape: bf16[16,4096], index: 4, kind: output, shape index: {}]
  %s5 = sld [smem:[#allocation0]]
  $region91: #{densenet_forward.6} parent=0
    _
  %s7 = ssub.s32 1, %s5
  %s8 = scalar_select 0, %s7, %s5
  $region1: #{densenet_forward.6} parent=0
    #allocation2 [shape = 'u8[606208]{0}', space=vmem, size = 0x94000, scoped, tag = 'input window, operand 0']
    #allocation3 [shape = 'u8[32768]{0}', space=vmem, size = 0x8000, scoped, tag = 'output window, operand 0']
    loop: start=0, step=1, limit=10
    $region2: #{densenet_forward.6} parent=1 // loop_pre_header
      _
    $region3: #{densenet_forward.6} parent=1 // loop_header
      %s10 = sphi 0, %s14
      %p11 = scmp.ge.s32.totalorder %s10, 10
      %s20 = sphi 0, %s22
      %s23 = sphi 0, %s20
      %s24 = sphi 0, %s23
      %s40 = sphi 0, %s24
      %s44 = sphi 0, %s44
      %s46 = sphi 0, %s44
      %s47 = sphi 0, %s46
      %s61 = sphi 0, %s47
      %s65 = sphi 0, %s65
      %s67 = sphi 0, %s65
      %s68 = sphi 0, %s67
      %s82 = sphi 0, %s68
      %s86 = sphi 0, %s86
      %s88 = sphi 0, %s86
      %s89 = sphi 0, %s88
      %s103 = sphi 0, %s89
      %s109 = sphi 0, %s111
      %s112 = sphi 0, %s109
      %s113 = sphi 0, %s112
      %s129 = sphi 0, %s113
    $region4: #{densenet_forward.6} parent=1 // loop_header_branch
      %13 = sbr.rel (%p11) target = $region8
    $region5: #{densenet_forward.6} parent=1 // loop_body
      %s15 = ssub.s32 %s10, 1
      %s16 = ssub.s32 %s10, 2
      %s17 = sadd.s32 %s10, 1
      %s18 = ssub.s32 %s10, %s17
      %p19 = scmp.eq.s32.totalorder %s18, 0
      %s21 = sadd.s32 %s20, 1
      %s22 = scalar_select %p19, %s20, %s21
      %p25 = pneg %p19
      %p26 = scmp.eq.s32.totalorder %s10, 7
      %p27 = por %p25, %p26
      %p28 = scmp.ne.s32.totalorder %s20, %s23
      %p29 = scmp.eq.s32.totalorder %s10, 0
      %p30 = por %p28, %p29
      %p31 = scmp.ne.s32.totalorder %s20, %s23
      %p32 = scmp.eq.s32.totalorder %s15, 7
      %p33 = por %p31, %p32
      %p34 = scmp.ne.s32.totalorder %s23, %s24
      %p35 = scmp.eq.s32.totalorder %s15, 0
      %p36 = por %p34, %p35
      %p37 = scmp.ne.s32.totalorder %s23, %s24
      %p38 = scmp.eq.s32.totalorder %s16, 7
      %p39 = por %p37, %p38
      %p41 = scmp.ne.s32.totalorder %s24, %s40
      %p42 = scmp.eq.s32.totalorder %s16, 0
      %p43 = por %p41, %p42
      %s45 = sadd.s32 %s44, 1
      %p48 = scmp.eq.s32.totalorder %s10, 7
      %p49 = scmp.ne.s32.totalorder %s44, %s46
      %p50 = scmp.eq.s32.totalorder %s10, 0
      %p51 = por %p49, %p50
      %p52 = scmp.ne.s32.totalorder %s44, %s46
      %p53 = scmp.eq.s32.totalorder %s15, 7
      %p54 = por %p52, %p53
      %p55 = scmp.ne.s32.totalorder %s46, %s47
      %p56 = scmp.eq.s32.totalorder %s15, 0
      %p57 = por %p55, %p56
      %p58 = scmp.ne.s32.totalorder %s46, %s47
      %p59 = scmp.eq.s32.totalorder %s16, 7
      %p60 = por %p58, %p59
      %p62 = scmp.ne.s32.totalorder %s47, %s61
      %p63 = scmp.eq.s32.totalorder %s16, 0
      %p64 = por %p62, %p63
      %s66 = sadd.s32 %s65, 1
      %p69 = scmp.eq.s32.totalorder %s10, 7
      %p70 = scmp.ne.s32.totalorder %s65, %s67
      %p71 = scmp.eq.s32.totalorder %s10, 0
      %p72 = por %p70, %p71
      %p73 = scmp.ne.s32.totalorder %s65, %s67
      %p74 = scmp.eq.s32.totalorder %s15, 7
      %p75 = por %p73, %p74
      %p76 = scmp.ne.s32.totalorder %s67, %s68
      %p77 = scmp.eq.s32.totalorder %s15, 0
      %p78 = por %p76, %p77
      %p79 = scmp.ne.s32.totalorder %s67, %s68
      %p80 = scmp.eq.s32.totalorder %s16, 7
      %p81 = por %p79, %p80
      %p83 = scmp.ne.s32.totalorder %s68, %s82
      %p84 = scmp.eq.s32.totalorder %s16, 0
      %p85 = por %p83, %p84
      %s87 = sadd.s32 %s86, 1
      %p90 = scmp.eq.s32.totalorder %s10, 7
      %p91 = scmp.ne.s32.totalorder %s86, %s88
      %p92 = scmp.eq.s32.totalorder %s10, 0
      %p93 = por %p91, %p92
      %p94 = scmp.ne.s32.totalorder %s86, %s88
      %p95 = scmp.eq.s32.totalorder %s15, 7
      %p96 = por %p94, %p95
      %p97 = scmp.ne.s32.totalorder %s88, %s89
      %p98 = scmp.eq.s32.totalorder %s15, 0
      %p99 = por %p97, %p98
      %p100 = scmp.ne.s32.totalorder %s88, %s89
      %p101 = scmp.eq.s32.totalorder %s16, 7
      %p102 = por %p100, %p101
      %p104 = scmp.ne.s32.totalorder %s89, %s103
      %p105 = scmp.eq.s32.totalorder %s16, 0
      %p106 = por %p104, %p105
      %s107 = ssub.s32 %s10, %s17
      %p108 = scmp.eq.s32.totalorder %s107, 0
      %s110 = sadd.s32 %s109, 1
      %s111 = scalar_select %p108, %s109, %s110
      %p114 = pneg %p108
      %p115 = scmp.eq.s32.totalorder %s10, 7
      %p116 = por %p114, %p115
      %p117 = scmp.ne.s32.totalorder %s109, %s112
      %p118 = scmp.eq.s32.totalorder %s10, 0
      %p119 = por %p117, %p118
      %p120 = scmp.ne.s32.totalorder %s109, %s112
      %p121 = scmp.eq.s32.totalorder %s15, 7
      %p122 = por %p120, %p121
      %p123 = scmp.ne.s32.totalorder %s112, %s113
      %p124 = scmp.eq.s32.totalorder %s15, 0
      %p125 = por %p123, %p124
      %p126 = scmp.ne.s32.totalorder %s112, %s113
      %p127 = scmp.eq.s32.totalorder %s16, 7
      %p128 = por %p126, %p127
      %p130 = scmp.ne.s32.totalorder %s113, %s129
      %p131 = scmp.eq.s32.totalorder %s16, 0
      %p132 = por %p130, %p131
      %p133 = scmp.le.s32.totalorder 1, %s10
      %p134 = scmp.lt.s32.totalorder %s10, 9
      %p135 = pnand %p133, %p134
      %p136 = pneg %p135
      // Predicated region
      $region9: #{densenet_forward.6} parent=5 // pred_check
        _
      $region10: #{densenet_forward.6} parent=5 // pred_check_branch
        %138 = sbr.rel (%p135) target = $region12
      $region11: #{densenet_forward.6} parent=5 // pred_region
        %s139 = ssub.s32 %s10, 1
        // Predicated region
        $region13: #{densenet_forward.6} parent=11 // pred_check
          %p140 = pneg %p57
        $region14: #{densenet_forward.6} parent=11 // pred_check_branch
          %142 = sbr.rel (%p140) target = $region16
        $region15: #{densenet_forward.6} parent=11 // pred_region
          _
        $region16: #{densenet_forward.6} parent=11 // pred_fallthru
          _
        // Predicated region
        $region17: #{densenet_forward.6} parent=11 // pred_check
          %p143 = pneg %p78
        $region18: #{densenet_forward.6} parent=11 // pred_check_branch
          %145 = sbr.rel (%p143) target = $region20
        $region19: #{densenet_forward.6} parent=11 // pred_region
          _
        $region20: #{densenet_forward.6} parent=11 // pred_fallthru
          _
        // Predicated region
        $region21: #{densenet_forward.6} parent=11 // pred_check
          %p146 = pneg %p99
        $region22: #{densenet_forward.6} parent=11 // pred_check_branch
          %148 = sbr.rel (%p146) target = $region24
        $region23: #{densenet_forward.6} parent=11 // pred_region
          _
        $region24: #{densenet_forward.6} parent=11 // pred_fallthru
          _
      $region12: #{densenet_forward.6} parent=5 // pred_fallthru
        _
      %p149 = scmp.lt.s32.totalorder %s10, 8
      // Predicated region
      $region25: #{densenet_forward.6} parent=5 // pred_check
        %p150 = pneg %p149
      $region26: #{densenet_forward.6} parent=5 // pred_check_branch
        %152 = sbr.rel (%p150) target = $region28
      $region27: #{densenet_forward.6} parent=5 // pred_region
        // Predicated region
        $region29: #{densenet_forward.6} parent=27 // pred_check
          %p153 = pneg %p30
        $region30: #{densenet_forward.6} parent=27 // pred_check_branch
          %155 = sbr.rel (%p153) target = $region32
        $region31: #{densenet_forward.6} parent=27 // pred_region
          %s156 = sand.u32 %s20, 1
          %s157 = sand.u32 %s20, 1
          %s158 = smul.addr %s157, 592
          %s159 = scalar_lea.vmem [#allocation2], %s158
          %s160 = smul.u32 4, %s10
          %s161 = smul.addr %s160, 4
          %s162 = scalar_lea.vmem %s0, %s161
          // Predicated region
          $region33: #{densenet_forward.6} parent=31 // pred_check
            _
          $region34: #{densenet_forward.6} parent=31 // pred_check_branch
            %164 = sbr.rel (0) target = $region36
          $region35: #{densenet_forward.6} parent=31 // pred_region
            // Predicated region
            $region37: #{densenet_forward.6} parent=35 // pred_check
              _
            $region38: #{densenet_forward.6} parent=35 // pred_check_branch
              %166 = sbr.rel (0) target = $region40
            $region39: #{densenet_forward.6} parent=35 // pred_region
              loop: start=0, step=1, limit=1
              $region41: #{densenet_forward.6} parent=39 // loop_pre_header
                _
              $region42: #{densenet_forward.6} parent=39 // loop_header
                %s168 = sphi 0, %s172
                %p169 = scmp.ge.s32.totalorder %s168, 1
                %s173 = sphi %s162, %s162
                %s174 = sphi %s159, %s159
              $region43: #{densenet_forward.6} parent=39 // loop_header_branch
                %171 = sbr.rel (%p169) target = $region47
              $region44: #{densenet_forward.6} parent=39 // loop_body
                %v175 = vld [vmem:[%s173] sm:$0xff]
                %176 = vst [vmem:[%s174] sm:$0xff] %v175
                %v177 = vld [vmem:[%s173 + $0x8] sm:$0xff]
                %178 = vst [vmem:[%s174 + $0x8] sm:$0xff] %v177
                %v179 = vld [vmem:[%s173 + $0x80] sm:$0xff]
                %180 = vst [vmem:[%s174 + $0x10] sm:$0xff] %v179
                %v181 = vld [vmem:[%s173 + $0x88] sm:$0xff]
                %182 = vst [vmem:[%s174 + $0x18] sm:$0xff] %v181
                %v183 = vld [vmem:[%s173 + $0x100] sm:$0xff]
                %184 = vst [vmem:[%s174 + $0x20] sm:$0xff] %v183
                %v185 = vld [vmem:[%s173 + $0x108] sm:$0xff]
                %186 = vst [vmem:[%s174 + $0x28] sm:$0xff] %v185
                %v187 = vld [vmem:[%s173 + $0x180] sm:$0xff]
                %188 = vst [vmem:[%s174 + $0x30] sm:$0xff] %v187
                %v189 = vld [vmem:[%s173 + $0x188] sm:$0xff]
                %190 = vst [vmem:[%s174 + $0x38] sm:$0xff] %v189
                %v191 = vld [vmem:[%s173 + $0x200] sm:$0xff]
                %192 = vst [vmem:[%s174 + $0x40] sm:$0xff] %v191
                %v193 = vld [vmem:[%s173 + $0x208] sm:$0xff]
                %194 = vst [vmem:[%s174 + $0x48] sm:$0xff] %v193
                %v195 = vld [vmem:[%s173 + $0x280] sm:$0xff]
                %196 = vst [vmem:[%s174 + $0x50] sm:$0xff] %v195
                %v197 = vld [vmem:[%s173 + $0x288] sm:$0xff]
                %198 = vst [vmem:[%s174 + $0x58] sm:$0xff] %v197
                %v199 = vld [vmem:[%s173 + $0x300] sm:$0xff]
                %200 = vst [vmem:[%s174 + $0x60] sm:$0xff] %v199
                %v201 = vld [vmem:[%s173 + $0x308] sm:$0xff]
                %202 = vst [vmem:[%s174 + $0x68] sm:$0xff] %v201
                %v203 = vld [vmem:[%s173 + $0x380] sm:$0xff]
                %204 = vst [vmem:[%s174 + $0x70] sm:$0xff] %v203
                %v205 = vld [vmem:[%s173 + $0x388] sm:$0xff]
                %206 = vst [vmem:[%s174 + $0x78] sm:$0xff] %v205
                %v207 = vld [vmem:[%s173 + $0x400] sm:$0xff]
                %208 = vst [vmem:[%s174 + $0x80] sm:$0xff] %v207
                %v209 = vld [vmem:[%s173 + $0x408] sm:$0xff]
                %210 = vst [vmem:[%s174 + $0x88] sm:$0xff] %v209
                %v211 = vld [vmem:[%s173 + $0x480] sm:$0xff]
                %212 = vst [vmem:[%s174 + $0x90] sm:$0xff] %v211
                %v213 = vld [vmem:[%s173 + $0x488] sm:$0xff]
                %214 = vst [vmem:[%s174 + $0x98] sm:$0xff] %v213
                %v215 = vld [vmem:[%s173 + $0x500] sm:$0xff]
                %216 = vst [vmem:[%s174 + $0xa0] sm:$0xff] %v215
                %v217 = vld [vmem:[%s173 + $0x508] sm:$0xff]
                %218 = vst [vmem:[%s174 + $0xa8] sm:$0xff] %v217
                %v219 = vld [vmem:[%s173 + $0x580] sm:$0xff]
                %220 = vst [vmem:[%s174 + $0xb0] sm:$0xff] %v219
                %v221 = vld [vmem:[%s173 + $0x588] sm:$0xff]
                %222 = vst [vmem:[%s174 + $0xb8] sm:$0xff] %v221
                %v223 = vld [vmem:[%s173 + $0x600] sm:$0xff]
                %224 = vst [vmem:[%s174 + $0xc0] sm:$0xff] %v223
                %v225 = vld [vmem:[%s173 + $0x608] sm:$0xff]
                %226 = vst [vmem:[%s174 + $0xc8] sm:$0xff] %v225
                %v227 = vld [vmem:[%s173 + $0x680] sm:$0xff]
                %228 = vst [vmem:[%s174 + $0xd0] sm:$0xff] %v227
                %v229 = vld [vmem:[%s173 + $0x688] sm:$0xff]
                %230 = vst [vmem:[%s174 + $0xd8] sm:$0xff] %v229
                %v231 = vld [vmem:[%s173 + $0x700] sm:$0xff]
                %232 = vst [vmem:[%s174 + $0xe0] sm:$0xff] %v231
                %v233 = vld [vmem:[%s173 + $0x708] sm:$0xff]
                %234 = vst [vmem:[%s174 + $0xe8] sm:$0xff] %v233
                %v235 = vld [vmem:[%s173 + $0x780] sm:$0xff]
                %236 = vst [vmem:[%s174 + $0xf0] sm:$0xff] %v235
                %v237 = vld [vmem:[%s173 + $0x788] sm:$0xff]
                %238 = vst [vmem:[%s174 + $0xf8] sm:$0xff] %v237
                %v239 = vld [vmem:[%s173 + $0x800] sm:$0xff]
                %240 = vst [vmem:[%s174 + $0x100] sm:$0xff] %v239
                %v241 = vld [vmem:[%s173 + $0x808] sm:$0xff]
                %242 = vst [vmem:[%s174 + $0x108] sm:$0xff] %v241
                %v243 = vld [vmem:[%s173 + $0x880] sm:$0xff]
                %244 = vst [vmem:[%s174 + $0x110] sm:$0xff] %v243
                %v245 = vld [vmem:[%s173 + $0x888] sm:$0xff]
                %246 = vst [vmem:[%s174 + $0x118] sm:$0xff] %v245
                %v247 = vld [vmem:[%s173 + $0x900] sm:$0xff]
                %248 = vst [vmem:[%s174 + $0x120] sm:$0xff] %v247
                %v249 = vld [vmem:[%s173 + $0x908] sm:$0xff]
                %250 = vst [vmem:[%s174 + $0x128] sm:$0xff] %v249
                %v251 = vld [vmem:[%s173 + $0x980] sm:$0xff]
                %252 = vst [vmem:[%s174 + $0x130] sm:$0xff] %v251
                %v253 = vld [vmem:[%s173 + $0x988] sm:$0xff]
                %254 = vst [vmem:[%s174 + $0x138] sm:$0xff] %v253
                %v255 = vld [vmem:[%s173 + $0xa00] sm:$0xff]
                %256 = vst [vmem:[%s174 + $0x140] sm:$0xff] %v255
                %v257 = vld [vmem:[%s173 + $0xa08] sm:$0xff]
                %258 = vst [vmem:[%s174 + $0x148] sm:$0xff] %v257
                %v259 = vld [vmem:[%s173 + $0xa80] sm:$0xff]
                %260 = vst [vmem:[%s174 + $0x150] sm:$0xff] %v259
                %v261 = vld [vmem:[%s173 + $0xa88] sm:$0xff]
                %262 = vst [vmem:[%s174 + $0x158] sm:$0xff] %v261
                %v263 = vld [vmem:[%s173 + $0xb00] sm:$0xff]
                %264 = vst [vmem:[%s174 + $0x160] sm:$0xff] %v263
                %v265 = vld [vmem:[%s173 + $0xb08] sm:$0xff]
                %266 = vst [vmem:[%s174 + $0x168] sm:$0xff] %v265
                %v267 = vld [vmem:[%s173 + $0xb80] sm:$0xff]
                %268 = vst [vmem:[%s174 + $0x170] sm:$0xff] %v267
                %v269 = vld [vmem:[%s173 + $0xb88] sm:$0xff]
                %270 = vst [vmem:[%s174 + $0x178] sm:$0xff] %v269
                %v271 = vld [vmem:[%s173 + $0xc00] sm:$0xff]
                %272 = vst [vmem:[%s174 + $0x180] sm:$0xff] %v271
                %v273 = vld [vmem:[%s173 + $0xc08] sm:$0xff]
                %274 = vst [vmem:[%s174 + $0x188] sm:$0xff] %v273
                %v275 = vld [vmem:[%s173 + $0xc80] sm:$0xff]
                %276 = vst [vmem:[%s174 + $0x190] sm:$0xff] %v275
                %v277 = vld [vmem:[%s173 + $0xc88] sm:$0xff]
                %278 = vst [vmem:[%s174 + $0x198] sm:$0xff] %v277
                %v279 = vld [vmem:[%s173 + $0xd00] sm:$0xff]
                %280 = vst [vmem:[%s174 + $0x1a0] sm:$0xff] %v279
                %v281 = vld [vmem:[%s173 + $0xd08] sm:$0xff]
                %282 = vst [vmem:[%s174 + $0x1a8] sm:$0xff] %v281
                %v283 = vld [vmem:[%s173 + $0xd80] sm:$0xff]
                %284 = vst [vmem:[%s174 + $0x1b0] sm:$0xff] %v283
                %v285 = vld [vmem:[%s173 + $0xd88] sm:$0xff]
                %286 = vst [vmem:[%s174 + $0x1b8] sm:$0xff] %v285
                %v287 = vld [vmem:[%s173 + $0xe00] sm:$0xff]
                %288 = vst [vmem:[%s174 + $0x1c0] sm:$0xff] %v287
                %v289 = vld [vmem:[%s173 + $0xe08] sm:$0xff]
                %290 = vst [vmem:[%s174 + $0x1c8] sm:$0xff] %v289
                %v291 = vld [vmem:[%s173 + $0xe80] sm:$0xff]
                %292 = vst [vmem:[%s174 + $0x1d0] sm:$0xff] %v291
                %v293 = vld [vmem:[%s173 + $0xe88] sm:$0xff]
                %294 = vst [vmem:[%s174 + $0x1d8] sm:$0xff] %v293
                %v295 = vld [vmem:[%s173 + $0xf00] sm:$0xff]
                %296 = vst [vmem:[%s174 + $0x1e0] sm:$0xff] %v295
                %v297 = vld [vmem:[%s173 + $0xf08] sm:$0xff]
                %298 = vst [vmem:[%s174 + $0x1e8] sm:$0xff] %v297
                %v299 = vld [vmem:[%s173 + $0xf80] sm:$0xff]
                %300 = vst [vmem:[%s174 + $0x1f0] sm:$0xff] %v299
                %v301 = vld [vmem:[%s173 + $0xf88] sm:$0xff]
                %302 = vst [vmem:[%s174 + $0x1f8] sm:$0xff] %v301
                %v303 = vld [vmem:[%s173 + $0x1000] sm:$0xff]
                %304 = vst [vmem:[%s174 + $0x200] sm:$0xff] %v303
                %v305 = vld [vmem:[%s173 + $0x1008] sm:$0xff]
                %306 = vst [vmem:[%s174 + $0x208] sm:$0xff] %v305
                %v307 = vld [vmem:[%s173 + $0x1080] sm:$0xff]
                %308 = vst [vmem:[%s174 + $0x210] sm:$0xff] %v307
                %v309 = vld [vmem:[%s173 + $0x1088] sm:$0xff]
                %310 = vst [vmem:[%s174 + $0x218] sm:$0xff] %v309
                %v311 = vld [vmem:[%s173 + $0x1100] sm:$0xff]
                %312 = vst [vmem:[%s174 + $0x220] sm:$0xff] %v311
                %v313 = vld [vmem:[%s173 + $0x1108] sm:$0xff]
                %314 = vst [vmem:[%s174 + $0x228] sm:$0xff] %v313
                %v315 = vld [vmem:[%s173 + $0x1180] sm:$0xff]
                %316 = vst [vmem:[%s174 + $0x230] sm:$0xff] %v315
                %v317 = vld [vmem:[%s173 + $0x1188] sm:$0xff]
                %318 = vst [vmem:[%s174 + $0x238] sm:$0xff] %v317
                %v319 = vld [vmem:[%s173 + $0x1200] sm:$0xff]
                %320 = vst [vmem:[%s174 + $0x240] sm:$0xff] %v319
                %v321 = vld [vmem:[%s173 + $0x1208] sm:$0xff]
                %322 = vst [vmem:[%s174 + $0x248] sm:$0xff] %v321
              $region45: #{densenet_forward.6} parent=39 // loop_footer
                %s172 = sadd.s32 1, %s168
              $region46: #{densenet_forward.6} parent=39 // loop_footer_branch
                %167 = sbr.rel target = $region42
              $region47: #{densenet_forward.6} parent=39 // loop_exit
                _
            $region40: #{densenet_forward.6} parent=35 // pred_fallthru
              _
            // Predicated region
            $region48: #{densenet_forward.6} parent=35 // pred_check
              _
            $region49: #{densenet_forward.6} parent=35 // pred_check_branch
              %324 = sbr.rel target = $region51
            $region50: #{densenet_forward.6} parent=35 // pred_region
              _
            $region51: #{densenet_forward.6} parent=35 // pred_fallthru
              _
          $region36: #{densenet_forward.6} parent=31 // pred_fallthru
            _
          %325 = vnop
        $region32: #{densenet_forward.6} parent=27 // pred_fallthru
          _
      $region28: #{densenet_forward.6} parent=5 // pred_fallthru
        _
      %p326 = scmp.le.s32.totalorder 1, %s10
      %p327 = scmp.lt.s32.totalorder %s10, 9
      %p328 = pnand %p326, %p327
      %p329 = pneg %p328
      // Predicated region
      $region52: #{densenet_forward.6} parent=5 // pred_check
        _
      $region53: #{densenet_forward.6} parent=5 // pred_check_branch
        %331 = sbr.rel (%p328) target = $region55
      $region54: #{densenet_forward.6} parent=5 // pred_region
        %s332 = ssub.s32 %s10, 1
        %s333 = sand.u32 %s23, 1
        %s334 = sand.u32 %s23, 1
        %s335 = smul.addr %s334, 592
        %s336 = scalar_lea.vmem [#allocation2], %s335
        // Predicated region
        $region56: #{densenet_forward.6} parent=54 // pred_check
          %p337 = pneg %p36
        $region57: #{densenet_forward.6} parent=54 // pred_check_branch
          %339 = sbr.rel (%p337) target = $region59
        $region58: #{densenet_forward.6} parent=54 // pred_region
          _
        $region59: #{densenet_forward.6} parent=54 // pred_fallthru
          _
        %s340 = sand.u32 %s23, 1
        %s341 = sand.u32 %s23, 1
        %s342 = smul.addr %s341, 592
        %s343 = scalar_lea.vmem [#allocation2], %s342
        %p344 = pneg %p36
        %p345 = pneg %p33
        %p346 = pneg %p57
        %p347 = pneg %p54
        %p348 = pneg %p78
        %p349 = pneg %p75
        %p350 = pneg %p99
        %p351 = pneg %p96
        %p352 = pneg %p125
        %p353 = pneg %p122
        %s354 = sand.u32 %s112, 1
        %s355 = sand.u32 %s112, 1
        %s356 = smul.addr %s355, 32
        %s357 = scalar_lea.vmem [#allocation3], %s356
        %s358 = smul.u32 4, %s15
        %s359 = smul.u32 4, %s15
        %v361 = vld [vmem:[%s336] sm:$0xff]
        %v362 = vld [vmem:[%s336 + $0x8] sm:$0xff]
        %v363 = vld [vmem:[%s336 + $0x10] sm:$0xff]
        %v364 = vld [vmem:[%s336 + $0x18] sm:$0xff]
        %v365 = vld [vmem:[%s336 + $0x20] sm:$0xff]
        %v366 = vld [vmem:[%s336 + $0x28] sm:$0xff]
        %v367 = vld [vmem:[%s336 + $0x30] sm:$0xff]
        %v368 = vld [vmem:[%s336 + $0x38] sm:$0xff]
        %v369 = vld [vmem:[%s336 + $0x40] sm:$0xff]
        %v370 = vld [vmem:[%s336 + $0x48] sm:$0xff]
        %v371 = vld [vmem:[%s336 + $0x50] sm:$0xff]
        %v372 = vld [vmem:[%s336 + $0x58] sm:$0xff]
        %v373 = vld [vmem:[%s336 + $0x60] sm:$0xff]
        %v374 = vld [vmem:[%s336 + $0x68] sm:$0xff]
        %v375 = vld [vmem:[%s336 + $0x70] sm:$0xff]
        %v376 = vld [vmem:[%s336 + $0x78] sm:$0xff]
        %v377 = vld [vmem:[%s336 + $0x80] sm:$0xff]
        %v378 = vld [vmem:[%s336 + $0x88] sm:$0xff]
        %v379 = vld [vmem:[%s336 + $0x90] sm:$0xff]
        %v380 = vld [vmem:[%s336 + $0x98] sm:$0xff]
        %v381 = vld [vmem:[%s336 + $0xa0] sm:$0xff]
        %v382 = vld [vmem:[%s336 + $0xa8] sm:$0xff]
        %v383 = vld [vmem:[%s336 + $0xb0] sm:$0xff]
        %v384 = vld [vmem:[%s336 + $0xb8] sm:$0xff]
        %v385 = vld [vmem:[%s336 + $0xc0] sm:$0xff]
        %v386 = vld [vmem:[%s336 + $0xc8] sm:$0xff]
        %v387 = vld [vmem:[%s336 + $0xd0] sm:$0xff]
        %v388 = vld [vmem:[%s336 + $0xd8] sm:$0xff]
        %v389 = vld [vmem:[%s336 + $0xe0] sm:$0xff]
        %v390 = vld [vmem:[%s336 + $0xe8] sm:$0xff]
        %v391 = vld [vmem:[%s336 + $0xf0] sm:$0xff]
        %v392 = vld [vmem:[%s336 + $0xf8] sm:$0xff]
        %v393 = vld [vmem:[%s336 + $0x100] sm:$0xff]
        %v394 = vld [vmem:[%s336 + $0x108] sm:$0xff]
        %v395 = vld [vmem:[%s336 + $0x110] sm:$0xff]
        %v396 = vld [vmem:[%s336 + $0x118] sm:$0xff]
        %v397 = vld [vmem:[%s336 + $0x120] sm:$0xff]
        %v398 = vld [vmem:[%s336 + $0x128] sm:$0xff]
        %v399 = vld [vmem:[%s336 + $0x130] sm:$0xff]
        %v400 = vld [vmem:[%s336 + $0x138] sm:$0xff]
        %v401 = vld [vmem:[%s336 + $0x140] sm:$0xff]
        %v402 = vld [vmem:[%s336 + $0x148] sm:$0xff]
        %v403 = vld [vmem:[%s336 + $0x150] sm:$0xff]
        %v404 = vld [vmem:[%s336 + $0x158] sm:$0xff]
        %v405 = vld [vmem:[%s336 + $0x160] sm:$0xff]
        %v406 = vld [vmem:[%s336 + $0x168] sm:$0xff]
        %v407 = vld [vmem:[%s336 + $0x170] sm:$0xff]
        %v408 = vld [vmem:[%s336 + $0x178] sm:$0xff]
        %v409 = vld [vmem:[%s336 + $0x180] sm:$0xff]
        %v410 = vld [vmem:[%s336 + $0x188] sm:$0xff]
        %v411 = vld [vmem:[%s336 + $0x190] sm:$0xff]
        %v412 = vld [vmem:[%s336 + $0x198] sm:$0xff]
        %v413 = vld [vmem:[%s336 + $0x1a0] sm:$0xff]
        %v414 = vld [vmem:[%s336 + $0x1a8] sm:$0xff]
        %v415 = vld [vmem:[%s336 + $0x1b0] sm:$0xff]
        %v416 = vld [vmem:[%s336 + $0x1b8] sm:$0xff]
        %v417 = vld [vmem:[%s336 + $0x1c0] sm:$0xff]
        %v418 = vld [vmem:[%s336 + $0x1c8] sm:$0xff]
        %v419 = vld [vmem:[%s336 + $0x1d0] sm:$0xff]
        %v420 = vld [vmem:[%s336 + $0x1d8] sm:$0xff]
        %v421 = vld [vmem:[%s336 + $0x1e0] sm:$0xff]
        %v422 = vld [vmem:[%s336 + $0x1e8] sm:$0xff]
        %v423 = vld [vmem:[%s336 + $0x1f0] sm:$0xff]
        %v424 = vld [vmem:[%s336 + $0x1f8] sm:$0xff]
        %v425 = vld [vmem:[%s336 + $0x200] sm:$0xff]
        %v426 = vld [vmem:[%s336 + $0x208] sm:$0xff]
        %v427 = vld [vmem:[%s336 + $0x210] sm:$0xff]
        %v428 = vld [vmem:[%s336 + $0x218] sm:$0xff]
        %v429 = vld [vmem:[%s336 + $0x220] sm:$0xff]
        %v430 = vld [vmem:[%s336 + $0x228] sm:$0xff]
        %v431 = vld [vmem:[%s336 + $0x230] sm:$0xff]
        %v432 = vld [vmem:[%s336 + $0x238] sm:$0xff]
        %v433 = vld [vmem:[%s336 + $0x240] sm:$0x77]
        %v434 = vld [vmem:[%s336 + $0x248] sm:$0x77]
        %v435 = vld [vmem:[%s1] sm:$0xff]
        %v436 = vld [vmem:[%s1 + $0x8] sm:$0xf]
        %v437 = vld [vmem:[%s1 + $0xc] sm:$0xff]
        %v438 = vld [vmem:[%s1 + $0x14] sm:$0xf]
        %v443 = vunpack.c.l.b16 %v435
        %v444 = vunpack.c.h.b16 %v435
        %v445 = vunpack.c.l.b16 %v436
        %v446 = vunpack.c.l.b16 %v437
        %v447 = vunpack.c.h.b16 %v437
        %v448 = vunpack.c.l.b16 %v438
        %v449 = vpack.c.b16 %v446, %v443
        %v450 = vpack.c.b16 %v447, %v444
        %v451 = vpack.c.b16 %v448, %v445
        %v528 = vunpack.c.l.b16 %v361
        %v529 = vunpack.c.h.b16 %v361
        %v530 = vunpack.c.l.b16 %v362
        %v531 = vunpack.c.h.b16 %v362
        %v532 = vunpack.c.l.b16 %v363
        %v533 = vunpack.c.h.b16 %v363
        %v534 = vunpack.c.l.b16 %v364
        %v535 = vunpack.c.h.b16 %v364
        %v536 = vunpack.c.l.b16 %v365
        %v537 = vunpack.c.h.b16 %v365
        %v538 = vunpack.c.l.b16 %v366
        %v539 = vunpack.c.h.b16 %v366
        %v540 = vunpack.c.l.b16 %v367
        %v541 = vunpack.c.h.b16 %v367
        %v542 = vunpack.c.l.b16 %v368
        %v543 = vunpack.c.h.b16 %v368
        %v544 = vunpack.c.l.b16 %v369
        %v545 = vunpack.c.h.b16 %v369
        %v546 = vunpack.c.l.b16 %v370
        %v547 = vunpack.c.h.b16 %v370
        %v548 = vunpack.c.l.b16 %v371
        %v549 = vunpack.c.h.b16 %v371
        %v550 = vunpack.c.l.b16 %v372
        %v551 = vunpack.c.h.b16 %v372
        %v552 = vunpack.c.l.b16 %v373
        %v553 = vunpack.c.h.b16 %v373
        %v554 = vunpack.c.l.b16 %v374
        %v555 = vunpack.c.h.b16 %v374
        %v556 = vunpack.c.l.b16 %v375
        %v557 = vunpack.c.h.b16 %v375
        %v558 = vunpack.c.l.b16 %v376
        %v559 = vunpack.c.h.b16 %v376
        %v560 = vunpack.c.l.b16 %v377
        %v561 = vunpack.c.h.b16 %v377
        %v562 = vunpack.c.l.b16 %v378
        %v563 = vunpack.c.h.b16 %v378
        %v564 = vunpack.c.l.b16 %v379
        %v565 = vunpack.c.h.b16 %v379
        %v566 = vunpack.c.l.b16 %v380
        %v567 = vunpack.c.h.b16 %v380
        %v568 = vunpack.c.l.b16 %v381
        %v569 = vunpack.c.h.b16 %v381
        %v570 = vunpack.c.l.b16 %v382
        %v571 = vunpack.c.h.b16 %v382
        %v572 = vunpack.c.l.b16 %v383
        %v573 = vunpack.c.h.b16 %v383
        %v574 = vunpack.c.l.b16 %v384
        %v575 = vunpack.c.h.b16 %v384
        %v576 = vunpack.c.l.b16 %v385
        %v577 = vunpack.c.h.b16 %v385
        %v578 = vunpack.c.l.b16 %v386
        %v579 = vunpack.c.h.b16 %v386
        %v580 = vunpack.c.l.b16 %v387
        %v581 = vunpack.c.h.b16 %v387
        %v582 = vunpack.c.l.b16 %v388
        %v583 = vunpack.c.h.b16 %v388
        %v584 = vunpack.c.l.b16 %v389
        %v585 = vunpack.c.h.b16 %v389
        %v586 = vunpack.c.l.b16 %v390
        %v587 = vunpack.c.h.b16 %v390
        %v588 = vunpack.c.l.b16 %v391
        %v589 = vunpack.c.h.b16 %v391
        %v590 = vunpack.c.l.b16 %v392
        %v591 = vunpack.c.h.b16 %v392
        %v592 = vunpack.c.l.b16 %v393
        %v593 = vunpack.c.h.b16 %v393
        %v594 = vunpack.c.l.b16 %v394
        %v595 = vunpack.c.h.b16 %v394
        %v596 = vunpack.c.l.b16 %v395
        %v597 = vunpack.c.h.b16 %v395
        %v598 = vunpack.c.l.b16 %v396
        %v599 = vunpack.c.h.b16 %v396
        %v600 = vunpack.c.l.b16 %v397
        %v601 = vunpack.c.h.b16 %v397
        %v602 = vunpack.c.l.b16 %v398
        %v603 = vunpack.c.h.b16 %v398
        %v604 = vunpack.c.l.b16 %v399
        %v605 = vunpack.c.h.b16 %v399
        %v606 = vunpack.c.l.b16 %v400
        %v607 = vunpack.c.h.b16 %v400
        %v608 = vunpack.c.l.b16 %v401
        %v609 = vunpack.c.h.b16 %v401
        %v610 = vunpack.c.l.b16 %v402
        %v611 = vunpack.c.h.b16 %v402
        %v612 = vunpack.c.l.b16 %v403
        %v613 = vunpack.c.h.b16 %v403
        %v614 = vunpack.c.l.b16 %v404
        %v615 = vunpack.c.h.b16 %v404
        %v616 = vunpack.c.l.b16 %v405
        %v617 = vunpack.c.h.b16 %v405
        %v618 = vunpack.c.l.b16 %v406
        %v619 = vunpack.c.h.b16 %v406
        %v620 = vunpack.c.l.b16 %v407
        %v621 = vunpack.c.h.b16 %v407
        %v622 = vunpack.c.l.b16 %v408
        %v623 = vunpack.c.h.b16 %v408
        %v624 = vunpack.c.l.b16 %v409
        %v625 = vunpack.c.h.b16 %v409
        %v626 = vunpack.c.l.b16 %v410
        %v627 = vunpack.c.h.b16 %v410
        %v628 = vunpack.c.l.b16 %v411
        %v629 = vunpack.c.h.b16 %v411
        %v630 = vunpack.c.l.b16 %v412
        %v631 = vunpack.c.h.b16 %v412
        %v632 = vunpack.c.l.b16 %v413
        %v633 = vunpack.c.h.b16 %v413
        %v634 = vunpack.c.l.b16 %v414
        %v635 = vunpack.c.h.b16 %v414
        %v636 = vunpack.c.l.b16 %v415
        %v637 = vunpack.c.h.b16 %v415
        %v638 = vunpack.c.l.b16 %v416
        %v639 = vunpack.c.h.b16 %v416
        %v640 = vunpack.c.l.b16 %v417
        %v641 = vunpack.c.h.b16 %v417
        %v642 = vunpack.c.l.b16 %v418
        %v643 = vunpack.c.h.b16 %v418
        %v644 = vunpack.c.l.b16 %v419
        %v645 = vunpack.c.h.b16 %v419
        %v646 = vunpack.c.l.b16 %v420
        %v647 = vunpack.c.h.b16 %v420
        %v648 = vunpack.c.l.b16 %v421
        %v649 = vunpack.c.h.b16 %v421
        %v650 = vunpack.c.l.b16 %v422
        %v651 = vunpack.c.h.b16 %v422
        %v652 = vunpack.c.l.b16 %v423
        %v653 = vunpack.c.h.b16 %v423
        %v654 = vunpack.c.l.b16 %v424
        %v655 = vunpack.c.h.b16 %v424
        %v656 = vunpack.c.l.b16 %v425
        %v657 = vunpack.c.h.b16 %v425
        %v658 = vunpack.c.l.b16 %v426
        %v659 = vunpack.c.h.b16 %v426
        %v660 = vunpack.c.l.b16 %v427
        %v661 = vunpack.c.h.b16 %v427
        %v662 = vunpack.c.l.b16 %v428
        %v663 = vunpack.c.h.b16 %v428
        %v664 = vunpack.c.l.b16 %v429
        %v665 = vunpack.c.h.b16 %v429
        %v666 = vunpack.c.l.b16 %v430
        %v667 = vunpack.c.h.b16 %v430
        %v668 = vunpack.c.l.b16 %v431
        %v669 = vunpack.c.h.b16 %v431
        %v670 = vunpack.c.l.b16 %v432
        %v671 = vunpack.c.h.b16 %v432
        %v672 = vunpack.c.l.b16 %v433
        %v673 = vunpack.c.h.b16 %v433
        %v674 = vunpack.c.l.b16 %v434
        %v675 = vunpack.c.h.b16 %v434
        %v676 = vpack.c.b16 %v532, %v528
        %v677 = vpack.c.b16 %v533, %v529
        %v678 = vpack.c.b16 %v534, %v530
        %v679 = vpack.c.b16 %v535, %v531
        %v680 = vpack.c.b16 %v540, %v536
        %v681 = vpack.c.b16 %v541, %v537
        %v682 = vpack.c.b16 %v542, %v538
        %v683 = vpack.c.b16 %v543, %v539
        %v684 = vpack.c.b16 %v548, %v544
        %v685 = vpack.c.b16 %v549, %v545
        %v686 = vpack.c.b16 %v550, %v546
        %v687 = vpack.c.b16 %v551, %v547
        %v688 = vpack.c.b16 %v556, %v552
        %v689 = vpack.c.b16 %v557, %v553
        %v690 = vpack.c.b16 %v558, %v554
        %v691 = vpack.c.b16 %v559, %v555
        %v692 = vpack.c.b16 %v564, %v560
        %v693 = vpack.c.b16 %v565, %v561
        %v694 = vpack.c.b16 %v566, %v562
        %v695 = vpack.c.b16 %v567, %v563
        %v696 = vpack.c.b16 %v572, %v568
        %v697 = vpack.c.b16 %v573, %v569
        %v698 = vpack.c.b16 %v574, %v570
        %v699 = vpack.c.b16 %v575, %v571
        %v700 = vpack.c.b16 %v580, %v576
        %v701 = vpack.c.b16 %v581, %v577
        %v702 = vpack.c.b16 %v582, %v578
        %v703 = vpack.c.b16 %v583, %v579
        %v704 = vpack.c.b16 %v588, %v584
        %v705 = vpack.c.b16 %v589, %v585
        %v706 = vpack.c.b16 %v590, %v586
        %v707 = vpack.c.b16 %v591, %v587
        %v708 = vpack.c.b16 %v596, %v592
        %v709 = vpack.c.b16 %v597, %v593
        %v710 = vpack.c.b16 %v598, %v594
        %v711 = vpack.c.b16 %v599, %v595
        %v712 = vpack.c.b16 %v604, %v600
        %v713 = vpack.c.b16 %v605, %v601
        %v714 = vpack.c.b16 %v606, %v602
        %v715 = vpack.c.b16 %v607, %v603
        %v716 = vpack.c.b16 %v612, %v608
        %v717 = vpack.c.b16 %v613, %v609
        %v718 = vpack.c.b16 %v614, %v610
        %v719 = vpack.c.b16 %v615, %v611
        %v720 = vpack.c.b16 %v620, %v616
        %v721 = vpack.c.b16 %v621, %v617
        %v722 = vpack.c.b16 %v622, %v618
        %v723 = vpack.c.b16 %v623, %v619
        %v724 = vpack.c.b16 %v628, %v624
        %v725 = vpack.c.b16 %v629, %v625
        %v726 = vpack.c.b16 %v630, %v626
        %v727 = vpack.c.b16 %v631, %v627
        %v728 = vpack.c.b16 %v636, %v632
        %v729 = vpack.c.b16 %v637, %v633
        %v730 = vpack.c.b16 %v638, %v634
        %v731 = vpack.c.b16 %v639, %v635
        %v732 = vpack.c.b16 %v644, %v640
        %v733 = vpack.c.b16 %v645, %v641
        %v734 = vpack.c.b16 %v646, %v642
        %v735 = vpack.c.b16 %v647, %v643
        %v736 = vpack.c.b16 %v652, %v648
        %v737 = vpack.c.b16 %v653, %v649
        %v738 = vpack.c.b16 %v654, %v650
        %v739 = vpack.c.b16 %v655, %v651
        %v740 = vpack.c.b16 %v660, %v656
        %v741 = vpack.c.b16 %v661, %v657
        %v742 = vpack.c.b16 %v662, %v658
        %v743 = vpack.c.b16 %v663, %v659
        %v744 = vpack.c.b16 %v668, %v664
        %v745 = vpack.c.b16 %v669, %v665
        %v746 = vpack.c.b16 %v670, %v666
        %v747 = vpack.c.b16 %v671, %v667
        %v748 = vpack.c.b16 %v672, %v672
        %v749 = vpack.c.b16 %v673, %v673
        %v750 = vpack.c.b16 %v674, %v674
        %v751 = vpack.c.b16 %v675, %v675
        %vm824 = vcmask 310272
        %v826 = vsel %vm824, %v451, 0
        %vm828 = vcmask 1042432
        %v830 = vsel %vm828, %v748, 0
        %v833 = vsel %vm828, %v749, 0
        %v836 = vsel %vm828, %v750, 0
        %v839 = vsel %vm828, %v751, 0
        %841 = vmatpush.bf16.msra.mxu0 %v704
        %842 = vmatpush.bf16.msra.mxu0 %v700
        %843 = vmatpush.bf16.msra.mxu0 %v696
        %844 = vmatpush.bf16.msra.mxu0 %v692
        %845 = vmatpush.bf16.msra.mxu0 %v688
        %846 = vmatpush.bf16.msra.mxu0 %v684
        %847 = vmatpush.bf16.msra.mxu0 %v680
        %848 = vmatpush.bf16.msra.mxu0 %v676
        %849 = vmatmul.bf16.gmra.mxu0 %v449
        %v850 = vpop.f32.mrf.mxu0
        %v851 = vadd.f32 0.0, %v850
        %v852 = vpop.f32.mrf.mxu0
        %v853 = vadd.f32 0.0, %v852
        %854 = vdwg.mxu0
        %855 = vmatpush.bf16.msra.mxu0 %v736
        %856 = vmatpush.bf16.msra.mxu0 %v732
        %857 = vmatpush.bf16.msra.mxu0 %v728
        %858 = vmatpush.bf16.msra.mxu0 %v724
        %859 = vmatpush.bf16.msra.mxu0 %v720
        %860 = vmatpush.bf16.msra.mxu0 %v716
        %861 = vmatpush.bf16.msra.mxu0 %v712
        %862 = vmatpush.bf16.msra.mxu0 %v708
        %863 = vmatmul.bf16.gmra.mxu0 %v450
        %v864 = vpop.f32.mrf.mxu0
        %v865 = vadd.f32 %v851, %v864
        %v866 = vpop.f32.mrf.mxu0
        %v867 = vadd.f32 %v853, %v866
        %868 = vdwg.mxu0
        %869 = vmatpush.bf16.msra.mxu0 0
        %870 = vmatpush.bf16.msra.mxu0 0
        %871 = vmatpush.bf16.msra.mxu0 0
        %872 = vmatpush.bf16.msra.mxu0 0
        %873 = vmatpush.bf16.msra.mxu0 0
        %874 = vmatpush.bf16.msra.mxu0 %v830
        %875 = vmatpush.bf16.msra.mxu0 %v744
        %876 = vmatpush.bf16.msra.mxu0 %v740
        %877 = vmatmul.bf16.gmra.mxu0 %v826
        %v878 = vpop.f32.mrf.mxu0
        %v879 = vadd.f32 %v865, %v878
        %v880 = vpop.f32.mrf.mxu0
        %v881 = vadd.f32 %v867, %v880
        %882 = vdwg.mxu0
        %883 = vmatpush.bf16.msra.mxu0 %v705
        %884 = vmatpush.bf16.msra.mxu0 %v701
        %885 = vmatpush.bf16.msra.mxu0 %v697
        %886 = vmatpush.bf16.msra.mxu0 %v693
        %887 = vmatpush.bf16.msra.mxu0 %v689
        %888 = vmatpush.bf16.msra.mxu0 %v685
        %889 = vmatpush.bf16.msra.mxu0 %v681
        %890 = vmatpush.bf16.msra.mxu0 %v677
        %891 = vmatmul.bf16.gmra.mxu0 %v449
        %v892 = vpop.f32.mrf.mxu0
        %v893 = vadd.f32 0.0, %v892
        %v894 = vpop.f32.mrf.mxu0
        %v895 = vadd.f32 0.0, %v894
        %896 = vdwg.mxu0
        %897 = vmatpush.bf16.msra.mxu0 %v737
        %898 = vmatpush.bf16.msra.mxu0 %v733
        %899 = vmatpush.bf16.msra.mxu0 %v729
        %900 = vmatpush.bf16.msra.mxu0 %v725
        %901 = vmatpush.bf16.msra.mxu0 %v721
        %902 = vmatpush.bf16.msra.mxu0 %v717
        %903 = vmatpush.bf16.msra.mxu0 %v713
        %904 = vmatpush.bf16.msra.mxu0 %v709
        %905 = vmatmul.bf16.gmra.mxu0 %v450
        %v906 = vpop.f32.mrf.mxu0
        %v907 = vadd.f32 %v893, %v906
        %v908 = vpop.f32.mrf.mxu0
        %v909 = vadd.f32 %v895, %v908
        %910 = vdwg.mxu0
        %911 = vmatpush.bf16.msra.mxu0 0
        %912 = vmatpush.bf16.msra.mxu0 0
        %913 = vmatpush.bf16.msra.mxu0 0
        %914 = vmatpush.bf16.msra.mxu0 0
        %915 = vmatpush.bf16.msra.mxu0 0
        %916 = vmatpush.bf16.msra.mxu0 %v833
        %917 = vmatpush.bf16.msra.mxu0 %v745
        %918 = vmatpush.bf16.msra.mxu0 %v741
        %919 = vmatmul.bf16.gmra.mxu0 %v826
        %v920 = vpop.f32.mrf.mxu0
        %v921 = vadd.f32 %v907, %v920
        %v922 = vpop.f32.mrf.mxu0
        %v923 = vadd.f32 %v909, %v922
        %924 = vdwg.mxu0
        %925 = vmatpush.bf16.msra.mxu0 %v706
        %926 = vmatpush.bf16.msra.mxu0 %v702
        %927 = vmatpush.bf16.msra.mxu0 %v698
        %928 = vmatpush.bf16.msra.mxu0 %v694
        %929 = vmatpush.bf16.msra.mxu0 %v690
        %930 = vmatpush.bf16.msra.mxu0 %v686
        %931 = vmatpush.bf16.msra.mxu0 %v682
        %932 = vmatpush.bf16.msra.mxu0 %v678
        %933 = vmatmul.bf16.gmra.mxu0 %v449
        %v934 = vpop.f32.mrf.mxu0
        %v935 = vadd.f32 0.0, %v934
        %v936 = vpop.f32.mrf.mxu0
        %v937 = vadd.f32 0.0, %v936
        %938 = vdwg.mxu0
        %939 = vmatpush.bf16.msra.mxu0 %v738
        %940 = vmatpush.bf16.msra.mxu0 %v734
        %941 = vmatpush.bf16.msra.mxu0 %v730
        %942 = vmatpush.bf16.msra.mxu0 %v726
        %943 = vmatpush.bf16.msra.mxu0 %v722
        %944 = vmatpush.bf16.msra.mxu0 %v718
        %945 = vmatpush.bf16.msra.mxu0 %v714
        %946 = vmatpush.bf16.msra.mxu0 %v710
        %947 = vmatmul.bf16.gmra.mxu0 %v450
        %v948 = vpop.f32.mrf.mxu0
        %v949 = vadd.f32 %v935, %v948
        %v950 = vpop.f32.mrf.mxu0
        %v951 = vadd.f32 %v937, %v950
        %952 = vdwg.mxu0
        %953 = vmatpush.bf16.msra.mxu0 0
        %954 = vmatpush.bf16.msra.mxu0 0
        %955 = vmatpush.bf16.msra.mxu0 0
        %956 = vmatpush.bf16.msra.mxu0 0
        %957 = vmatpush.bf16.msra.mxu0 0
        %958 = vmatpush.bf16.msra.mxu0 %v836
        %959 = vmatpush.bf16.msra.mxu0 %v746
        %960 = vmatpush.bf16.msra.mxu0 %v742
        %961 = vmatmul.bf16.gmra.mxu0 %v826
        %v962 = vpop.f32.mrf.mxu0
        %v963 = vadd.f32 %v949, %v962
        %v964 = vpop.f32.mrf.mxu0
        %v965 = vadd.f32 %v951, %v964
        %966 = vdwg.mxu0
        %967 = vmatpush.bf16.msra.mxu0 %v707
        %968 = vmatpush.bf16.msra.mxu0 %v703
        %969 = vmatpush.bf16.msra.mxu0 %v699
        %970 = vmatpush.bf16.msra.mxu0 %v695
        %971 = vmatpush.bf16.msra.mxu0 %v691
        %972 = vmatpush.bf16.msra.mxu0 %v687
        %973 = vmatpush.bf16.msra.mxu0 %v683
        %974 = vmatpush.bf16.msra.mxu0 %v679
        %975 = vmatmul.bf16.gmra.mxu0 %v449
        %v976 = vpop.f32.mrf.mxu0
        %v977 = vadd.f32 0.0, %v976
        %v978 = vpop.f32.mrf.mxu0
        %v979 = vadd.f32 0.0, %v978
        %980 = vdwg.mxu0
        %981 = vmatpush.bf16.msra.mxu0 %v739
        %982 = vmatpush.bf16.msra.mxu0 %v735
        %983 = vmatpush.bf16.msra.mxu0 %v731
        %984 = vmatpush.bf16.msra.mxu0 %v727
        %985 = vmatpush.bf16.msra.mxu0 %v723
        %986 = vmatpush.bf16.msra.mxu0 %v719
        %987 = vmatpush.bf16.msra.mxu0 %v715
        %988 = vmatpush.bf16.msra.mxu0 %v711
        %989 = vmatmul.bf16.gmra.mxu0 %v450
        %v990 = vpop.f32.mrf.mxu0
        %v991 = vadd.f32 %v977, %v990
        %v992 = vpop.f32.mrf.mxu0
        %v993 = vadd.f32 %v979, %v992
        %994 = vdwg.mxu0
        %995 = vmatpush.bf16.msra.mxu0 0
        %996 = vmatpush.bf16.msra.mxu0 0
        %997 = vmatpush.bf16.msra.mxu0 0
        %998 = vmatpush.bf16.msra.mxu0 0
        %999 = vmatpush.bf16.msra.mxu0 0
        %1000 = vmatpush.bf16.msra.mxu0 %v839
        %1001 = vmatpush.bf16.msra.mxu0 %v747
        %1002 = vmatpush.bf16.msra.mxu0 %v743
        %1003 = vmatmul.bf16.gmra.mxu0 %v826
        %v1004 = vpop.f32.mrf.mxu0
        %v1005 = vadd.f32 %v991, %v1004
        %v1006 = vpop.f32.mrf.mxu0
        %v1007 = vadd.f32 %v993, %v1006
        %1008 = vdwg.mxu0
        %v1009 = vld [vmem:[%s2] sm:$0xff]
        %v1010 = vld [vmem:[%s2 + $0x8] sm:$0xff]
        %1012 = vset.pattern.permute.xlu0 0
        %1013 = vperm.xlu0 %1012, %v1009
        %v1014 = vpop.permute.xlu0 %1013
        %1017 = vset.pattern.permute.xlu0 0
        %1018 = vperm.xlu0 %1017, %v1010
        %v1019 = vpop.permute.xlu0 %1018
        %v1021 = vmul.f32 %v879, %v1014
        %v1022 = vmul.f32 %v921, %v1014
        %v1023 = vmul.f32 %v963, %v1014
        %v1024 = vmul.f32 %v1005, %v1014
        %v1025 = vmul.f32 %v881, %v1019
        %v1026 = vmul.f32 %v923, %v1019
        %v1027 = vmul.f32 %v965, %v1019
        %v1028 = vmul.f32 %v1007, %v1019
        %v1029 = vld [vmem:[%s3] sm:$0xff]
        %v1030 = vld [vmem:[%s3 + $0x8] sm:$0xff]
        %1032 = vset.pattern.permute.xlu0 0
        %1033 = vperm.xlu0 %1032, %v1029
        %v1034 = vpop.permute.xlu0 %1033
        %1037 = vset.pattern.permute.xlu0 0
        %1038 = vperm.xlu0 %1037, %v1030
        %v1039 = vpop.permute.xlu0 %1038
        %v1041 = vadd.f32 %v1021, %v1034
        %v1042 = vadd.f32 %v1022, %v1034
        %v1043 = vadd.f32 %v1023, %v1034
        %v1044 = vadd.f32 %v1024, %v1034
        %v1045 = vadd.f32 %v1025, %v1039
        %v1046 = vadd.f32 %v1026, %v1039
        %v1047 = vadd.f32 %v1027, %v1039
        %v1048 = vadd.f32 %v1028, %v1039
        %v1049 = vmax.f32 %v1041, 0.0
        %v1050 = vmax.f32 %v1042, 0.0
        %v1051 = vmax.f32 %v1043, 0.0
        %v1052 = vmax.f32 %v1044, 0.0
        %v1053 = vmax.f32 %v1045, 0.0
        %v1054 = vmax.f32 %v1046, 0.0
        %v1055 = vmax.f32 %v1047, 0.0
        %v1056 = vmax.f32 %v1048, 0.0
        %v1057 = vpack.c.bf16 %v1050, %v1049
        %v1058 = vpack.c.bf16 %v1052, %v1051
        %v1059 = vpack.c.bf16 %v1054, %v1053
        %v1060 = vpack.c.bf16 %v1056, %v1055
        %1061 = vst [vmem:[%s357] sm:$0xff] %v1057
        %1062 = vst [vmem:[%s357 + $0x8] sm:$0xff] %v1058
        %1063 = vst [vmem:[%s357 + $0x10] sm:$0xff] %v1059
        %1064 = vst [vmem:[%s357 + $0x18] sm:$0xff] %v1060
        %s1065 = sand.u32 %s112, 1
        %s1066 = sand.u32 %s112, 1
        %s1067 = smul.addr %s1066, 32
        %s1068 = scalar_lea.vmem [#allocation3], %s1067
        // Predicated region
        $region60: #{densenet_forward.6} parent=54 // pred_check
          %p1069 = pneg %p122
        $region61: #{densenet_forward.6} parent=54 // pred_check_branch
          %1071 = sbr.rel (%p1069) target = $region63
        $region62: #{densenet_forward.6} parent=54 // pred_region
          %s1072 = smul.u32 4, %s15
          %s1073 = smul.addr %s1072, 4
          %s1074 = scalar_lea.vmem %s4, %s1073
          // Predicated region
          $region64: #{densenet_forward.6} parent=62 // pred_check
            _
          $region65: #{densenet_forward.6} parent=62 // pred_check_branch
            %1076 = sbr.rel (0) target = $region67
          $region66: #{densenet_forward.6} parent=62 // pred_region
            // Predicated region
            $region68: #{densenet_forward.6} parent=66 // pred_check
              _
            $region69: #{densenet_forward.6} parent=66 // pred_check_branch
              %1078 = sbr.rel (0) target = $region71
            $region70: #{densenet_forward.6} parent=66 // pred_region
              loop: start=0, step=1, limit=1
              $region72: #{densenet_forward.6} parent=70 // loop_pre_header
                _
              $region73: #{densenet_forward.6} parent=70 // loop_header
                %s1080 = sphi 0, %s1084
                %p1081 = scmp.ge.s32.totalorder %s1080, 1
                %s1085 = sphi %s1068, %s1068
                %s1086 = sphi %s1074, %s1074
              $region74: #{densenet_forward.6} parent=70 // loop_header_branch
                %1083 = sbr.rel (%p1081) target = $region78
              $region75: #{densenet_forward.6} parent=70 // loop_body
                %v1087 = vld [vmem:[%s1085] sm:$0xff]
                %1088 = vst [vmem:[%s1086] sm:$0xff] %v1087
                %v1089 = vld [vmem:[%s1085 + $0x8] sm:$0xff]
                %1090 = vst [vmem:[%s1086 + $0x8] sm:$0xff] %v1089
                %v1091 = vld [vmem:[%s1085 + $0x10] sm:$0xff]
                %1092 = vst [vmem:[%s1086 + $0x80] sm:$0xff] %v1091
                %v1093 = vld [vmem:[%s1085 + $0x18] sm:$0xff]
                %1094 = vst [vmem:[%s1086 + $0x88] sm:$0xff] %v1093
              $region76: #{densenet_forward.6} parent=70 // loop_footer
                %s1084 = sadd.s32 1, %s1080
              $region77: #{densenet_forward.6} parent=70 // loop_footer_branch
                %1079 = sbr.rel target = $region73
              $region78: #{densenet_forward.6} parent=70 // loop_exit
                _
            $region71: #{densenet_forward.6} parent=66 // pred_fallthru
              _
            // Predicated region
            $region79: #{densenet_forward.6} parent=66 // pred_check
              _
            $region80: #{densenet_forward.6} parent=66 // pred_check_branch
              %1096 = sbr.rel target = $region82
            $region81: #{densenet_forward.6} parent=66 // pred_region
              _
            $region82: #{densenet_forward.6} parent=66 // pred_fallthru
              _
          $region67: #{densenet_forward.6} parent=62 // pred_fallthru
            _
          %1097 = vnop
        $region63: #{densenet_forward.6} parent=54 // pred_fallthru
          _
      $region55: #{densenet_forward.6} parent=5 // pred_fallthru
        _
      %p1098 = scmp.le.s32.totalorder 2, %s10
      // Predicated region
      $region83: #{densenet_forward.6} parent=5 // pred_check
        %p1099 = pneg %p1098
      $region84: #{densenet_forward.6} parent=5 // pred_check_branch
        %1101 = sbr.rel (%p1099) target = $region86
      $region85: #{densenet_forward.6} parent=5 // pred_region
        %s1102 = ssub.s32 %s10, 2
        // Predicated region
        $region87: #{densenet_forward.6} parent=85 // pred_check
          %p1103 = pneg %p128
        $region88: #{densenet_forward.6} parent=85 // pred_check_branch
          %1105 = sbr.rel (%p1103) target = $region90
        $region89: #{densenet_forward.6} parent=85 // pred_region
          %s1106 = sand.u32 %s113, 1
          %s1107 = sand.u32 %s113, 1
          %s1108 = smul.addr %s1107, 32
          %s1109 = scalar_lea.vmem [#allocation3], %s1108
        $region90: #{densenet_forward.6} parent=85 // pred_fallthru
          _
      $region86: #{densenet_forward.6} parent=5 // pred_fallthru
        _
    $region6: #{densenet_forward.6} parent=1 // loop_footer
      %s14 = sadd.s32 1, %s10
    $region7: #{densenet_forward.6} parent=1 // loop_footer_branch
      %9 = sbr.rel target = $region3
    $region8: #{densenet_forward.6} parent=1 // loop_exit
      _

// kernel: densenet_forward.7
$region0: #{densenet_forward.7}
  #allocation0 [shape = 'u32[]', space=smem, size = 0x4, offset = 0x4, fixed_abs, tag = 'smem constant byte address 0x4 - core index']
  #allocation1 [shape = 'u32[72,128]{1,0:T(1,128)}', space=vmem, size = 0x9000, scoped, tag = 'internal scratch']
  %s0 = inlined_call_operand.vmem [shape: f32[32,512], index: 0, kind: input, shape index: {}]
  %s1 = inlined_call_operand.vmem [shape: bf16[16,16], index: 1, kind: input, shape index: {}]
  %s2 = inlined_call_operand.vmem [shape: f32[16,1], index: 2, kind: input, shape index: {}]
  %s3 = inlined_call_operand.vmem [shape: f32[16,1], index: 3, kind: input, shape index: {}]
  %s4 = inlined_call_operand.vmem [shape: f32[16,1], index: 4, kind: input, shape index: {}]
  %s5 = inlined_call_operand.vmem [shape: f32[16,1], index: 5, kind: input, shape index: {}]
  %s6 = inlined_call_operand.vmem [shape: bf16[16,512], index: 6, kind: output, shape index: {}]
  %s7 = sld [smem:[#allocation0]]
  $region114: #{densenet_forward.7} parent=0
    _
  %s9 = ssub.s32 1, %s7
  %s10 = scalar_select 0, %s9, %s7
  $region1: #{densenet_forward.7} parent=0
    #allocation2 [shape = 'u8[32768]{0}', space=vmem, size = 0x8000, scoped, tag = 'input window, operand 0']
    #allocation3 [shape = 'u8[16384]{0}', space=vmem, size = 0x4000, scoped, tag = 'output window, operand 0']
    loop: start=0, step=1, limit=4
    $region2: #{densenet_forward.7} parent=1 // loop_pre_header
      _
    $region3: #{densenet_forward.7} parent=1 // loop_header
      %s12 = sphi 0, %s16
      %p13 = scmp.ge.s32.totalorder %s12, 4
      %s22 = sphi 0, %s24
      %s25 = sphi 0, %s22
      %s26 = sphi 0, %s25
      %s42 = sphi 0, %s26
      %s46 = sphi 0, %s46
      %s48 = sphi 0, %s46
      %s49 = sphi 0, %s48
      %s63 = sphi 0, %s49
      %s67 = sphi 0, %s67
      %s69 = sphi 0, %s67
      %s70 = sphi 0, %s69
      %s84 = sphi 0, %s70
      %s88 = sphi 0, %s88
      %s90 = sphi 0, %s88
      %s91 = sphi 0, %s90
      %s105 = sphi 0, %s91
      %s109 = sphi 0, %s109
      %s111 = sphi 0, %s109
      %s112 = sphi 0, %s111
      %s126 = sphi 0, %s112
      %s130 = sphi 0, %s130
      %s132 = sphi 0, %s130
      %s133 = sphi 0, %s132
      %s147 = sphi 0, %s133
      %s153 = sphi 0, %s155
      %s156 = sphi 0, %s153
      %s157 = sphi 0, %s156
      %s173 = sphi 0, %s157
    $region4: #{densenet_forward.7} parent=1 // loop_header_branch
      %15 = sbr.rel (%p13) target = $region8
    $region5: #{densenet_forward.7} parent=1 // loop_body
      %s17 = ssub.s32 %s12, 1
      %s18 = ssub.s32 %s12, 2
      %s19 = sadd.s32 %s12, 1
      %s20 = ssub.s32 %s12, %s19
      %p21 = scmp.eq.s32.totalorder %s20, 0
      %s23 = sadd.s32 %s22, 1
      %s24 = scalar_select %p21, %s22, %s23
      %p27 = pneg %p21
      %p28 = scmp.eq.s32.totalorder %s12, 1
      %p29 = por %p27, %p28
      %p30 = scmp.ne.s32.totalorder %s22, %s25
      %p31 = scmp.eq.s32.totalorder %s12, 0
      %p32 = por %p30, %p31
      %p33 = scmp.ne.s32.totalorder %s22, %s25
      %p34 = scmp.eq.s32.totalorder %s17, 1
      %p35 = por %p33, %p34
      %p36 = scmp.ne.s32.totalorder %s25, %s26
      %p37 = scmp.eq.s32.totalorder %s17, 0
      %p38 = por %p36, %p37
      %p39 = scmp.ne.s32.totalorder %s25, %s26
      %p40 = scmp.eq.s32.totalorder %s18, 1
      %p41 = por %p39, %p40
      %p43 = scmp.ne.s32.totalorder %s26, %s42
      %p44 = scmp.eq.s32.totalorder %s18, 0
      %p45 = por %p43, %p44
      %s47 = sadd.s32 %s46, 1
      %p50 = scmp.eq.s32.totalorder %s12, 1
      %p51 = scmp.ne.s32.totalorder %s46, %s48
      %p52 = scmp.eq.s32.totalorder %s12, 0
      %p53 = por %p51, %p52
      %p54 = scmp.ne.s32.totalorder %s46, %s48
      %p55 = scmp.eq.s32.totalorder %s17, 1
      %p56 = por %p54, %p55
      %p57 = scmp.ne.s32.totalorder %s48, %s49
      %p58 = scmp.eq.s32.totalorder %s17, 0
      %p59 = por %p57, %p58
      %p60 = scmp.ne.s32.totalorder %s48, %s49
      %p61 = scmp.eq.s32.totalorder %s18, 1
      %p62 = por %p60, %p61
      %p64 = scmp.ne.s32.totalorder %s49, %s63
      %p65 = scmp.eq.s32.totalorder %s18, 0
      %p66 = por %p64, %p65
      %s68 = sadd.s32 %s67, 1
      %p71 = scmp.eq.s32.totalorder %s12, 1
      %p72 = scmp.ne.s32.totalorder %s67, %s69
      %p73 = scmp.eq.s32.totalorder %s12, 0
      %p74 = por %p72, %p73
      %p75 = scmp.ne.s32.totalorder %s67, %s69
      %p76 = scmp.eq.s32.totalorder %s17, 1
      %p77 = por %p75, %p76
      %p78 = scmp.ne.s32.totalorder %s69, %s70
      %p79 = scmp.eq.s32.totalorder %s17, 0
      %p80 = por %p78, %p79
      %p81 = scmp.ne.s32.totalorder %s69, %s70
      %p82 = scmp.eq.s32.totalorder %s18, 1
      %p83 = por %p81, %p82
      %p85 = scmp.ne.s32.totalorder %s70, %s84
      %p86 = scmp.eq.s32.totalorder %s18, 0
      %p87 = por %p85, %p86
      %s89 = sadd.s32 %s88, 1
      %p92 = scmp.eq.s32.totalorder %s12, 1
      %p93 = scmp.ne.s32.totalorder %s88, %s90
      %p94 = scmp.eq.s32.totalorder %s12, 0
      %p95 = por %p93, %p94
      %p96 = scmp.ne.s32.totalorder %s88, %s90
      %p97 = scmp.eq.s32.totalorder %s17, 1
      %p98 = por %p96, %p97
      %p99 = scmp.ne.s32.totalorder %s90, %s91
      %p100 = scmp.eq.s32.totalorder %s17, 0
      %p101 = por %p99, %p100
      %p102 = scmp.ne.s32.totalorder %s90, %s91
      %p103 = scmp.eq.s32.totalorder %s18, 1
      %p104 = por %p102, %p103
      %p106 = scmp.ne.s32.totalorder %s91, %s105
      %p107 = scmp.eq.s32.totalorder %s18, 0
      %p108 = por %p106, %p107
      %s110 = sadd.s32 %s109, 1
      %p113 = scmp.eq.s32.totalorder %s12, 1
      %p114 = scmp.ne.s32.totalorder %s109, %s111
      %p115 = scmp.eq.s32.totalorder %s12, 0
      %p116 = por %p114, %p115
      %p117 = scmp.ne.s32.totalorder %s109, %s111
      %p118 = scmp.eq.s32.totalorder %s17, 1
      %p119 = por %p117, %p118
      %p120 = scmp.ne.s32.totalorder %s111, %s112
      %p121 = scmp.eq.s32.totalorder %s17, 0
      %p122 = por %p120, %p121
      %p123 = scmp.ne.s32.totalorder %s111, %s112
      %p124 = scmp.eq.s32.totalorder %s18, 1
      %p125 = por %p123, %p124
      %p127 = scmp.ne.s32.totalorder %s112, %s126
      %p128 = scmp.eq.s32.totalorder %s18, 0
      %p129 = por %p127, %p128
      %s131 = sadd.s32 %s130, 1
      %p134 = scmp.eq.s32.totalorder %s12, 1
      %p135 = scmp.ne.s32.totalorder %s130, %s132
      %p136 = scmp.eq.s32.totalorder %s12, 0
      %p137 = por %p135, %p136
      %p138 = scmp.ne.s32.totalorder %s130, %s132
      %p139 = scmp.eq.s32.totalorder %s17, 1
      %p140 = por %p138, %p139
      %p141 = scmp.ne.s32.totalorder %s132, %s133
      %p142 = scmp.eq.s32.totalorder %s17, 0
      %p143 = por %p141, %p142
      %p144 = scmp.ne.s32.totalorder %s132, %s133
      %p145 = scmp.eq.s32.totalorder %s18, 1
      %p146 = por %p144, %p145
      %p148 = scmp.ne.s32.totalorder %s133, %s147
      %p149 = scmp.eq.s32.totalorder %s18, 0
      %p150 = por %p148, %p149
      %s151 = ssub.s32 %s12, %s19
      %p152 = scmp.eq.s32.totalorder %s151, 0
      %s154 = sadd.s32 %s153, 1
      %s155 = scalar_select %p152, %s153, %s154
      %p158 = pneg %p152
      %p159 = scmp.eq.s32.totalorder %s12, 1
      %p160 = por %p158, %p159
      %p161 = scmp.ne.s32.totalorder %s153, %s156
      %p162 = scmp.eq.s32.totalorder %s12, 0
      %p163 = por %p161, %p162
      %p164 = scmp.ne.s32.totalorder %s153, %s156
      %p165 = scmp.eq.s32.totalorder %s17, 1
      %p166 = por %p164, %p165
      %p167 = scmp.ne.s32.totalorder %s156, %s157
      %p168 = scmp.eq.s32.totalorder %s17, 0
      %p169 = por %p167, %p168
      %p170 = scmp.ne.s32.totalorder %s156, %s157
      %p171 = scmp.eq.s32.totalorder %s18, 1
      %p172 = por %p170, %p171
      %p174 = scmp.ne.s32.totalorder %s157, %s173
      %p175 = scmp.eq.s32.totalorder %s18, 0
      %p176 = por %p174, %p175
      %p177 = scmp.le.s32.totalorder 1, %s12
      %p178 = scmp.lt.s32.totalorder %s12, 3
      %p179 = pnand %p177, %p178
      %p180 = pneg %p179
      // Predicated region
      $region9: #{densenet_forward.7} parent=5 // pred_check
        _
      $region10: #{densenet_forward.7} parent=5 // pred_check_branch
        %182 = sbr.rel (%p179) target = $region12
      $region11: #{densenet_forward.7} parent=5 // pred_region
        %s183 = ssub.s32 %s12, 1
        // Predicated region
        $region13: #{densenet_forward.7} parent=11 // pred_check
          %p184 = pneg %p59
        $region14: #{densenet_forward.7} parent=11 // pred_check_branch
          %186 = sbr.rel (%p184) target = $region16
        $region15: #{densenet_forward.7} parent=11 // pred_region
          _
        $region16: #{densenet_forward.7} parent=11 // pred_fallthru
          _
        // Predicated region
        $region17: #{densenet_forward.7} parent=11 // pred_check
          %p187 = pneg %p80
        $region18: #{densenet_forward.7} parent=11 // pred_check_branch
          %189 = sbr.rel (%p187) target = $region20
        $region19: #{densenet_forward.7} parent=11 // pred_region
          _
        $region20: #{densenet_forward.7} parent=11 // pred_fallthru
          _
        // Predicated region
        $region21: #{densenet_forward.7} parent=11 // pred_check
          %p190 = pneg %p101
        $region22: #{densenet_forward.7} parent=11 // pred_check_branch
          %192 = sbr.rel (%p190) target = $region24
        $region23: #{densenet_forward.7} parent=11 // pred_region
          _
        $region24: #{densenet_forward.7} parent=11 // pred_fallthru
          _
        // Predicated region
        $region25: #{densenet_forward.7} parent=11 // pred_check
          %p193 = pneg %p122
        $region26: #{densenet_forward.7} parent=11 // pred_check_branch
          %195 = sbr.rel (%p193) target = $region28
        $region27: #{densenet_forward.7} parent=11 // pred_region
          _
        $region28: #{densenet_forward.7} parent=11 // pred_fallthru
          _
        // Predicated region
        $region29: #{densenet_forward.7} parent=11 // pred_check
          %p196 = pneg %p143
        $region30: #{densenet_forward.7} parent=11 // pred_check_branch
          %198 = sbr.rel (%p196) target = $region32
        $region31: #{densenet_forward.7} parent=11 // pred_region
          _
        $region32: #{densenet_forward.7} parent=11 // pred_fallthru
          _
      $region12: #{densenet_forward.7} parent=5 // pred_fallthru
        _
      %p199 = scmp.lt.s32.totalorder %s12, 2
      // Predicated region
      $region33: #{densenet_forward.7} parent=5 // pred_check
        %p200 = pneg %p199
      $region34: #{densenet_forward.7} parent=5 // pred_check_branch
        %202 = sbr.rel (%p200) target = $region36
      $region35: #{densenet_forward.7} parent=5 // pred_region
        // Predicated region
        $region37: #{densenet_forward.7} parent=35 // pred_check
          %p203 = pneg %p32
        $region38: #{densenet_forward.7} parent=35 // pred_check_branch
          %205 = sbr.rel (%p203) target = $region40
        $region39: #{densenet_forward.7} parent=35 // pred_region
          %s206 = sand.u32 %s22, 1
          %s207 = sand.u32 %s22, 1
          %s208 = smul.addr %s207, 32
          %s209 = scalar_lea.vmem [#allocation2], %s208
          %s210 = smul.u32 2, %s12
          %s211 = smul.addr %s210, 8
          %s212 = scalar_lea.vmem %s0, %s211
          // Predicated region
          $region41: #{densenet_forward.7} parent=39 // pred_check
            _
          $region42: #{densenet_forward.7} parent=39 // pred_check_branch
            %214 = sbr.rel (0) target = $region44
          $region43: #{densenet_forward.7} parent=39 // pred_region
            // Predicated region
            $region45: #{densenet_forward.7} parent=43 // pred_check
              _
            $region46: #{densenet_forward.7} parent=43 // pred_check_branch
              %216 = sbr.rel (0) target = $region48
            $region47: #{densenet_forward.7} parent=43 // pred_region
              loop: start=0, step=1, limit=1
              $region49: #{densenet_forward.7} parent=47 // loop_pre_header
                _
              $region50: #{densenet_forward.7} parent=47 // loop_header
                %s218 = sphi 0, %s222
                %p219 = scmp.ge.s32.totalorder %s218, 1
                %s223 = sphi %s212, %s212
                %s224 = sphi %s209, %s209
              $region51: #{densenet_forward.7} parent=47 // loop_header_branch
                %221 = sbr.rel (%p219) target = $region55
              $region52: #{densenet_forward.7} parent=47 // loop_body
                %v225 = vld [vmem:[%s223] sm:$0xff]
                %226 = vst [vmem:[%s224] sm:$0xff] %v225
                %v227 = vld [vmem:[%s223 + $0x8] sm:$0xff]
                %228 = vst [vmem:[%s224 + $0x8] sm:$0xff] %v227
                %v229 = vld [vmem:[%s223 + $0x20] sm:$0xff]
                %230 = vst [vmem:[%s224 + $0x10] sm:$0xff] %v229
                %v231 = vld [vmem:[%s223 + $0x28] sm:$0xff]
                %232 = vst [vmem:[%s224 + $0x18] sm:$0xff] %v231
              $region53: #{densenet_forward.7} parent=47 // loop_footer
                %s222 = sadd.s32 1, %s218
              $region54: #{densenet_forward.7} parent=47 // loop_footer_branch
                %217 = sbr.rel target = $region50
              $region55: #{densenet_forward.7} parent=47 // loop_exit
                _
            $region48: #{densenet_forward.7} parent=43 // pred_fallthru
              _
            // Predicated region
            $region56: #{densenet_forward.7} parent=43 // pred_check
              _
            $region57: #{densenet_forward.7} parent=43 // pred_check_branch
              %234 = sbr.rel target = $region59
            $region58: #{densenet_forward.7} parent=43 // pred_region
              _
            $region59: #{densenet_forward.7} parent=43 // pred_fallthru
              _
          $region44: #{densenet_forward.7} parent=39 // pred_fallthru
            _
          %235 = vnop
        $region40: #{densenet_forward.7} parent=35 // pred_fallthru
          _
      $region36: #{densenet_forward.7} parent=5 // pred_fallthru
        _
      %p236 = scmp.le.s32.totalorder 1, %s12
      %p237 = scmp.lt.s32.totalorder %s12, 3
      %p238 = pnand %p236, %p237
      %p239 = pneg %p238
      // Predicated region
      $region60: #{densenet_forward.7} parent=5 // pred_check
        _
      $region61: #{densenet_forward.7} parent=5 // pred_check_branch
        %241 = sbr.rel (%p238) target = $region63
      $region62: #{densenet_forward.7} parent=5 // pred_region
        %s242 = ssub.s32 %s12, 1
        %s243 = sand.u32 %s25, 1
        %s244 = sand.u32 %s25, 1
        %s245 = smul.addr %s244, 32
        %s246 = scalar_lea.vmem [#allocation2], %s245
        // Predicated region
        $region64: #{densenet_forward.7} parent=62 // pred_check
          %p247 = pneg %p38
        $region65: #{densenet_forward.7} parent=62 // pred_check_branch
          %249 = sbr.rel (%p247) target = $region67
        $region66: #{densenet_forward.7} parent=62 // pred_region
          _
        $region67: #{densenet_forward.7} parent=62 // pred_fallthru
          _
        %s250 = sand.u32 %s25, 1
        %s251 = sand.u32 %s25, 1
        %s252 = smul.addr %s251, 32
        %s253 = scalar_lea.vmem [#allocation2], %s252
        %p254 = pneg %p38
        %p255 = pneg %p35
        %p256 = pneg %p59
        %p257 = pneg %p56
        %p258 = pneg %p80
        %p259 = pneg %p77
        %p260 = pneg %p101
        %p261 = pneg %p98
        %p262 = pneg %p122
        %p263 = pneg %p119
        %p264 = pneg %p143
        %p265 = pneg %p140
        %p266 = pneg %p169
        %p267 = pneg %p166
        %s268 = sand.u32 %s156, 1
        %s269 = sand.u32 %s156, 1
        %s270 = smul.addr %s269, 16
        %s271 = scalar_lea.vmem [#allocation3], %s270
        %s272 = smul.u32 2, %s17
        %s273 = smul.u32 2, %s17
        %v275 = vld [vmem:[%s246] sm:$0xff]
        %v276 = vld [vmem:[%s246 + $0x8] sm:$0xff]
        %v277 = vld [vmem:[%s246 + $0x10] sm:$0xff]
        %v278 = vld [vmem:[%s246 + $0x18] sm:$0xff]
        %v279 = vld [vmem:[%s2] sm:$0xff]
        %v280 = vld [vmem:[%s2 + $0x8] sm:$0xff]
        %282 = vset.pattern.permute.xlu0 0
        %283 = vperm.xlu0 %282, %v279
        %v284 = vpop.permute.xlu0 %283
        %287 = vset.pattern.permute.xlu0 0
        %288 = vperm.xlu0 %287, %v280
        %v289 = vpop.permute.xlu0 %288
        %v291 = vmul.f32 %v275, %v284
        %v292 = vmul.f32 %v276, %v284
        %v293 = vmul.f32 %v277, %v289
        %v294 = vmul.f32 %v278, %v289
        %v295 = vld [vmem:[%s3] sm:$0xff]
        %v296 = vld [vmem:[%s3 + $0x8] sm:$0xff]
        %298 = vset.pattern.permute.xlu0 0
        %299 = vperm.xlu0 %298, %v295
        %v300 = vpop.permute.xlu0 %299
        %303 = vset.pattern.permute.xlu0 0
        %304 = vperm.xlu0 %303, %v296
        %v305 = vpop.permute.xlu0 %304
        %v307 = vadd.f32 %v291, %v300
        %v308 = vadd.f32 %v292, %v300
        %v309 = vadd.f32 %v293, %v305
        %v310 = vadd.f32 %v294, %v305
        %v311 = vmax.f32 %v307, 0.0
        %v312 = vmax.f32 %v308, 0.0
        %v313 = vmax.f32 %v309, 0.0
        %v314 = vmax.f32 %v310, 0.0
        %v315 = vld [vmem:[%s1] sm:$0xf]
        %v316 = vld [vmem:[%s1 + $0x4] sm:$0xf]
        %v317 = vpack.c.bf16 %v313, %v311
        %v318 = vpack.c.bf16 %v314, %v312
        %v321 = vunpack.c.l.b16 %v315
        %v322 = vunpack.c.l.b16 %v316
        %v323 = vpack.c.b16 %v322, %v321
        %vm324 = vcmask 130048
        %v326 = vsel %vm324, %v323, 0
        %328 = vmatpush.bf16.msra.mxu0 0
        %329 = vmatpush.bf16.msra.mxu0 0
        %330 = vmatpush.bf16.msra.mxu0 0
        %331 = vmatpush.bf16.msra.mxu0 0
        %332 = vmatpush.bf16.msra.mxu0 0
        %333 = vmatpush.bf16.msra.mxu0 0
        %334 = vmatpush.bf16.msra.mxu0 0
        %335 = vmatpush.bf16.msra.mxu0 %v317
        %336 = vmatmul.bf16.gmra.mxu0 %v326
        %v337 = vpop.f32.mrf.mxu0
        %v338 = vadd.f32 0.0, %v337
        %v339 = vpop.f32.mrf.mxu0
        %v340 = vadd.f32 0.0, %v339
        %341 = vdwg.mxu0
        %342 = vmatpush.bf16.msra.mxu0 0
        %343 = vmatpush.bf16.msra.mxu0 0
        %344 = vmatpush.bf16.msra.mxu0 0
        %345 = vmatpush.bf16.msra.mxu0 0
        %346 = vmatpush.bf16.msra.mxu0 0
        %347 = vmatpush.bf16.msra.mxu0 0
        %348 = vmatpush.bf16.msra.mxu0 0
        %349 = vmatpush.bf16.msra.mxu0 %v318
        %350 = vmatmul.bf16.gmra.mxu0 %v326
        %v351 = vpop.f32.mrf.mxu0
        %v352 = vadd.f32 0.0, %v351
        %v353 = vpop.f32.mrf.mxu0
        %v354 = vadd.f32 0.0, %v353
        %355 = vdwg.mxu0
        %v356 = vld [vmem:[%s4] sm:$0xff]
        %v357 = vld [vmem:[%s4 + $0x8] sm:$0xff]
        %359 = vset.pattern.permute.xlu0 0
        %360 = vperm.xlu0 %359, %v356
        %v361 = vpop.permute.xlu0 %360
        %364 = vset.pattern.permute.xlu0 0
        %365 = vperm.xlu0 %364, %v357
        %v366 = vpop.permute.xlu0 %365
        %v368 = vmul.f32 %v338, %v361
        %v369 = vmul.f32 %v352, %v361
        %v370 = vmul.f32 %v340, %v366
        %v371 = vmul.f32 %v354, %v366
        %v372 = vld [vmem:[%s5] sm:$0xff]
        %v373 = vld [vmem:[%s5 + $0x8] sm:$0xff]
        %375 = vset.pattern.permute.xlu0 0
        %376 = vperm.xlu0 %375, %v372
        %v377 = vpop.permute.xlu0 %376
        %380 = vset.pattern.permute.xlu0 0
        %381 = vperm.xlu0 %380, %v373
        %v382 = vpop.permute.xlu0 %381
        %v384 = vadd.f32 %v368, %v377
        %v385 = vadd.f32 %v369, %v377
        %v386 = vadd.f32 %v370, %v382
        %v387 = vadd.f32 %v371, %v382
        %v388 = vmax.f32 %v384, 0.0
        %v389 = vmax.f32 %v385, 0.0
        %v390 = vmax.f32 %v386, 0.0
        %v391 = vmax.f32 %v387, 0.0
        %v392 = vpack.c.bf16 %v389, %v388
        %v393 = vpack.c.bf16 %v391, %v390
        %394 = vst [vmem:[%s271] sm:$0xff] %v392
        %395 = vst [vmem:[%s271 + $0x8] sm:$0xff] %v393
        %s396 = sand.u32 %s156, 1
        %s397 = sand.u32 %s156, 1
        %s398 = smul.addr %s397, 16
        %s399 = scalar_lea.vmem [#allocation3], %s398
        // Predicated region
        $region68: #{densenet_forward.7} parent=62 // pred_check
          %p400 = pneg %p166
        $region69: #{densenet_forward.7} parent=62 // pred_check_branch
          %402 = sbr.rel (%p400) target = $region71
        $region70: #{densenet_forward.7} parent=62 // pred_region
          %s403 = smul.u32 2, %s17
          %s404 = smul.addr %s403, 4
          %s405 = scalar_lea.vmem %s6, %s404
          // Predicated region
          $region72: #{densenet_forward.7} parent=70 // pred_check
            _
          $region73: #{densenet_forward.7} parent=70 // pred_check_branch
            %407 = sbr.rel (0) target = $region75
          $region74: #{densenet_forward.7} parent=70 // pred_region
            // Predicated region
            $region76: #{densenet_forward.7} parent=74 // pred_check
              _
            $region77: #{densenet_forward.7} parent=74 // pred_check_branch
              %409 = sbr.rel (0) target = $region79
            $region78: #{densenet_forward.7} parent=74 // pred_region
              // Predicated region
              $region91: #{densenet_forward.7} parent=78 // pred_check
                _
              $region92: #{densenet_forward.7} parent=78 // pred_check_branch
                %427 = sbr.rel (0) target = $region94
              $region93: #{densenet_forward.7} parent=78 // pred_region
                loop: start=0, step=1, limit=1
                $region95: #{densenet_forward.7} parent=93 // loop_pre_header
                  _
                $region96: #{densenet_forward.7} parent=93 // loop_header
                  %s429 = sphi 0, %s433
                  %p430 = scmp.ge.s32.totalorder %s429, 1
                  %s434 = sphi %s399, %s399
                  %s435 = sphi %s405, %s405
                $region97: #{densenet_forward.7} parent=93 // loop_header_branch
                  %432 = sbr.rel (%p430) target = $region101
                $region98: #{densenet_forward.7} parent=93 // loop_body
                  %v436 = vld [vmem:[%s434] sm:$0xff]
                  %437 = vst [vmem:[%s435] sm:$0xff] %v436
                  %v438 = vld [vmem:[%s434 + $0x8] sm:$0xff]
                  %439 = vst [vmem:[%s435 + $0x10] sm:$0xff] %v438
                $region99: #{densenet_forward.7} parent=93 // loop_footer
                  %s433 = sadd.s32 1, %s429
                $region100: #{densenet_forward.7} parent=93 // loop_footer_branch
                  %428 = sbr.rel target = $region96
                $region101: #{densenet_forward.7} parent=93 // loop_exit
                  _
              $region94: #{densenet_forward.7} parent=78 // pred_fallthru
                _
              // Predicated region
              $region102: #{densenet_forward.7} parent=78 // pred_check
                _
              $region103: #{densenet_forward.7} parent=78 // pred_check_branch
                %441 = sbr.rel target = $region105
              $region104: #{densenet_forward.7} parent=78 // pred_region
                _
              $region105: #{densenet_forward.7} parent=78 // pred_fallthru
                _
            $region79: #{densenet_forward.7} parent=74 // pred_fallthru
              _
            // Predicated region
            $region80: #{densenet_forward.7} parent=74 // pred_check
              _
            $region81: #{densenet_forward.7} parent=74 // pred_check_branch
              %411 = sbr.rel target = $region83
            $region82: #{densenet_forward.7} parent=74 // pred_region
              %s413 = ssub.s32 256, 1
              loop: start=0, step=1, limit=1
              $region84: #{densenet_forward.7} parent=82 // loop_pre_header
                _
              $region85: #{densenet_forward.7} parent=82 // loop_header
                %s415 = sphi 0, %s419
                %p416 = scmp.ge.s32.totalorder %s415, 1
                %s420 = sphi %s399, %s399
                %s421 = sphi %s405, %s405
              $region86: #{densenet_forward.7} parent=82 // loop_header_branch
                %418 = sbr.rel (%p416) target = $region90
              $region87: #{densenet_forward.7} parent=82 // loop_body
                %v422 = vld [vmem:[%s420] sm:%s413]
                %423 = vst [vmem:[%s421] sm:%s413] %v422
                %v424 = vld [vmem:[%s420 + $0x8] sm:%s413]
                %425 = vst [vmem:[%s421 + $0x10] sm:%s413] %v424
              $region88: #{densenet_forward.7} parent=82 // loop_footer
                %s419 = sadd.s32 1, %s415
              $region89: #{densenet_forward.7} parent=82 // loop_footer_branch
                %414 = sbr.rel target = $region85
              $region90: #{densenet_forward.7} parent=82 // loop_exit
                _
            $region83: #{densenet_forward.7} parent=74 // pred_fallthru
              _
          $region75: #{densenet_forward.7} parent=70 // pred_fallthru
            _
          %442 = vnop
        $region71: #{densenet_forward.7} parent=62 // pred_fallthru
          _
      $region63: #{densenet_forward.7} parent=5 // pred_fallthru
        _
      %p443 = scmp.le.s32.totalorder 2, %s12
      // Predicated region
      $region106: #{densenet_forward.7} parent=5 // pred_check
        %p444 = pneg %p443
      $region107: #{densenet_forward.7} parent=5 // pred_check_branch
        %446 = sbr.rel (%p444) target = $region109
      $region108: #{densenet_forward.7} parent=5 // pred_region
        %s447 = ssub.s32 %s12, 2
        // Predicated region
        $region110: #{densenet_forward.7} parent=108 // pred_check
          %p448 = pneg %p172
        $region111: #{densenet_forward.7} parent=108 // pred_check_branch
          %450 = sbr.rel (%p448) target = $region113
        $region112: #{densenet_forward.7} parent=108 // pred_region
          %s451 = sand.u32 %s157, 1
          %s452 = sand.u32 %s157, 1
          %s453 = smul.addr %s452, 16
          %s454 = scalar_lea.vmem [#allocation3], %s453
        $region113: #{densenet_forward.7} parent=108 // pred_fallthru
          _
      $region109: #{densenet_forward.7} parent=5 // pred_fallthru
        _
    $region6: #{densenet_forward.7} parent=1 // loop_footer
      %s16 = sadd.s32 1, %s12
    $region7: #{densenet_forward.7} parent=1 // loop_footer_branch
      %11 = sbr.rel target = $region3
    $region8: #{densenet_forward.7} parent=1 // loop_exit
      _

// kernel: densenet_forward.8
$region0: #{densenet_forward.8}
  #allocation0 [shape = 'u32[]', space=smem, size = 0x4, offset = 0x4, fixed_abs, tag = 'smem constant byte address 0x4 - core index']
  #allocation1 [shape = 'u32[72,128]{1,0:T(1,128)}', space=vmem, size = 0x9000, scoped, tag = 'internal scratch']
  %s0 = inlined_call_operand.vmem [shape: bf16[432,512], index: 0, kind: input, shape index: {}]
  %s1 = inlined_call_operand.hbm [shape: bf16[8,432], index: 1, kind: input, shape index: {}]
  %s2 = inlined_call_operand.vmem [shape: f32[32,512], index: 2, kind: input, shape index: {}, may-alias: {2,3}]
  %s3 = inlined_call_operand.vmem [shape: f32[32,512], index: 3, kind: output, shape index: {}, may-alias: {2,3}]
  %s4 = sld [smem:[#allocation0]]
  $region87: #{densenet_forward.8} parent=0
    _
  %s6 = ssub.s32 1, %s4
  %s7 = scalar_select 0, %s6, %s4
  $region1: #{densenet_forward.8} parent=0
    #allocation2 [shape = 'u8[442368]{0}', space=vmem, size = 0x6c000, scoped, tag = 'input window, operand 0']
    #allocation3 [shape = 'u8[8192]{0}', space=vmem, size = 0x2000, scoped, tag = 'input window, operand 1, single buffered']
    #allocation4 [shape = 's32[2]{0}', space=sflag, size = 0x8, scoped, tag = 'scoped memory for densenet_forward.8']
    %8 = vsyncpa [#allocation4], 0
    loop: start=0, step=1, limit=4
    $region2: #{densenet_forward.8} parent=1 // loop_pre_header
      _
    $region3: #{densenet_forward.8} parent=1 // loop_header
      %s10 = sphi 0, %s14
      %p11 = scmp.ge.s32.totalorder %s10, 4
      %s20 = sphi 0, %s22
      %s23 = sphi 0, %s20
      %s24 = sphi 0, %s23
      %s40 = sphi 0, %s24
      %s44 = sphi 0, %s44
      %s46 = sphi 0, %s44
      %s47 = sphi 0, %s46
      %s61 = sphi 0, %s47
      %s67 = sphi 0, %s69
      %s70 = sphi 0, %s67
      %s71 = sphi 0, %s70
      %s87 = sphi 0, %s71
      %s93 = sphi 0, %s95
      %s96 = sphi 0, %s93
      %s97 = sphi 0, %s96
      %s113 = sphi 0, %s97
    $region4: #{densenet_forward.8} parent=1 // loop_header_branch
      %13 = sbr.rel (%p11) target = $region8
    $region5: #{densenet_forward.8} parent=1 // loop_body
      %s15 = ssub.s32 %s10, 1
      %s16 = ssub.s32 %s10, 2
      %s17 = sadd.s32 %s10, 1
      %s18 = ssub.s32 %s10, %s17
      %p19 = scmp.eq.s32.totalorder %s18, 0
      %s21 = sadd.s32 %s20, 1
      %s22 = scalar_select %p19, %s20, %s21
      %p25 = pneg %p19
      %p26 = scmp.eq.s32.totalorder %s10, 1
      %p27 = por %p25, %p26
      %p28 = scmp.ne.s32.totalorder %s20, %s23
      %p29 = scmp.eq.s32.totalorder %s10, 0
      %p30 = por %p28, %p29
      %p31 = scmp.ne.s32.totalorder %s20, %s23
      %p32 = scmp.eq.s32.totalorder %s15, 1
      %p33 = por %p31, %p32
      %p34 = scmp.ne.s32.totalorder %s23, %s24
      %p35 = scmp.eq.s32.totalorder %s15, 0
      %p36 = por %p34, %p35
      %p37 = scmp.ne.s32.totalorder %s23, %s24
      %p38 = scmp.eq.s32.totalorder %s16, 1
      %p39 = por %p37, %p38
      %p41 = scmp.ne.s32.totalorder %s24, %s40
      %p42 = scmp.eq.s32.totalorder %s16, 0
      %p43 = por %p41, %p42
      %s45 = sadd.s32 %s44, 1
      %p48 = scmp.eq.s32.totalorder %s10, 1
      %p49 = scmp.ne.s32.totalorder %s44, %s46
      %p50 = scmp.eq.s32.totalorder %s10, 0
      %p51 = por %p49, %p50
      %p52 = scmp.ne.s32.totalorder %s44, %s46
      %p53 = scmp.eq.s32.totalorder %s15, 1
      %p54 = por %p52, %p53
      %p55 = scmp.ne.s32.totalorder %s46, %s47
      %p56 = scmp.eq.s32.totalorder %s15, 0
      %p57 = por %p55, %p56
      %p58 = scmp.ne.s32.totalorder %s46, %s47
      %p59 = scmp.eq.s32.totalorder %s16, 1
      %p60 = por %p58, %p59
      %p62 = scmp.ne.s32.totalorder %s47, %s61
      %p63 = scmp.eq.s32.totalorder %s16, 0
      %p64 = por %p62, %p63
      %s65 = ssub.s32 %s10, %s17
      %p66 = scmp.eq.s32.totalorder %s65, 0
      %s68 = sadd.s32 %s67, 1
      %s69 = scalar_select %p66, %s67, %s68
      %p72 = pneg %p66
      %p73 = scmp.eq.s32.totalorder %s10, 1
      %p74 = por %p72, %p73
      %p75 = scmp.ne.s32.totalorder %s67, %s70
      %p76 = scmp.eq.s32.totalorder %s10, 0
      %p77 = por %p75, %p76
      %p78 = scmp.ne.s32.totalorder %s67, %s70
      %p79 = scmp.eq.s32.totalorder %s15, 1
      %p80 = por %p78, %p79
      %p81 = scmp.ne.s32.totalorder %s70, %s71
      %p82 = scmp.eq.s32.totalorder %s15, 0
      %p83 = por %p81, %p82
      %p84 = scmp.ne.s32.totalorder %s70, %s71
      %p85 = scmp.eq.s32.totalorder %s16, 1
      %p86 = por %p84, %p85
      %p88 = scmp.ne.s32.totalorder %s71, %s87
      %p89 = scmp.eq.s32.totalorder %s16, 0
      %p90 = por %p88, %p89
      %s91 = ssub.s32 %s10, %s17
      %p92 = scmp.eq.s32.totalorder %s91, 0
      %s94 = sadd.s32 %s93, 1
      %s95 = scalar_select %p92, %s93, %s94
      %p98 = pneg %p92
      %p99 = scmp.eq.s32.totalorder %s10, 1
      %p100 = por %p98, %p99
      %p101 = scmp.ne.s32.totalorder %s93, %s96
      %p102 = scmp.eq.s32.totalorder %s10, 0
      %p103 = por %p101, %p102
      %p104 = scmp.ne.s32.totalorder %s93, %s96
      %p105 = scmp.eq.s32.totalorder %s15, 1
      %p106 = por %p104, %p105
      %p107 = scmp.ne.s32.totalorder %s96, %s97
      %p108 = scmp.eq.s32.totalorder %s15, 0
      %p109 = por %p107, %p108
      %p110 = scmp.ne.s32.totalorder %s96, %s97
      %p111 = scmp.eq.s32.totalorder %s16, 1
      %p112 = por %p110, %p111
      %p114 = scmp.ne.s32.totalorder %s97, %s113
      %p115 = scmp.eq.s32.totalorder %s16, 0
      %p116 = por %p114, %p115
      %p117 = scmp.le.s32.totalorder 1, %s10
      %p118 = scmp.lt.s32.totalorder %s10, 3
      %p119 = pnand %p117, %p118
      %p120 = pneg %p119
      // Predicated region
      $region9: #{densenet_forward.8} parent=5 // pred_check
        _
      $region10: #{densenet_forward.8} parent=5 // pred_check_branch
        %122 = sbr.rel (%p119) target = $region12
      $region11: #{densenet_forward.8} parent=5 // pred_region
        %s123 = ssub.s32 %s10, 1
        // Predicated region
        $region13: #{densenet_forward.8} parent=11 // pred_check
          %p124 = pneg %p57
        $region14: #{densenet_forward.8} parent=11 // pred_check_branch
          %126 = sbr.rel (%p124) target = $region16
        $region15: #{densenet_forward.8} parent=11 // pred_region
          %128 = vsyncadd [#allocation4], 0
          %s130 = sshll.u32 %s1, 4
          %s131 = int_to_ptr.hbm [resolvable:$true] %s130
          %s132 = sshll.u32 [#allocation3], 4
          %s133 = int_to_ptr.vmem [resolvable:$true] %s132
          %135 = dma.hbm_to_vmem [thread:$0]  %s131, 256, %s133, [#allocation4]
        $region16: #{densenet_forward.8} parent=11 // pred_fallthru
          _
      $region12: #{densenet_forward.8} parent=5 // pred_fallthru
        _
      %p136 = scmp.lt.s32.totalorder %s10, 2
      // Predicated region
      $region17: #{densenet_forward.8} parent=5 // pred_check
        %p137 = pneg %p136
      $region18: #{densenet_forward.8} parent=5 // pred_check_branch
        %139 = sbr.rel (%p137) target = $region20
      $region19: #{densenet_forward.8} parent=5 // pred_region
        // Predicated region
        $region21: #{densenet_forward.8} parent=19 // pred_check
          %p140 = pneg %p30
        $region22: #{densenet_forward.8} parent=19 // pred_check_branch
          %142 = sbr.rel (%p140) target = $region24
        $region23: #{densenet_forward.8} parent=19 // pred_region
          %s143 = sand.u32 %s20, 1
          %s144 = sand.u32 %s20, 1
          %s145 = smul.addr %s144, 432
          %s146 = scalar_lea.vmem [#allocation2], %s145
          %s147 = smul.u32 2, %s10
          %s148 = smul.addr %s147, 4
          %s149 = scalar_lea.vmem %s0, %s148
          // Predicated region
          $region25: #{densenet_forward.8} parent=23 // pred_check
            _
          $region26: #{densenet_forward.8} parent=23 // pred_check_branch
            %151 = sbr.rel (0) target = $region28
          $region27: #{densenet_forward.8} parent=23 // pred_region
            // Predicated region
            $region29: #{densenet_forward.8} parent=27 // pred_check
              _
            $region30: #{densenet_forward.8} parent=27 // pred_check_branch
              %153 = sbr.rel (0) target = $region32
            $region31: #{densenet_forward.8} parent=27 // pred_region
              // Predicated region
              $region44: #{densenet_forward.8} parent=31 // pred_check
                _
              $region45: #{densenet_forward.8} parent=31 // pred_check_branch
                %275 = sbr.rel (0) target = $region47
              $region46: #{densenet_forward.8} parent=31 // pred_region
                loop: start=0, step=1, limit=1
                $region48: #{densenet_forward.8} parent=46 // loop_pre_header
                  _
                $region49: #{densenet_forward.8} parent=46 // loop_header
                  %s277 = sphi 0, %s281
                  %p278 = scmp.ge.s32.totalorder %s277, 1
                  %s282 = sphi %s149, %s149
                  %s283 = sphi %s146, %s146
                $region50: #{densenet_forward.8} parent=46 // loop_header_branch
                  %280 = sbr.rel (%p278) target = $region54
                $region51: #{densenet_forward.8} parent=46 // loop_body
                  %v284 = vld [vmem:[%s282] sm:$0xff]
                  %285 = vst [vmem:[%s283] sm:$0xff] %v284
                  %v286 = vld [vmem:[%s282 + $0x10] sm:$0xff]
                  %287 = vst [vmem:[%s283 + $0x8] sm:$0xff] %v286
                  %v288 = vld [vmem:[%s282 + $0x20] sm:$0xff]
                  %289 = vst [vmem:[%s283 + $0x10] sm:$0xff] %v288
                  %v290 = vld [vmem:[%s282 + $0x30] sm:$0xff]
                  %291 = vst [vmem:[%s283 + $0x18] sm:$0xff] %v290
                  %v292 = vld [vmem:[%s282 + $0x40] sm:$0xff]
                  %293 = vst [vmem:[%s283 + $0x20] sm:$0xff] %v292
                  %v294 = vld [vmem:[%s282 + $0x50] sm:$0xff]
                  %295 = vst [vmem:[%s283 + $0x28] sm:$0xff] %v294
                  %v296 = vld [vmem:[%s282 + $0x60] sm:$0xff]
                  %297 = vst [vmem:[%s283 + $0x30] sm:$0xff] %v296
                  %v298 = vld [vmem:[%s282 + $0x70] sm:$0xff]
                  %299 = vst [vmem:[%s283 + $0x38] sm:$0xff] %v298
                  %v300 = vld [vmem:[%s282 + $0x80] sm:$0xff]
                  %301 = vst [vmem:[%s283 + $0x40] sm:$0xff] %v300
                  %v302 = vld [vmem:[%s282 + $0x90] sm:$0xff]
                  %303 = vst [vmem:[%s283 + $0x48] sm:$0xff] %v302
                  %v304 = vld [vmem:[%s282 + $0xa0] sm:$0xff]
                  %305 = vst [vmem:[%s283 + $0x50] sm:$0xff] %v304
                  %v306 = vld [vmem:[%s282 + $0xb0] sm:$0xff]
                  %307 = vst [vmem:[%s283 + $0x58] sm:$0xff] %v306
                  %v308 = vld [vmem:[%s282 + $0xc0] sm:$0xff]
                  %309 = vst [vmem:[%s283 + $0x60] sm:$0xff] %v308
                  %v310 = vld [vmem:[%s282 + $0xd0] sm:$0xff]
                  %311 = vst [vmem:[%s283 + $0x68] sm:$0xff] %v310
                  %v312 = vld [vmem:[%s282 + $0xe0] sm:$0xff]
                  %313 = vst [vmem:[%s283 + $0x70] sm:$0xff] %v312
                  %v314 = vld [vmem:[%s282 + $0xf0] sm:$0xff]
                  %315 = vst [vmem:[%s283 + $0x78] sm:$0xff] %v314
                  %v316 = vld [vmem:[%s282 + $0x100] sm:$0xff]
                  %317 = vst [vmem:[%s283 + $0x80] sm:$0xff] %v316
                  %v318 = vld [vmem:[%s282 + $0x110] sm:$0xff]
                  %319 = vst [vmem:[%s283 + $0x88] sm:$0xff] %v318
                  %v320 = vld [vmem:[%s282 + $0x120] sm:$0xff]
                  %321 = vst [vmem:[%s283 + $0x90] sm:$0xff] %v320
                  %v322 = vld [vmem:[%s282 + $0x130] sm:$0xff]
                  %323 = vst [vmem:[%s283 + $0x98] sm:$0xff] %v322
                  %v324 = vld [vmem:[%s282 + $0x140] sm:$0xff]
                  %325 = vst [vmem:[%s283 + $0xa0] sm:$0xff] %v324
                  %v326 = vld [vmem:[%s282 + $0x150] sm:$0xff]
                  %327 = vst [vmem:[%s283 + $0xa8] sm:$0xff] %v326
                  %v328 = vld [vmem:[%s282 + $0x160] sm:$0xff]
                  %329 = vst [vmem:[%s283 + $0xb0] sm:$0xff] %v328
                  %v330 = vld [vmem:[%s282 + $0x170] sm:$0xff]
                  %331 = vst [vmem:[%s283 + $0xb8] sm:$0xff] %v330
                  %v332 = vld [vmem:[%s282 + $0x180] sm:$0xff]
                  %333 = vst [vmem:[%s283 + $0xc0] sm:$0xff] %v332
                  %v334 = vld [vmem:[%s282 + $0x190] sm:$0xff]
                  %335 = vst [vmem:[%s283 + $0xc8] sm:$0xff] %v334
                  %v336 = vld [vmem:[%s282 + $0x1a0] sm:$0xff]
                  %337 = vst [vmem:[%s283 + $0xd0] sm:$0xff] %v336
                  %v338 = vld [vmem:[%s282 + $0x1b0] sm:$0xff]
                  %339 = vst [vmem:[%s283 + $0xd8] sm:$0xff] %v338
                  %v340 = vld [vmem:[%s282 + $0x1c0] sm:$0xff]
                  %341 = vst [vmem:[%s283 + $0xe0] sm:$0xff] %v340
                  %v342 = vld [vmem:[%s282 + $0x1d0] sm:$0xff]
                  %343 = vst [vmem:[%s283 + $0xe8] sm:$0xff] %v342
                  %v344 = vld [vmem:[%s282 + $0x1e0] sm:$0xff]
                  %345 = vst [vmem:[%s283 + $0xf0] sm:$0xff] %v344
                  %v346 = vld [vmem:[%s282 + $0x1f0] sm:$0xff]
                  %347 = vst [vmem:[%s283 + $0xf8] sm:$0xff] %v346
                  %v348 = vld [vmem:[%s282 + $0x200] sm:$0xff]
                  %349 = vst [vmem:[%s283 + $0x100] sm:$0xff] %v348
                  %v350 = vld [vmem:[%s282 + $0x210] sm:$0xff]
                  %351 = vst [vmem:[%s283 + $0x108] sm:$0xff] %v350
                  %v352 = vld [vmem:[%s282 + $0x220] sm:$0xff]
                  %353 = vst [vmem:[%s283 + $0x110] sm:$0xff] %v352
                  %v354 = vld [vmem:[%s282 + $0x230] sm:$0xff]
                  %355 = vst [vmem:[%s283 + $0x118] sm:$0xff] %v354
                  %v356 = vld [vmem:[%s282 + $0x240] sm:$0xff]
                  %357 = vst [vmem:[%s283 + $0x120] sm:$0xff] %v356
                  %v358 = vld [vmem:[%s282 + $0x250] sm:$0xff]
                  %359 = vst [vmem:[%s283 + $0x128] sm:$0xff] %v358
                  %v360 = vld [vmem:[%s282 + $0x260] sm:$0xff]
                  %361 = vst [vmem:[%s283 + $0x130] sm:$0xff] %v360
                  %v362 = vld [vmem:[%s282 + $0x270] sm:$0xff]
                  %363 = vst [vmem:[%s283 + $0x138] sm:$0xff] %v362
                  %v364 = vld [vmem:[%s282 + $0x280] sm:$0xff]
                  %365 = vst [vmem:[%s283 + $0x140] sm:$0xff] %v364
                  %v366 = vld [vmem:[%s282 + $0x290] sm:$0xff]
                  %367 = vst [vmem:[%s283 + $0x148] sm:$0xff] %v366
                  %v368 = vld [vmem:[%s282 + $0x2a0] sm:$0xff]
                  %369 = vst [vmem:[%s283 + $0x150] sm:$0xff] %v368
                  %v370 = vld [vmem:[%s282 + $0x2b0] sm:$0xff]
                  %371 = vst [vmem:[%s283 + $0x158] sm:$0xff] %v370
                  %v372 = vld [vmem:[%s282 + $0x2c0] sm:$0xff]
                  %373 = vst [vmem:[%s283 + $0x160] sm:$0xff] %v372
                  %v374 = vld [vmem:[%s282 + $0x2d0] sm:$0xff]
                  %375 = vst [vmem:[%s283 + $0x168] sm:$0xff] %v374
                  %v376 = vld [vmem:[%s282 + $0x2e0] sm:$0xff]
                  %377 = vst [vmem:[%s283 + $0x170] sm:$0xff] %v376
                  %v378 = vld [vmem:[%s282 + $0x2f0] sm:$0xff]
                  %379 = vst [vmem:[%s283 + $0x178] sm:$0xff] %v378
                  %v380 = vld [vmem:[%s282 + $0x300] sm:$0xff]
                  %381 = vst [vmem:[%s283 + $0x180] sm:$0xff] %v380
                  %v382 = vld [vmem:[%s282 + $0x310] sm:$0xff]
                  %383 = vst [vmem:[%s283 + $0x188] sm:$0xff] %v382
                  %v384 = vld [vmem:[%s282 + $0x320] sm:$0xff]
                  %385 = vst [vmem:[%s283 + $0x190] sm:$0xff] %v384
                  %v386 = vld [vmem:[%s282 + $0x330] sm:$0xff]
                  %387 = vst [vmem:[%s283 + $0x198] sm:$0xff] %v386
                  %v388 = vld [vmem:[%s282 + $0x340] sm:$0xff]
                  %389 = vst [vmem:[%s283 + $0x1a0] sm:$0xff] %v388
                  %v390 = vld [vmem:[%s282 + $0x350] sm:$0xff]
                  %391 = vst [vmem:[%s283 + $0x1a8] sm:$0xff] %v390
                $region52: #{densenet_forward.8} parent=46 // loop_footer
                  %s281 = sadd.s32 1, %s277
                $region53: #{densenet_forward.8} parent=46 // loop_footer_branch
                  %276 = sbr.rel target = $region49
                $region54: #{densenet_forward.8} parent=46 // loop_exit
                  _
              $region47: #{densenet_forward.8} parent=31 // pred_fallthru
                _
              // Predicated region
              $region55: #{densenet_forward.8} parent=31 // pred_check
                _
              $region56: #{densenet_forward.8} parent=31 // pred_check_branch
                %393 = sbr.rel target = $region58
              $region57: #{densenet_forward.8} parent=31 // pred_region
                _
              $region58: #{densenet_forward.8} parent=31 // pred_fallthru
                _
            $region32: #{densenet_forward.8} parent=27 // pred_fallthru
              _
            // Predicated region
            $region33: #{densenet_forward.8} parent=27 // pred_check
              _
            $region34: #{densenet_forward.8} parent=27 // pred_check_branch
              %155 = sbr.rel target = $region36
            $region35: #{densenet_forward.8} parent=27 // pred_region
              %s157 = ssub.s32 256, 1
              loop: start=0, step=1, limit=1
              $region37: #{densenet_forward.8} parent=35 // loop_pre_header
                _
              $region38: #{densenet_forward.8} parent=35 // loop_header
                %s159 = sphi 0, %s163
                %p160 = scmp.ge.s32.totalorder %s159, 1
                %s164 = sphi %s149, %s149
                %s165 = sphi %s146, %s146
              $region39: #{densenet_forward.8} parent=35 // loop_header_branch
                %162 = sbr.rel (%p160) target = $region43
              $region40: #{densenet_forward.8} parent=35 // loop_body
                %v166 = vld [vmem:[%s164] sm:%s157]
                %167 = vst [vmem:[%s165] sm:%s157] %v166
                %v168 = vld [vmem:[%s164 + $0x10] sm:%s157]
                %169 = vst [vmem:[%s165 + $0x8] sm:%s157] %v168
                %v170 = vld [vmem:[%s164 + $0x20] sm:%s157]
                %171 = vst [vmem:[%s165 + $0x10] sm:%s157] %v170
                %v172 = vld [vmem:[%s164 + $0x30] sm:%s157]
                %173 = vst [vmem:[%s165 + $0x18] sm:%s157] %v172
                %v174 = vld [vmem:[%s164 + $0x40] sm:%s157]
                %175 = vst [vmem:[%s165 + $0x20] sm:%s157] %v174
                %v176 = vld [vmem:[%s164 + $0x50] sm:%s157]
                %177 = vst [vmem:[%s165 + $0x28] sm:%s157] %v176
                %v178 = vld [vmem:[%s164 + $0x60] sm:%s157]
                %179 = vst [vmem:[%s165 + $0x30] sm:%s157] %v178
                %v180 = vld [vmem:[%s164 + $0x70] sm:%s157]
                %181 = vst [vmem:[%s165 + $0x38] sm:%s157] %v180
                %v182 = vld [vmem:[%s164 + $0x80] sm:%s157]
                %183 = vst [vmem:[%s165 + $0x40] sm:%s157] %v182
                %v184 = vld [vmem:[%s164 + $0x90] sm:%s157]
                %185 = vst [vmem:[%s165 + $0x48] sm:%s157] %v184
                %v186 = vld [vmem:[%s164 + $0xa0] sm:%s157]
                %187 = vst [vmem:[%s165 + $0x50] sm:%s157] %v186
                %v188 = vld [vmem:[%s164 + $0xb0] sm:%s157]
                %189 = vst [vmem:[%s165 + $0x58] sm:%s157] %v188
                %v190 = vld [vmem:[%s164 + $0xc0] sm:%s157]
                %191 = vst [vmem:[%s165 + $0x60] sm:%s157] %v190
                %v192 = vld [vmem:[%s164 + $0xd0] sm:%s157]
                %193 = vst [vmem:[%s165 + $0x68] sm:%s157] %v192
                %v194 = vld [vmem:[%s164 + $0xe0] sm:%s157]
                %195 = vst [vmem:[%s165 + $0x70] sm:%s157] %v194
                %v196 = vld [vmem:[%s164 + $0xf0] sm:%s157]
                %197 = vst [vmem:[%s165 + $0x78] sm:%s157] %v196
                %v198 = vld [vmem:[%s164 + $0x100] sm:%s157]
                %199 = vst [vmem:[%s165 + $0x80] sm:%s157] %v198
                %v200 = vld [vmem:[%s164 + $0x110] sm:%s157]
                %201 = vst [vmem:[%s165 + $0x88] sm:%s157] %v200
                %v202 = vld [vmem:[%s164 + $0x120] sm:%s157]
                %203 = vst [vmem:[%s165 + $0x90] sm:%s157] %v202
                %v204 = vld [vmem:[%s164 + $0x130] sm:%s157]
                %205 = vst [vmem:[%s165 + $0x98] sm:%s157] %v204
                %v206 = vld [vmem:[%s164 + $0x140] sm:%s157]
                %207 = vst [vmem:[%s165 + $0xa0] sm:%s157] %v206
                %v208 = vld [vmem:[%s164 + $0x150] sm:%s157]
                %209 = vst [vmem:[%s165 + $0xa8] sm:%s157] %v208
                %v210 = vld [vmem:[%s164 + $0x160] sm:%s157]
                %211 = vst [vmem:[%s165 + $0xb0] sm:%s157] %v210
                %v212 = vld [vmem:[%s164 + $0x170] sm:%s157]
                %213 = vst [vmem:[%s165 + $0xb8] sm:%s157] %v212
                %v214 = vld [vmem:[%s164 + $0x180] sm:%s157]
                %215 = vst [vmem:[%s165 + $0xc0] sm:%s157] %v214
                %v216 = vld [vmem:[%s164 + $0x190] sm:%s157]
                %217 = vst [vmem:[%s165 + $0xc8] sm:%s157] %v216
                %v218 = vld [vmem:[%s164 + $0x1a0] sm:%s157]
                %219 = vst [vmem:[%s165 + $0xd0] sm:%s157] %v218
                %v220 = vld [vmem:[%s164 + $0x1b0] sm:%s157]
                %221 = vst [vmem:[%s165 + $0xd8] sm:%s157] %v220
                %v222 = vld [vmem:[%s164 + $0x1c0] sm:%s157]
                %223 = vst [vmem:[%s165 + $0xe0] sm:%s157] %v222
                %v224 = vld [vmem:[%s164 + $0x1d0] sm:%s157]
                %225 = vst [vmem:[%s165 + $0xe8] sm:%s157] %v224
                %v226 = vld [vmem:[%s164 + $0x1e0] sm:%s157]
                %227 = vst [vmem:[%s165 + $0xf0] sm:%s157] %v226
                %v228 = vld [vmem:[%s164 + $0x1f0] sm:%s157]
                %229 = vst [vmem:[%s165 + $0xf8] sm:%s157] %v228
                %v230 = vld [vmem:[%s164 + $0x200] sm:%s157]
                %231 = vst [vmem:[%s165 + $0x100] sm:%s157] %v230
                %v232 = vld [vmem:[%s164 + $0x210] sm:%s157]
                %233 = vst [vmem:[%s165 + $0x108] sm:%s157] %v232
                %v234 = vld [vmem:[%s164 + $0x220] sm:%s157]
                %235 = vst [vmem:[%s165 + $0x110] sm:%s157] %v234
                %v236 = vld [vmem:[%s164 + $0x230] sm:%s157]
                %237 = vst [vmem:[%s165 + $0x118] sm:%s157] %v236
                %v238 = vld [vmem:[%s164 + $0x240] sm:%s157]
                %239 = vst [vmem:[%s165 + $0x120] sm:%s157] %v238
                %v240 = vld [vmem:[%s164 + $0x250] sm:%s157]
                %241 = vst [vmem:[%s165 + $0x128] sm:%s157] %v240
                %v242 = vld [vmem:[%s164 + $0x260] sm:%s157]
                %243 = vst [vmem:[%s165 + $0x130] sm:%s157] %v242
                %v244 = vld [vmem:[%s164 + $0x270] sm:%s157]
                %245 = vst [vmem:[%s165 + $0x138] sm:%s157] %v244
                %v246 = vld [vmem:[%s164 + $0x280] sm:%s157]
                %247 = vst [vmem:[%s165 + $0x140] sm:%s157] %v246
                %v248 = vld [vmem:[%s164 + $0x290] sm:%s157]
                %249 = vst [vmem:[%s165 + $0x148] sm:%s157] %v248
                %v250 = vld [vmem:[%s164 + $0x2a0] sm:%s157]
                %251 = vst [vmem:[%s165 + $0x150] sm:%s157] %v250
                %v252 = vld [vmem:[%s164 + $0x2b0] sm:%s157]
                %253 = vst [vmem:[%s165 + $0x158] sm:%s157] %v252
                %v254 = vld [vmem:[%s164 + $0x2c0] sm:%s157]
                %255 = vst [vmem:[%s165 + $0x160] sm:%s157] %v254
                %v256 = vld [vmem:[%s164 + $0x2d0] sm:%s157]
                %257 = vst [vmem:[%s165 + $0x168] sm:%s157] %v256
                %v258 = vld [vmem:[%s164 + $0x2e0] sm:%s157]
                %259 = vst [vmem:[%s165 + $0x170] sm:%s157] %v258
                %v260 = vld [vmem:[%s164 + $0x2f0] sm:%s157]
                %261 = vst [vmem:[%s165 + $0x178] sm:%s157] %v260
                %v262 = vld [vmem:[%s164 + $0x300] sm:%s157]
                %263 = vst [vmem:[%s165 + $0x180] sm:%s157] %v262
                %v264 = vld [vmem:[%s164 + $0x310] sm:%s157]
                %265 = vst [vmem:[%s165 + $0x188] sm:%s157] %v264
                %v266 = vld [vmem:[%s164 + $0x320] sm:%s157]
                %267 = vst [vmem:[%s165 + $0x190] sm:%s157] %v266
                %v268 = vld [vmem:[%s164 + $0x330] sm:%s157]
                %269 = vst [vmem:[%s165 + $0x198] sm:%s157] %v268
                %v270 = vld [vmem:[%s164 + $0x340] sm:%s157]
                %271 = vst [vmem:[%s165 + $0x1a0] sm:%s157] %v270
                %v272 = vld [vmem:[%s164 + $0x350] sm:%s157]
                %273 = vst [vmem:[%s165 + $0x1a8] sm:%s157] %v272
              $region41: #{densenet_forward.8} parent=35 // loop_footer
                %s163 = sadd.s32 1, %s159
              $region42: #{densenet_forward.8} parent=35 // loop_footer_branch
                %158 = sbr.rel target = $region38
              $region43: #{densenet_forward.8} parent=35 // loop_exit
                _
            $region36: #{densenet_forward.8} parent=27 // pred_fallthru
              _
          $region28: #{densenet_forward.8} parent=23 // pred_fallthru
            _
          %394 = vnop
        $region24: #{densenet_forward.8} parent=19 // pred_fallthru
          _
        // Predicated region
        $region59: #{densenet_forward.8} parent=19 // pred_check
          %p395 = pneg %p77
        $region60: #{densenet_forward.8} parent=19 // pred_check_branch
          %397 = sbr.rel (%p395) target = $region62
        $region61: #{densenet_forward.8} parent=19 // pred_region
          %s398 = smul.u32 2, %s10
          %p399 = scmp.lt.s32.totalorder %s398, 3
          %s400 = scalar_select %p399, %s398, 3
          %s401 = sadd.s32 %s400, 8
          %s402 = smul.addr %s401, 8
          %s403 = scalar_lea.vmem %s2, %s402
          %s404 = smul.u32 2, %s10
        $region62: #{densenet_forward.8} parent=19 // pred_fallthru
          _
      $region20: #{densenet_forward.8} parent=5 // pred_fallthru
        _
      %p405 = scmp.le.s32.totalorder 1, %s10
      %p406 = scmp.lt.s32.totalorder %s10, 3
      %p407 = pnand %p405, %p406
      %p408 = pneg %p407
      // Predicated region
      $region63: #{densenet_forward.8} parent=5 // pred_check
        _
      $region64: #{densenet_forward.8} parent=5 // pred_check_branch
        %410 = sbr.rel (%p407) target = $region66
      $region65: #{densenet_forward.8} parent=5 // pred_region
        %s411 = ssub.s32 %s10, 1
        %s412 = sand.u32 %s23, 1
        %s413 = sand.u32 %s23, 1
        %s414 = smul.addr %s413, 432
        %s415 = scalar_lea.vmem [#allocation2], %s414
        // Predicated region
        $region67: #{densenet_forward.8} parent=65 // pred_check
          %p416 = pneg %p36
        $region68: #{densenet_forward.8} parent=65 // pred_check_branch
          %418 = sbr.rel (%p416) target = $region70
        $region69: #{densenet_forward.8} parent=65 // pred_region
          _
        $region70: #{densenet_forward.8} parent=65 // pred_fallthru
          _
        // Predicated region
        $region71: #{densenet_forward.8} parent=65 // pred_check
          %p419 = pneg %p57
        $region72: #{densenet_forward.8} parent=65 // pred_check_branch
          %421 = sbr.rel (%p419) target = $region74
        $region73: #{densenet_forward.8} parent=65 // pred_region
          %423 = dma.done [#allocation4], 256
        $region74: #{densenet_forward.8} parent=65 // pred_fallthru
          _
        %s424 = sand.u32 %s23, 1
        %s425 = sand.u32 %s23, 1
        %s426 = smul.addr %s425, 432
        %s427 = scalar_lea.vmem [#allocation2], %s426
        %p428 = pneg %p36
        %p429 = pneg %p33
        %p430 = pneg %p57
        %p431 = pneg %p54
        %s432 = smul.u32 2, %s15
        %p433 = scmp.lt.s32.totalorder %s432, 3
        %s434 = scalar_select %p433, %s432, 3
        %s435 = sadd.s32 %s434, 8
        %s436 = smul.addr %s435, 8
        %s437 = scalar_lea.vmem %s2, %s436
        %p438 = pneg %p83
        %p439 = pneg %p80
        %p440 = pneg %p109
        %p441 = pneg %p106
        %s442 = smul.u32 2, %s15
        %p443 = scmp.lt.s32.totalorder %s442, 3
        %s444 = scalar_select %p443, %s442, 3
        %s445 = sadd.s32 %s444, 8
        %s446 = smul.addr %s445, 8
        %s447 = scalar_lea.vmem %s3, %s446
        %s448 = smul.u32 2, %s15
        %s449 = smul.u32 2, %s15
        %p450 = scmp.lt.s32.totalorder %s449, 3
        %s451 = scalar_select %p450, %s449, 3
        %s452 = sadd.s32 %s451, 8
        %s453 = smul.addr %s452, 8
        %s454 = scalar_lea.vmem %s2, %s453
        %s455 = smul.u32 2, %s15
        %s456 = smul.u32 2, %s15
        %p457 = scmp.lt.s32.totalorder %s456, 3
        %s458 = scalar_select %p457, %s456, 3
        %s459 = sadd.s32 %s458, 8
        %s460 = smul.addr %s459, 8
        %s461 = scalar_lea.vmem %s3, %s460
        %s462 = smul.u32 2, %s15
        %v464 = vld [vmem:[%s415] sm:$0xff]
        %v465 = vld [vmem:[%s415 + $0x8] sm:$0xff]
        %v466 = vld [vmem:[%s415 + $0x10] sm:$0xff]
        %v467 = vld [vmem:[%s415 + $0x18] sm:$0xff]
        %v468 = vld [vmem:[%s415 + $0x20] sm:$0xff]
        %v469 = vld [vmem:[%s415 + $0x28] sm:$0xff]
        %v470 = vld [vmem:[%s415 + $0x30] sm:$0xff]
        %v471 = vld [vmem:[%s415 + $0x38] sm:$0xff]
        %v472 = vld [vmem:[%s415 + $0x40] sm:$0xff]
        %v473 = vld [vmem:[%s415 + $0x48] sm:$0xff]
        %v474 = vld [vmem:[%s415 + $0x50] sm:$0xff]
        %v475 = vld [vmem:[%s415 + $0x58] sm:$0xff]
        %v476 = vld [vmem:[%s415 + $0x60] sm:$0xff]
        %v477 = vld [vmem:[%s415 + $0x68] sm:$0xff]
        %v478 = vld [vmem:[%s415 + $0x70] sm:$0xff]
        %v479 = vld [vmem:[%s415 + $0x78] sm:$0xff]
        %v480 = vld [vmem:[%s415 + $0x80] sm:$0xff]
        %v481 = vld [vmem:[%s415 + $0x88] sm:$0xff]
        %v482 = vld [vmem:[%s415 + $0x90] sm:$0xff]
        %v483 = vld [vmem:[%s415 + $0x98] sm:$0xff]
        %v484 = vld [vmem:[%s415 + $0xa0] sm:$0xff]
        %v485 = vld [vmem:[%s415 + $0xa8] sm:$0xff]
        %v486 = vld [vmem:[%s415 + $0xb0] sm:$0xff]
        %v487 = vld [vmem:[%s415 + $0xb8] sm:$0xff]
        %v488 = vld [vmem:[%s415 + $0xc0] sm:$0xff]
        %v489 = vld [vmem:[%s415 + $0xc8] sm:$0xff]
        %v490 = vld [vmem:[%s415 + $0xd0] sm:$0xff]
        %v491 = vld [vmem:[%s415 + $0xd8] sm:$0xff]
        %v492 = vld [vmem:[%s415 + $0xe0] sm:$0xff]
        %v493 = vld [vmem:[%s415 + $0xe8] sm:$0xff]
        %v494 = vld [vmem:[%s415 + $0xf0] sm:$0xff]
        %v495 = vld [vmem:[%s415 + $0xf8] sm:$0xff]
        %v496 = vld [vmem:[%s415 + $0x100] sm:$0xff]
        %v497 = vld [vmem:[%s415 + $0x108] sm:$0xff]
        %v498 = vld [vmem:[%s415 + $0x110] sm:$0xff]
        %v499 = vld [vmem:[%s415 + $0x118] sm:$0xff]
        %v500 = vld [vmem:[%s415 + $0x120] sm:$0xff]
        %v501 = vld [vmem:[%s415 + $0x128] sm:$0xff]
        %v502 = vld [vmem:[%s415 + $0x130] sm:$0xff]
        %v503 = vld [vmem:[%s415 + $0x138] sm:$0xff]
        %v504 = vld [vmem:[%s415 + $0x140] sm:$0xff]
        %v505 = vld [vmem:[%s415 + $0x148] sm:$0xff]
        %v506 = vld [vmem:[%s415 + $0x150] sm:$0xff]
        %v507 = vld [vmem:[%s415 + $0x158] sm:$0xff]
        %v508 = vld [vmem:[%s415 + $0x160] sm:$0xff]
        %v509 = vld [vmem:[%s415 + $0x168] sm:$0xff]
        %v510 = vld [vmem:[%s415 + $0x170] sm:$0xff]
        %v511 = vld [vmem:[%s415 + $0x178] sm:$0xff]
        %v512 = vld [vmem:[%s415 + $0x180] sm:$0xff]
        %v513 = vld [vmem:[%s415 + $0x188] sm:$0xff]
        %v514 = vld [vmem:[%s415 + $0x190] sm:$0xff]
        %v515 = vld [vmem:[%s415 + $0x198] sm:$0xff]
        %v516 = vld [vmem:[%s415 + $0x1a0] sm:$0xff]
        %v517 = vld [vmem:[%s415 + $0x1a8] sm:$0xff]
        %v518 = vld [vmem:[#allocation3] sm:$0xff]
        %v519 = vld [vmem:[#allocation3 + $0x8] sm:$0xff]
        %v522 = vunpack.c.l.b16 %v518
        %v523 = vunpack.c.h.b16 %v518
        %v524 = vunpack.c.l.b16 %v519
        %v525 = vunpack.c.h.b16 %v519
        %v526 = vpack.c.b16 %v522, %v522
        %v527 = vpack.c.b16 %v523, %v523
        %v528 = vpack.c.b16 %v524, %v524
        %v529 = vpack.c.b16 %v525, %v525
        %v587 = vunpack.c.l.b16 %v464
        %v588 = vunpack.c.h.b16 %v464
        %v589 = vunpack.c.l.b16 %v465
        %v590 = vunpack.c.h.b16 %v465
        %v591 = vunpack.c.l.b16 %v466
        %v592 = vunpack.c.h.b16 %v466
        %v593 = vunpack.c.l.b16 %v467
        %v594 = vunpack.c.h.b16 %v467
        %v595 = vunpack.c.l.b16 %v468
        %v596 = vunpack.c.h.b16 %v468
        %v597 = vunpack.c.l.b16 %v469
        %v598 = vunpack.c.h.b16 %v469
        %v599 = vunpack.c.l.b16 %v470
        %v600 = vunpack.c.h.b16 %v470
        %v601 = vunpack.c.l.b16 %v471
        %v602 = vunpack.c.h.b16 %v471
        %v603 = vunpack.c.l.b16 %v472
        %v604 = vunpack.c.h.b16 %v472
        %v605 = vunpack.c.l.b16 %v473
        %v606 = vunpack.c.h.b16 %v473
        %v607 = vunpack.c.l.b16 %v474
        %v608 = vunpack.c.h.b16 %v474
        %v609 = vunpack.c.l.b16 %v475
        %v610 = vunpack.c.h.b16 %v475
        %v611 = vunpack.c.l.b16 %v476
        %v612 = vunpack.c.h.b16 %v476
        %v613 = vunpack.c.l.b16 %v477
        %v614 = vunpack.c.h.b16 %v477
        %v615 = vunpack.c.l.b16 %v478
        %v616 = vunpack.c.h.b16 %v478
        %v617 = vunpack.c.l.b16 %v479
        %v618 = vunpack.c.h.b16 %v479
        %v619 = vunpack.c.l.b16 %v480
        %v620 = vunpack.c.h.b16 %v480
        %v621 = vunpack.c.l.b16 %v481
        %v622 = vunpack.c.h.b16 %v481
        %v623 = vunpack.c.l.b16 %v482
        %v624 = vunpack.c.h.b16 %v482
        %v625 = vunpack.c.l.b16 %v483
        %v626 = vunpack.c.h.b16 %v483
        %v627 = vunpack.c.l.b16 %v484
        %v628 = vunpack.c.h.b16 %v484
        %v629 = vunpack.c.l.b16 %v485
        %v630 = vunpack.c.h.b16 %v485
        %v631 = vunpack.c.l.b16 %v486
        %v632 = vunpack.c.h.b16 %v486
        %v633 = vunpack.c.l.b16 %v487
        %v634 = vunpack.c.h.b16 %v487
        %v635 = vunpack.c.l.b16 %v488
        %v636 = vunpack.c.h.b16 %v488
        %v637 = vunpack.c.l.b16 %v489
        %v638 = vunpack.c.h.b16 %v489
        %v639 = vunpack.c.l.b16 %v490
        %v640 = vunpack.c.h.b16 %v490
        %v641 = vunpack.c.l.b16 %v491
        %v642 = vunpack.c.h.b16 %v491
        %v643 = vunpack.c.l.b16 %v492
        %v644 = vunpack.c.h.b16 %v492
        %v645 = vunpack.c.l.b16 %v493
        %v646 = vunpack.c.h.b16 %v493
        %v647 = vunpack.c.l.b16 %v494
        %v648 = vunpack.c.h.b16 %v494
        %v649 = vunpack.c.l.b16 %v495
        %v650 = vunpack.c.h.b16 %v495
        %v651 = vunpack.c.l.b16 %v496
        %v652 = vunpack.c.h.b16 %v496
        %v653 = vunpack.c.l.b16 %v497
        %v654 = vunpack.c.h.b16 %v497
        %v655 = vunpack.c.l.b16 %v498
        %v656 = vunpack.c.h.b16 %v498
        %v657 = vunpack.c.l.b16 %v499
        %v658 = vunpack.c.h.b16 %v499
        %v659 = vunpack.c.l.b16 %v500
        %v660 = vunpack.c.h.b16 %v500
        %v661 = vunpack.c.l.b16 %v501
        %v662 = vunpack.c.h.b16 %v501
        %v663 = vunpack.c.l.b16 %v502
        %v664 = vunpack.c.h.b16 %v502
        %v665 = vunpack.c.l.b16 %v503
        %v666 = vunpack.c.h.b16 %v503
        %v667 = vunpack.c.l.b16 %v504
        %v668 = vunpack.c.h.b16 %v504
        %v669 = vunpack.c.l.b16 %v505
        %v670 = vunpack.c.h.b16 %v505
        %v671 = vunpack.c.l.b16 %v506
        %v672 = vunpack.c.h.b16 %v506
        %v673 = vunpack.c.l.b16 %v507
        %v674 = vunpack.c.h.b16 %v507
        %v675 = vunpack.c.l.b16 %v508
        %v676 = vunpack.c.h.b16 %v508
        %v677 = vunpack.c.l.b16 %v509
        %v678 = vunpack.c.h.b16 %v509
        %v679 = vunpack.c.l.b16 %v510
        %v680 = vunpack.c.h.b16 %v510
        %v681 = vunpack.c.l.b16 %v511
        %v682 = vunpack.c.h.b16 %v511
        %v683 = vunpack.c.l.b16 %v512
        %v684 = vunpack.c.h.b16 %v512
        %v685 = vunpack.c.l.b16 %v513
        %v686 = vunpack.c.h.b16 %v513
        %v687 = vunpack.c.l.b16 %v514
        %v688 = vunpack.c.h.b16 %v514
        %v689 = vunpack.c.l.b16 %v515
        %v690 = vunpack.c.h.b16 %v515
        %v691 = vunpack.c.l.b16 %v516
        %v692 = vunpack.c.h.b16 %v516
        %v693 = vunpack.c.l.b16 %v517
        %v694 = vunpack.c.h.b16 %v517
        %v695 = vpack.c.b16 %v589, %v587
        %v696 = vpack.c.b16 %v590, %v588
        %v697 = vpack.c.b16 %v593, %v591
        %v698 = vpack.c.b16 %v594, %v592
        %v699 = vpack.c.b16 %v597, %v595
        %v700 = vpack.c.b16 %v598, %v596
        %v701 = vpack.c.b16 %v601, %v599
        %v702 = vpack.c.b16 %v602, %v600
        %v703 = vpack.c.b16 %v605, %v603
        %v704 = vpack.c.b16 %v606, %v604
        %v705 = vpack.c.b16 %v609, %v607
        %v706 = vpack.c.b16 %v610, %v608
        %v707 = vpack.c.b16 %v613, %v611
        %v708 = vpack.c.b16 %v614, %v612
        %v709 = vpack.c.b16 %v617, %v615
        %v710 = vpack.c.b16 %v618, %v616
        %v711 = vpack.c.b16 %v621, %v619
        %v712 = vpack.c.b16 %v622, %v620
        %v713 = vpack.c.b16 %v625, %v623
        %v714 = vpack.c.b16 %v626, %v624
        %v715 = vpack.c.b16 %v629, %v627
        %v716 = vpack.c.b16 %v630, %v628
        %v717 = vpack.c.b16 %v633, %v631
        %v718 = vpack.c.b16 %v634, %v632
        %v719 = vpack.c.b16 %v637, %v635
        %v720 = vpack.c.b16 %v638, %v636
        %v721 = vpack.c.b16 %v641, %v639
        %v722 = vpack.c.b16 %v642, %v640
        %v723 = vpack.c.b16 %v645, %v643
        %v724 = vpack.c.b16 %v646, %v644
        %v725 = vpack.c.b16 %v649, %v647
        %v726 = vpack.c.b16 %v650, %v648
        %v727 = vpack.c.b16 %v653, %v651
        %v728 = vpack.c.b16 %v654, %v652
        %v729 = vpack.c.b16 %v657, %v655
        %v730 = vpack.c.b16 %v658, %v656
        %v731 = vpack.c.b16 %v661, %v659
        %v732 = vpack.c.b16 %v662, %v660
        %v733 = vpack.c.b16 %v665, %v663
        %v734 = vpack.c.b16 %v666, %v664
        %v735 = vpack.c.b16 %v669, %v667
        %v736 = vpack.c.b16 %v670, %v668
        %v737 = vpack.c.b16 %v673, %v671
        %v738 = vpack.c.b16 %v674, %v672
        %v739 = vpack.c.b16 %v677, %v675
        %v740 = vpack.c.b16 %v678, %v676
        %v741 = vpack.c.b16 %v681, %v679
        %v742 = vpack.c.b16 %v682, %v680
        %v743 = vpack.c.b16 %v685, %v683
        %v744 = vpack.c.b16 %v686, %v684
        %v745 = vpack.c.b16 %v689, %v687
        %v746 = vpack.c.b16 %v690, %v688
        %v747 = vpack.c.b16 %v693, %v691
        %v748 = vpack.c.b16 %v694, %v692
        %vm803 = vcmask 392192
        %v805 = vsel %vm803, %v529, 0
        %807 = vmatpush.bf16.msra.mxu0 %v709
        %808 = vmatpush.bf16.msra.mxu0 %v707
        %809 = vmatpush.bf16.msra.mxu0 %v705
        %810 = vmatpush.bf16.msra.mxu0 %v703
        %811 = vmatpush.bf16.msra.mxu0 %v701
        %812 = vmatpush.bf16.msra.mxu0 %v699
        %813 = vmatpush.bf16.msra.mxu0 %v697
        %814 = vmatpush.bf16.msra.mxu0 %v695
        %815 = vmatmul.bf16.gmra.mxu0 %v526
        %v816 = vpop.f32.mrf.mxu0
        %v817 = vadd.f32 0.0, %v816
        %v818 = vpop.f32.mrf.mxu0
        %819 = vdwg.mxu0
        %820 = vmatpush.bf16.msra.mxu0 %v725
        %821 = vmatpush.bf16.msra.mxu0 %v723
        %822 = vmatpush.bf16.msra.mxu0 %v721
        %823 = vmatpush.bf16.msra.mxu0 %v719
        %824 = vmatpush.bf16.msra.mxu0 %v717
        %825 = vmatpush.bf16.msra.mxu0 %v715
        %826 = vmatpush.bf16.msra.mxu0 %v713
        %827 = vmatpush.bf16.msra.mxu0 %v711
        %828 = vmatmul.bf16.gmra.mxu0 %v527
        %v829 = vpop.f32.mrf.mxu0
        %v830 = vadd.f32 %v817, %v829
        %v831 = vpop.f32.mrf.mxu0
        %832 = vdwg.mxu0
        %833 = vmatpush.bf16.msra.mxu0 %v741
        %834 = vmatpush.bf16.msra.mxu0 %v739
        %835 = vmatpush.bf16.msra.mxu0 %v737
        %836 = vmatpush.bf16.msra.mxu0 %v735
        %837 = vmatpush.bf16.msra.mxu0 %v733
        %838 = vmatpush.bf16.msra.mxu0 %v731
        %839 = vmatpush.bf16.msra.mxu0 %v729
        %840 = vmatpush.bf16.msra.mxu0 %v727
        %841 = vmatmul.bf16.gmra.mxu0 %v528
        %v842 = vpop.f32.mrf.mxu0
        %v843 = vadd.f32 %v830, %v842
        %v844 = vpop.f32.mrf.mxu0
        %845 = vdwg.mxu0
        %846 = vmatpush.bf16.msra.mxu0 0
        %847 = vmatpush.bf16.msra.mxu0 0
        %848 = vmatpush.bf16.msra.mxu0 0
        %849 = vmatpush.bf16.msra.mxu0 0
        %850 = vmatpush.bf16.msra.mxu0 0
        %851 = vmatpush.bf16.msra.mxu0 %v747
        %852 = vmatpush.bf16.msra.mxu0 %v745
        %853 = vmatpush.bf16.msra.mxu0 %v743
        %854 = vmatmul.bf16.gmra.mxu0 %v805
        %v855 = vpop.f32.mrf.mxu0
        %v856 = vadd.f32 %v843, %v855
        %v857 = vpop.f32.mrf.mxu0
        %858 = vdwg.mxu0
        %859 = vmatpush.bf16.msra.mxu0 %v710
        %860 = vmatpush.bf16.msra.mxu0 %v708
        %861 = vmatpush.bf16.msra.mxu0 %v706
        %862 = vmatpush.bf16.msra.mxu0 %v704
        %863 = vmatpush.bf16.msra.mxu0 %v702
        %864 = vmatpush.bf16.msra.mxu0 %v700
        %865 = vmatpush.bf16.msra.mxu0 %v698
        %866 = vmatpush.bf16.msra.mxu0 %v696
        %867 = vmatmul.bf16.gmra.mxu0 %v526
        %v868 = vpop.f32.mrf.mxu0
        %v869 = vadd.f32 0.0, %v868
        %v870 = vpop.f32.mrf.mxu0
        %871 = vdwg.mxu0
        %872 = vmatpush.bf16.msra.mxu0 %v726
        %873 = vmatpush.bf16.msra.mxu0 %v724
        %874 = vmatpush.bf16.msra.mxu0 %v722
        %875 = vmatpush.bf16.msra.mxu0 %v720
        %876 = vmatpush.bf16.msra.mxu0 %v718
        %877 = vmatpush.bf16.msra.mxu0 %v716
        %878 = vmatpush.bf16.msra.mxu0 %v714
        %879 = vmatpush.bf16.msra.mxu0 %v712
        %880 = vmatmul.bf16.gmra.mxu0 %v527
        %v881 = vpop.f32.mrf.mxu0
        %v882 = vadd.f32 %v869, %v881
        %v883 = vpop.f32.mrf.mxu0
        %884 = vdwg.mxu0
        %885 = vmatpush.bf16.msra.mxu0 %v742
        %886 = vmatpush.bf16.msra.mxu0 %v740
        %887 = vmatpush.bf16.msra.mxu0 %v738
        %888 = vmatpush.bf16.msra.mxu0 %v736
        %889 = vmatpush.bf16.msra.mxu0 %v734
        %890 = vmatpush.bf16.msra.mxu0 %v732
        %891 = vmatpush.bf16.msra.mxu0 %v730
        %892 = vmatpush.bf16.msra.mxu0 %v728
        %893 = vmatmul.bf16.gmra.mxu0 %v528
        %v894 = vpop.f32.mrf.mxu0
        %v895 = vadd.f32 %v882, %v894
        %v896 = vpop.f32.mrf.mxu0
        %897 = vdwg.mxu0
        %898 = vmatpush.bf16.msra.mxu0 0
        %899 = vmatpush.bf16.msra.mxu0 0
        %900 = vmatpush.bf16.msra.mxu0 0
        %901 = vmatpush.bf16.msra.mxu0 0
        %902 = vmatpush.bf16.msra.mxu0 0
        %903 = vmatpush.bf16.msra.mxu0 %v748
        %904 = vmatpush.bf16.msra.mxu0 %v746
        %905 = vmatpush.bf16.msra.mxu0 %v744
        %906 = vmatmul.bf16.gmra.mxu0 %v805
        %v907 = vpop.f32.mrf.mxu0
        %v908 = vadd.f32 %v895, %v907
        %v909 = vpop.f32.mrf.mxu0
        %910 = vdwg.mxu0
        %911 = vst [vmem:[%s461] sm:$0xff] %v856
        %912 = vst [vmem:[%s461 + $0x8] sm:$0xff] %v908
        %s913 = smul.u32 2, %s15
        %p914 = scmp.lt.s32.totalorder %s913, 3
        %s915 = scalar_select %p914, %s913, 3
        %s916 = sadd.s32 %s915, 8
        %s917 = smul.addr %s916, 8
        %s918 = scalar_lea.vmem %s3, %s917
        // Predicated region
        $region75: #{densenet_forward.8} parent=65 // pred_check
          %p919 = pneg %p106
        $region76: #{densenet_forward.8} parent=65 // pred_check_branch
          %921 = sbr.rel (%p919) target = $region78
        $region77: #{densenet_forward.8} parent=65 // pred_region
          %s922 = smul.u32 2, %s15
        $region78: #{densenet_forward.8} parent=65 // pred_fallthru
          _
      $region66: #{densenet_forward.8} parent=5 // pred_fallthru
        _
      %p923 = scmp.le.s32.totalorder 2, %s10
      // Predicated region
      $region79: #{densenet_forward.8} parent=5 // pred_check
        %p924 = pneg %p923
      $region80: #{densenet_forward.8} parent=5 // pred_check_branch
        %926 = sbr.rel (%p924) target = $region82
      $region81: #{densenet_forward.8} parent=5 // pred_region
        %s927 = ssub.s32 %s10, 2
        // Predicated region
        $region83: #{densenet_forward.8} parent=81 // pred_check
          %p928 = pneg %p112
        $region84: #{densenet_forward.8} parent=81 // pred_check_branch
          %930 = sbr.rel (%p928) target = $region86
        $region85: #{densenet_forward.8} parent=81 // pred_region
          %s931 = smul.u32 2, %s16
          %p932 = scmp.lt.s32.totalorder %s931, 3
          %s933 = scalar_select %p932, %s931, 3
          %s934 = sadd.s32 %s933, 8
          %s935 = smul.addr %s934, 8
          %s936 = scalar_lea.vmem %s3, %s935
        $region86: #{densenet_forward.8} parent=81 // pred_fallthru
          _
      $region82: #{densenet_forward.8} parent=5 // pred_fallthru
        _
    $region6: #{densenet_forward.8} parent=1 // loop_footer
      %s14 = sadd.s32 1, %s10
    $region7: #{densenet_forward.8} parent=1 // loop_footer_branch
      %9 = sbr.rel target = $region3
    $region8: #{densenet_forward.8} parent=1 // loop_exit
      _
    %937 = vsyncpa [#allocation4], 1
    %s938 = scalar_lea.sflag [#allocation4], 1
    %939 = vsyncpa %s938, 1

// kernel: densenet_forward.9
$region0: #{densenet_forward.9}
  #allocation0 [shape = 'u32[]', space=smem, size = 0x4, offset = 0x4, fixed_abs, tag = 'smem constant byte address 0x4 - core index']
  #allocation1 [shape = 'u32[72,128]{1,0:T(1,128)}', space=vmem, size = 0x9000, scoped, tag = 'internal scratch']
  %s0 = inlined_call_operand.vmem [shape: f32[32,512], index: 0, kind: input, shape index: {}]
  %s1 = inlined_call_operand.hbm [shape: bf16[16,24], index: 1, kind: input, shape index: {}]
  %s2 = inlined_call_operand.vmem [shape: f32[24,1], index: 2, kind: input, shape index: {}]
  %s3 = inlined_call_operand.vmem [shape: f32[24,1], index: 3, kind: input, shape index: {}]
  %s4 = inlined_call_operand.vmem [shape: f32[16,1], index: 4, kind: input, shape index: {}]
  %s5 = inlined_call_operand.vmem [shape: f32[16,1], index: 5, kind: input, shape index: {}]
  %s6 = inlined_call_operand.vmem [shape: bf16[16,512], index: 6, kind: output, shape index: {}]
  %s7 = sld [smem:[#allocation0]]
  $region118: #{densenet_forward.9} parent=0
    _
  %s9 = ssub.s32 1, %s7
  %s10 = scalar_select 0, %s9, %s7
  $region1: #{densenet_forward.9} parent=0
    #allocation2 [shape = 'u8[49152]{0}', space=vmem, size = 0xc000, scoped, tag = 'input window, operand 0']
    #allocation3 [shape = 'u8[4096]{0}', space=vmem, size = 0x1000, scoped, tag = 'input window, operand 1, single buffered']
    #allocation4 [shape = 's32[2]{0}', space=sflag, size = 0x8, scoped, tag = 'scoped memory for densenet_forward.9']
    #allocation5 [shape = 'u8[16384]{0}', space=vmem, size = 0x4000, scoped, tag = 'output window, operand 0']
    %11 = vsyncpa [#allocation4], 0
    loop: start=0, step=1, limit=4
    $region2: #{densenet_forward.9} parent=1 // loop_pre_header
      _
    $region3: #{densenet_forward.9} parent=1 // loop_header
      %s13 = sphi 0, %s17
      %p14 = scmp.ge.s32.totalorder %s13, 4
      %s23 = sphi 0, %s25
      %s26 = sphi 0, %s23
      %s27 = sphi 0, %s26
      %s43 = sphi 0, %s27
      %s47 = sphi 0, %s47
      %s49 = sphi 0, %s47
      %s50 = sphi 0, %s49
      %s64 = sphi 0, %s50
      %s68 = sphi 0, %s68
      %s70 = sphi 0, %s68
      %s71 = sphi 0, %s70
      %s85 = sphi 0, %s71
      %s89 = sphi 0, %s89
      %s91 = sphi 0, %s89
      %s92 = sphi 0, %s91
      %s106 = sphi 0, %s92
      %s110 = sphi 0, %s110
      %s112 = sphi 0, %s110
      %s113 = sphi 0, %s112
      %s127 = sphi 0, %s113
      %s131 = sphi 0, %s131
      %s133 = sphi 0, %s131
      %s134 = sphi 0, %s133
      %s148 = sphi 0, %s134
      %s154 = sphi 0, %s156
      %s157 = sphi 0, %s154
      %s158 = sphi 0, %s157
      %s174 = sphi 0, %s158
    $region4: #{densenet_forward.9} parent=1 // loop_header_branch
      %16 = sbr.rel (%p14) target = $region8
    $region5: #{densenet_forward.9} parent=1 // loop_body
      %s18 = ssub.s32 %s13, 1
      %s19 = ssub.s32 %s13, 2
      %s20 = sadd.s32 %s13, 1
      %s21 = ssub.s32 %s13, %s20
      %p22 = scmp.eq.s32.totalorder %s21, 0
      %s24 = sadd.s32 %s23, 1
      %s25 = scalar_select %p22, %s23, %s24
      %p28 = pneg %p22
      %p29 = scmp.eq.s32.totalorder %s13, 1
      %p30 = por %p28, %p29
      %p31 = scmp.ne.s32.totalorder %s23, %s26
      %p32 = scmp.eq.s32.totalorder %s13, 0
      %p33 = por %p31, %p32
      %p34 = scmp.ne.s32.totalorder %s23, %s26
      %p35 = scmp.eq.s32.totalorder %s18, 1
      %p36 = por %p34, %p35
      %p37 = scmp.ne.s32.totalorder %s26, %s27
      %p38 = scmp.eq.s32.totalorder %s18, 0
      %p39 = por %p37, %p38
      %p40 = scmp.ne.s32.totalorder %s26, %s27
      %p41 = scmp.eq.s32.totalorder %s19, 1
      %p42 = por %p40, %p41
      %p44 = scmp.ne.s32.totalorder %s27, %s43
      %p45 = scmp.eq.s32.totalorder %s19, 0
      %p46 = por %p44, %p45
      %s48 = sadd.s32 %s47, 1
      %p51 = scmp.eq.s32.totalorder %s13, 1
      %p52 = scmp.ne.s32.totalorder %s47, %s49
      %p53 = scmp.eq.s32.totalorder %s13, 0
      %p54 = por %p52, %p53
      %p55 = scmp.ne.s32.totalorder %s47, %s49
      %p56 = scmp.eq.s32.totalorder %s18, 1
      %p57 = por %p55, %p56
      %p58 = scmp.ne.s32.totalorder %s49, %s50
      %p59 = scmp.eq.s32.totalorder %s18, 0
      %p60 = por %p58, %p59
      %p61 = scmp.ne.s32.totalorder %s49, %s50
      %p62 = scmp.eq.s32.totalorder %s19, 1
      %p63 = por %p61, %p62
      %p65 = scmp.ne.s32.totalorder %s50, %s64
      %p66 = scmp.eq.s32.totalorder %s19, 0
      %p67 = por %p65, %p66
      %s69 = sadd.s32 %s68, 1
      %p72 = scmp.eq.s32.totalorder %s13, 1
      %p73 = scmp.ne.s32.totalorder %s68, %s70
      %p74 = scmp.eq.s32.totalorder %s13, 0
      %p75 = por %p73, %p74
      %p76 = scmp.ne.s32.totalorder %s68, %s70
      %p77 = scmp.eq.s32.totalorder %s18, 1
      %p78 = por %p76, %p77
      %p79 = scmp.ne.s32.totalorder %s70, %s71
      %p80 = scmp.eq.s32.totalorder %s18, 0
      %p81 = por %p79, %p80
      %p82 = scmp.ne.s32.totalorder %s70, %s71
      %p83 = scmp.eq.s32.totalorder %s19, 1
      %p84 = por %p82, %p83
      %p86 = scmp.ne.s32.totalorder %s71, %s85
      %p87 = scmp.eq.s32.totalorder %s19, 0
      %p88 = por %p86, %p87
      %s90 = sadd.s32 %s89, 1
      %p93 = scmp.eq.s32.totalorder %s13, 1
      %p94 = scmp.ne.s32.totalorder %s89, %s91
      %p95 = scmp.eq.s32.totalorder %s13, 0
      %p96 = por %p94, %p95
      %p97 = scmp.ne.s32.totalorder %s89, %s91
      %p98 = scmp.eq.s32.totalorder %s18, 1
      %p99 = por %p97, %p98
      %p100 = scmp.ne.s32.totalorder %s91, %s92
      %p101 = scmp.eq.s32.totalorder %s18, 0
      %p102 = por %p100, %p101
      %p103 = scmp.ne.s32.totalorder %s91, %s92
      %p104 = scmp.eq.s32.totalorder %s19, 1
      %p105 = por %p103, %p104
      %p107 = scmp.ne.s32.totalorder %s92, %s106
      %p108 = scmp.eq.s32.totalorder %s19, 0
      %p109 = por %p107, %p108
      %s111 = sadd.s32 %s110, 1
      %p114 = scmp.eq.s32.totalorder %s13, 1
      %p115 = scmp.ne.s32.totalorder %s110, %s112
      %p116 = scmp.eq.s32.totalorder %s13, 0
      %p117 = por %p115, %p116
      %p118 = scmp.ne.s32.totalorder %s110, %s112
      %p119 = scmp.eq.s32.totalorder %s18, 1
      %p120 = por %p118, %p119
      %p121 = scmp.ne.s32.totalorder %s112, %s113
      %p122 = scmp.eq.s32.totalorder %s18, 0
      %p123 = por %p121, %p122
      %p124 = scmp.ne.s32.totalorder %s112, %s113
      %p125 = scmp.eq.s32.totalorder %s19, 1
      %p126 = por %p124, %p125
      %p128 = scmp.ne.s32.totalorder %s113, %s127
      %p129 = scmp.eq.s32.totalorder %s19, 0
      %p130 = por %p128, %p129
      %s132 = sadd.s32 %s131, 1
      %p135 = scmp.eq.s32.totalorder %s13, 1
      %p136 = scmp.ne.s32.totalorder %s131, %s133
      %p137 = scmp.eq.s32.totalorder %s13, 0
      %p138 = por %p136, %p137
      %p139 = scmp.ne.s32.totalorder %s131, %s133
      %p140 = scmp.eq.s32.totalorder %s18, 1
      %p141 = por %p139, %p140
      %p142 = scmp.ne.s32.totalorder %s133, %s134
      %p143 = scmp.eq.s32.totalorder %s18, 0
      %p144 = por %p142, %p143
      %p145 = scmp.ne.s32.totalorder %s133, %s134
      %p146 = scmp.eq.s32.totalorder %s19, 1
      %p147 = por %p145, %p146
      %p149 = scmp.ne.s32.totalorder %s134, %s148
      %p150 = scmp.eq.s32.totalorder %s19, 0
      %p151 = por %p149, %p150
      %s152 = ssub.s32 %s13, %s20
      %p153 = scmp.eq.s32.totalorder %s152, 0
      %s155 = sadd.s32 %s154, 1
      %s156 = scalar_select %p153, %s154, %s155
      %p159 = pneg %p153
      %p160 = scmp.eq.s32.totalorder %s13, 1
      %p161 = por %p159, %p160
      %p162 = scmp.ne.s32.totalorder %s154, %s157
      %p163 = scmp.eq.s32.totalorder %s13, 0
      %p164 = por %p162, %p163
      %p165 = scmp.ne.s32.totalorder %s154, %s157
      %p166 = scmp.eq.s32.totalorder %s18, 1
      %p167 = por %p165, %p166
      %p168 = scmp.ne.s32.totalorder %s157, %s158
      %p169 = scmp.eq.s32.totalorder %s18, 0
      %p170 = por %p168, %p169
      %p171 = scmp.ne.s32.totalorder %s157, %s158
      %p172 = scmp.eq.s32.totalorder %s19, 1
      %p173 = por %p171, %p172
      %p175 = scmp.ne.s32.totalorder %s158, %s174
      %p176 = scmp.eq.s32.totalorder %s19, 0
      %p177 = por %p175, %p176
      %p178 = scmp.le.s32.totalorder 1, %s13
      %p179 = scmp.lt.s32.totalorder %s13, 3
      %p180 = pnand %p178, %p179
      %p181 = pneg %p180
      // Predicated region
      $region9: #{densenet_forward.9} parent=5 // pred_check
        _
      $region10: #{densenet_forward.9} parent=5 // pred_check_branch
        %183 = sbr.rel (%p180) target = $region12
      $region11: #{densenet_forward.9} parent=5 // pred_region
        %s184 = ssub.s32 %s13, 1
        // Predicated region
        $region13: #{densenet_forward.9} parent=11 // pred_check
          %p185 = pneg %p60
        $region14: #{densenet_forward.9} parent=11 // pred_check_branch
          %187 = sbr.rel (%p185) target = $region16
        $region15: #{densenet_forward.9} parent=11 // pred_region
          %189 = vsyncadd [#allocation4], 0
          %s190 = sshll.u32 %s1, 4
          %s191 = int_to_ptr.hbm [resolvable:$true] %s190
          %s192 = sshll.u32 [#allocation3], 4
          %s193 = int_to_ptr.vmem [resolvable:$true] %s192
          %198 = dma.hbm_to_vmem [thread:$0]  %s191, 128, %s193, [#allocation4], 64, 64, 4
        $region16: #{densenet_forward.9} parent=11 // pred_fallthru
          _
        // Predicated region
        $region17: #{densenet_forward.9} parent=11 // pred_check
          %p199 = pneg %p81
        $region18: #{densenet_forward.9} parent=11 // pred_check_branch
          %201 = sbr.rel (%p199) target = $region20
        $region19: #{densenet_forward.9} parent=11 // pred_region
          _
        $region20: #{densenet_forward.9} parent=11 // pred_fallthru
          _
        // Predicated region
        $region21: #{densenet_forward.9} parent=11 // pred_check
          %p202 = pneg %p102
        $region22: #{densenet_forward.9} parent=11 // pred_check_branch
          %204 = sbr.rel (%p202) target = $region24
        $region23: #{densenet_forward.9} parent=11 // pred_region
          _
        $region24: #{densenet_forward.9} parent=11 // pred_fallthru
          _
        // Predicated region
        $region25: #{densenet_forward.9} parent=11 // pred_check
          %p205 = pneg %p123
        $region26: #{densenet_forward.9} parent=11 // pred_check_branch
          %207 = sbr.rel (%p205) target = $region28
        $region27: #{densenet_forward.9} parent=11 // pred_region
          _
        $region28: #{densenet_forward.9} parent=11 // pred_fallthru
          _
        // Predicated region
        $region29: #{densenet_forward.9} parent=11 // pred_check
          %p208 = pneg %p144
        $region30: #{densenet_forward.9} parent=11 // pred_check_branch
          %210 = sbr.rel (%p208) target = $region32
        $region31: #{densenet_forward.9} parent=11 // pred_region
          _
        $region32: #{densenet_forward.9} parent=11 // pred_fallthru
          _
      $region12: #{densenet_forward.9} parent=5 // pred_fallthru
        _
      %p211 = scmp.lt.s32.totalorder %s13, 2
      // Predicated region
      $region33: #{densenet_forward.9} parent=5 // pred_check
        %p212 = pneg %p211
      $region34: #{densenet_forward.9} parent=5 // pred_check_branch
        %214 = sbr.rel (%p212) target = $region36
      $region35: #{densenet_forward.9} parent=5 // pred_region
        // Predicated region
        $region37: #{densenet_forward.9} parent=35 // pred_check
          %p215 = pneg %p33
        $region38: #{densenet_forward.9} parent=35 // pred_check_branch
          %217 = sbr.rel (%p215) target = $region40
        $region39: #{densenet_forward.9} parent=35 // pred_region
          %s218 = sand.u32 %s23, 1
          %s219 = sand.u32 %s23, 1
          %s220 = smul.addr %s219, 48
          %s221 = scalar_lea.vmem [#allocation2], %s220
          %s222 = smul.u32 2, %s13
          %s223 = smul.addr %s222, 8
          %s224 = scalar_lea.vmem %s0, %s223
          // Predicated region
          $region41: #{densenet_forward.9} parent=39 // pred_check
            _
          $region42: #{densenet_forward.9} parent=39 // pred_check_branch
            %226 = sbr.rel (0) target = $region44
          $region43: #{densenet_forward.9} parent=39 // pred_region
            // Predicated region
            $region45: #{densenet_forward.9} parent=43 // pred_check
              _
            $region46: #{densenet_forward.9} parent=43 // pred_check_branch
              %228 = sbr.rel (0) target = $region48
            $region47: #{densenet_forward.9} parent=43 // pred_region
              loop: start=0, step=1, limit=1
              $region49: #{densenet_forward.9} parent=47 // loop_pre_header
                _
              $region50: #{densenet_forward.9} parent=47 // loop_header
                %s230 = sphi 0, %s234
                %p231 = scmp.ge.s32.totalorder %s230, 1
                %s235 = sphi %s224, %s224
                %s236 = sphi %s221, %s221
              $region51: #{densenet_forward.9} parent=47 // loop_header_branch
                %233 = sbr.rel (%p231) target = $region55
              $region52: #{densenet_forward.9} parent=47 // loop_body
                %v237 = vld [vmem:[%s235] sm:$0xff]
                %238 = vst [vmem:[%s236] sm:$0xff] %v237
                %v239 = vld [vmem:[%s235 + $0x8] sm:$0xff]
                %240 = vst [vmem:[%s236 + $0x8] sm:$0xff] %v239
                %v241 = vld [vmem:[%s235 + $0x20] sm:$0xff]
                %242 = vst [vmem:[%s236 + $0x10] sm:$0xff] %v241
                %v243 = vld [vmem:[%s235 + $0x28] sm:$0xff]
                %244 = vst [vmem:[%s236 + $0x18] sm:$0xff] %v243
                %v245 = vld [vmem:[%s235 + $0x40] sm:$0xff]
                %246 = vst [vmem:[%s236 + $0x20] sm:$0xff] %v245
                %v247 = vld [vmem:[%s235 + $0x48] sm:$0xff]
                %248 = vst [vmem:[%s236 + $0x28] sm:$0xff] %v247
              $region53: #{densenet_forward.9} parent=47 // loop_footer
                %s234 = sadd.s32 1, %s230
              $region54: #{densenet_forward.9} parent=47 // loop_footer_branch
                %229 = sbr.rel target = $region50
              $region55: #{densenet_forward.9} parent=47 // loop_exit
                _
            $region48: #{densenet_forward.9} parent=43 // pred_fallthru
              _
            // Predicated region
            $region56: #{densenet_forward.9} parent=43 // pred_check
              _
            $region57: #{densenet_forward.9} parent=43 // pred_check_branch
              %250 = sbr.rel target = $region59
            $region58: #{densenet_forward.9} parent=43 // pred_region
              _
            $region59: #{densenet_forward.9} parent=43 // pred_fallthru
              _
          $region44: #{densenet_forward.9} parent=39 // pred_fallthru
            _
          %251 = vnop
        $region40: #{densenet_forward.9} parent=35 // pred_fallthru
          _
      $region36: #{densenet_forward.9} parent=5 // pred_fallthru
        _
      %p252 = scmp.le.s32.totalorder 1, %s13
      %p253 = scmp.lt.s32.totalorder %s13, 3
      %p254 = pnand %p252, %p253
      %p255 = pneg %p254
      // Predicated region
      $region60: #{densenet_forward.9} parent=5 // pred_check
        _
      $region61: #{densenet_forward.9} parent=5 // pred_check_branch
        %257 = sbr.rel (%p254) target = $region63
      $region62: #{densenet_forward.9} parent=5 // pred_region
        %s258 = ssub.s32 %s13, 1
        %s259 = sand.u32 %s26, 1
        %s260 = sand.u32 %s26, 1
        %s261 = smul.addr %s260, 48
        %s262 = scalar_lea.vmem [#allocation2], %s261
        // Predicated region
        $region64: #{densenet_forward.9} parent=62 // pred_check
          %p263 = pneg %p39
        $region65: #{densenet_forward.9} parent=62 // pred_check_branch
          %265 = sbr.rel (%p263) target = $region67
        $region66: #{densenet_forward.9} parent=62 // pred_region
          _
        $region67: #{densenet_forward.9} parent=62 // pred_fallthru
          _
        // Predicated region
        $region68: #{densenet_forward.9} parent=62 // pred_check
          %p266 = pneg %p60
        $region69: #{densenet_forward.9} parent=62 // pred_check_branch
          %268 = sbr.rel (%p266) target = $region71
        $region70: #{densenet_forward.9} parent=62 // pred_region
          %270 = dma.done [#allocation4], 128
        $region71: #{densenet_forward.9} parent=62 // pred_fallthru
          _
        %s271 = sand.u32 %s26, 1
        %s272 = sand.u32 %s26, 1
        %s273 = smul.addr %s272, 48
        %s274 = scalar_lea.vmem [#allocation2], %s273
        %p275 = pneg %p39
        %p276 = pneg %p36
        %p277 = pneg %p60
        %p278 = pneg %p57
        %p279 = pneg %p81
        %p280 = pneg %p78
        %p281 = pneg %p102
        %p282 = pneg %p99
        %p283 = pneg %p123
        %p284 = pneg %p120
        %p285 = pneg %p144
        %p286 = pneg %p141
        %p287 = pneg %p170
        %p288 = pneg %p167
        %s289 = sand.u32 %s157, 1
        %s290 = sand.u32 %s157, 1
        %s291 = smul.addr %s290, 16
        %s292 = scalar_lea.vmem [#allocation5], %s291
        %s293 = smul.u32 2, %s18
        %s294 = smul.u32 2, %s18
        %v296 = vld [vmem:[%s262] sm:$0xff]
        %v297 = vld [vmem:[%s262 + $0x8] sm:$0xff]
        %v298 = vld [vmem:[%s262 + $0x10] sm:$0xff]
        %v299 = vld [vmem:[%s262 + $0x18] sm:$0xff]
        %v300 = vld [vmem:[%s262 + $0x20] sm:$0xff]
        %v301 = vld [vmem:[%s262 + $0x28] sm:$0xff]
        %v302 = vld [vmem:[%s2] sm:$0xff]
        %v303 = vld [vmem:[%s2 + $0x8] sm:$0xff]
        %v304 = vld [vmem:[%s2 + $0x10] sm:$0xff]
        %306 = vset.pattern.permute.xlu0 0
        %307 = vperm.xlu0 %306, %v302
        %v308 = vpop.permute.xlu0 %307
        %311 = vset.pattern.permute.xlu0 0
        %312 = vperm.xlu0 %311, %v303
        %v313 = vpop.permute.xlu0 %312
        %316 = vset.pattern.permute.xlu0 0
        %317 = vperm.xlu0 %316, %v304
        %v318 = vpop.permute.xlu0 %317
        %v320 = vmul.f32 %v296, %v308
        %v321 = vmul.f32 %v297, %v308
        %v322 = vmul.f32 %v298, %v313
        %v323 = vmul.f32 %v299, %v313
        %v324 = vmul.f32 %v300, %v318
        %v325 = vmul.f32 %v301, %v318
        %v326 = vld [vmem:[%s3] sm:$0xff]
        %v327 = vld [vmem:[%s3 + $0x8] sm:$0xff]
        %v328 = vld [vmem:[%s3 + $0x10] sm:$0xff]
        %330 = vset.pattern.permute.xlu0 0
        %331 = vperm.xlu0 %330, %v326
        %v332 = vpop.permute.xlu0 %331
        %335 = vset.pattern.permute.xlu0 0
        %336 = vperm.xlu0 %335, %v327
        %v337 = vpop.permute.xlu0 %336
        %340 = vset.pattern.permute.xlu0 0
        %341 = vperm.xlu0 %340, %v328
        %v342 = vpop.permute.xlu0 %341
        %v344 = vadd.f32 %v320, %v332
        %v345 = vadd.f32 %v321, %v332
        %v346 = vadd.f32 %v322, %v337
        %v347 = vadd.f32 %v323, %v337
        %v348 = vadd.f32 %v324, %v342
        %v349 = vadd.f32 %v325, %v342
        %v350 = vmax.f32 %v344, 0.0
        %v351 = vmax.f32 %v345, 0.0
        %v352 = vmax.f32 %v346, 0.0
        %v353 = vmax.f32 %v347, 0.0
        %v354 = vmax.f32 %v348, 0.0
        %v355 = vmax.f32 %v349, 0.0
        %v356 = vld [vmem:[#allocation3] sm:$0xf]
        %v357 = vld [vmem:[#allocation3 + $0x4] sm:$0xf]
        %v358 = vpack.c.bf16 %v352, %v350
        %v359 = vpack.c.bf16 %v353, %v351
        %v360 = vpack.c.bf16 %v354, %v354
        %v361 = vpack.c.bf16 %v355, %v355
        %v364 = vunpack.c.l.b16 %v356
        %v365 = vunpack.c.l.b16 %v357
        %v366 = vpack.c.b16 %v365, %v364
        %vm367 = vcmask 195584
        %v369 = vsel %vm367, %v366, 0
        %vm371 = vcmask 1043456
        %v373 = vsel %vm371, %v360, 0
        %v376 = vsel %vm371, %v361, 0
        %378 = vmatpush.bf16.msra.mxu0 0
        %379 = vmatpush.bf16.msra.mxu0 0
        %380 = vmatpush.bf16.msra.mxu0 0
        %381 = vmatpush.bf16.msra.mxu0 0
        %382 = vmatpush.bf16.msra.mxu0 0
        %383 = vmatpush.bf16.msra.mxu0 0
        %384 = vmatpush.bf16.msra.mxu0 %v373
        %385 = vmatpush.bf16.msra.mxu0 %v358
        %386 = vmatmul.bf16.gmra.mxu0 %v369
        %v387 = vpop.f32.mrf.mxu0
        %v388 = vadd.f32 0.0, %v387
        %v389 = vpop.f32.mrf.mxu0
        %v390 = vadd.f32 0.0, %v389
        %391 = vdwg.mxu0
        %392 = vmatpush.bf16.msra.mxu0 0
        %393 = vmatpush.bf16.msra.mxu0 0
        %394 = vmatpush.bf16.msra.mxu0 0
        %395 = vmatpush.bf16.msra.mxu0 0
        %396 = vmatpush.bf16.msra.mxu0 0
        %397 = vmatpush.bf16.msra.mxu0 0
        %398 = vmatpush.bf16.msra.mxu0 %v376
        %399 = vmatpush.bf16.msra.mxu0 %v359
        %400 = vmatmul.bf16.gmra.mxu0 %v369
        %v401 = vpop.f32.mrf.mxu0
        %v402 = vadd.f32 0.0, %v401
        %v403 = vpop.f32.mrf.mxu0
        %v404 = vadd.f32 0.0, %v403
        %405 = vdwg.mxu0
        %v406 = vld [vmem:[%s4] sm:$0xff]
        %v407 = vld [vmem:[%s4 + $0x8] sm:$0xff]
        %409 = vset.pattern.permute.xlu0 0
        %410 = vperm.xlu0 %409, %v406
        %v411 = vpop.permute.xlu0 %410
        %414 = vset.pattern.permute.xlu0 0
        %415 = vperm.xlu0 %414, %v407
        %v416 = vpop.permute.xlu0 %415
        %v418 = vmul.f32 %v388, %v411
        %v419 = vmul.f32 %v402, %v411
        %v420 = vmul.f32 %v390, %v416
        %v421 = vmul.f32 %v404, %v416
        %v422 = vld [vmem:[%s5] sm:$0xff]
        %v423 = vld [vmem:[%s5 + $0x8] sm:$0xff]
        %425 = vset.pattern.permute.xlu0 0
        %426 = vperm.xlu0 %425, %v422
        %v427 = vpop.permute.xlu0 %426
        %430 = vset.pattern.permute.xlu0 0
        %431 = vperm.xlu0 %430, %v423
        %v432 = vpop.permute.xlu0 %431
        %v434 = vadd.f32 %v418, %v427
        %v435 = vadd.f32 %v419, %v427
        %v436 = vadd.f32 %v420, %v432
        %v437 = vadd.f32 %v421, %v432
        %v438 = vmax.f32 %v434, 0.0
        %v439 = vmax.f32 %v435, 0.0
        %v440 = vmax.f32 %v436, 0.0
        %v441 = vmax.f32 %v437, 0.0
        %v442 = vpack.c.bf16 %v439, %v438
        %v443 = vpack.c.bf16 %v441, %v440
        %444 = vst [vmem:[%s292] sm:$0xff] %v442
        %445 = vst [vmem:[%s292 + $0x8] sm:$0xff] %v443
        %s446 = sand.u32 %s157, 1
        %s447 = sand.u32 %s157, 1
        %s448 = smul.addr %s447, 16
        %s449 = scalar_lea.vmem [#allocation5], %s448
        // Predicated region
        $region72: #{densenet_forward.9} parent=62 // pred_check
          %p450 = pneg %p167
        $region73: #{densenet_forward.9} parent=62 // pred_check_branch
          %452 = sbr.rel (%p450) target = $region75
        $region74: #{densenet_forward.9} parent=62 // pred_region
          %s453 = smul.u32 2, %s18
          %s454 = smul.addr %s453, 4
          %s455 = scalar_lea.vmem %s6, %s454
          // Predicated region
          $region76: #{densenet_forward.9} parent=74 // pred_check
            _
          $region77: #{densenet_forward.9} parent=74 // pred_check_branch
            %457 = sbr.rel (0) target = $region79
          $region78: #{densenet_forward.9} parent=74 // pred_region
            // Predicated region
            $region80: #{densenet_forward.9} parent=78 // pred_check
              _
            $region81: #{densenet_forward.9} parent=78 // pred_check_branch
              %459 = sbr.rel (0) target = $region83
            $region82: #{densenet_forward.9} parent=78 // pred_region
              // Predicated region
              $region95: #{densenet_forward.9} parent=82 // pred_check
                _
              $region96: #{densenet_forward.9} parent=82 // pred_check_branch
                %477 = sbr.rel (0) target = $region98
              $region97: #{densenet_forward.9} parent=82 // pred_region
                loop: start=0, step=1, limit=1
                $region99: #{densenet_forward.9} parent=97 // loop_pre_header
                  _
                $region100: #{densenet_forward.9} parent=97 // loop_header
                  %s479 = sphi 0, %s483
                  %p480 = scmp.ge.s32.totalorder %s479, 1
                  %s484 = sphi %s449, %s449
                  %s485 = sphi %s455, %s455
                $region101: #{densenet_forward.9} parent=97 // loop_header_branch
                  %482 = sbr.rel (%p480) target = $region105
                $region102: #{densenet_forward.9} parent=97 // loop_body
                  %v486 = vld [vmem:[%s484] sm:$0xff]
                  %487 = vst [vmem:[%s485] sm:$0xff] %v486
                  %v488 = vld [vmem:[%s484 + $0x8] sm:$0xff]
                  %489 = vst [vmem:[%s485 + $0x10] sm:$0xff] %v488
                $region103: #{densenet_forward.9} parent=97 // loop_footer
                  %s483 = sadd.s32 1, %s479
                $region104: #{densenet_forward.9} parent=97 // loop_footer_branch
                  %478 = sbr.rel target = $region100
                $region105: #{densenet_forward.9} parent=97 // loop_exit
                  _
              $region98: #{densenet_forward.9} parent=82 // pred_fallthru
                _
              // Predicated region
              $region106: #{densenet_forward.9} parent=82 // pred_check
                _
              $region107: #{densenet_forward.9} parent=82 // pred_check_branch
                %491 = sbr.rel target = $region109
              $region108: #{densenet_forward.9} parent=82 // pred_region
                _
              $region109: #{densenet_forward.9} parent=82 // pred_fallthru
                _
            $region83: #{densenet_forward.9} parent=78 // pred_fallthru
              _
            // Predicated region
            $region84: #{densenet_forward.9} parent=78 // pred_check
              _
            $region85: #{densenet_forward.9} parent=78 // pred_check_branch
              %461 = sbr.rel target = $region87
            $region86: #{densenet_forward.9} parent=78 // pred_region
              %s463 = ssub.s32 256, 1
              loop: start=0, step=1, limit=1
              $region88: #{densenet_forward.9} parent=86 // loop_pre_header
                _
              $region89: #{densenet_forward.9} parent=86 // loop_header
                %s465 = sphi 0, %s469
                %p466 = scmp.ge.s32.totalorder %s465, 1
                %s470 = sphi %s449, %s449
                %s471 = sphi %s455, %s455
              $region90: #{densenet_forward.9} parent=86 // loop_header_branch
                %468 = sbr.rel (%p466) target = $region94
              $region91: #{densenet_forward.9} parent=86 // loop_body
                %v472 = vld [vmem:[%s470] sm:%s463]
                %473 = vst [vmem:[%s471] sm:%s463] %v472
                %v474 = vld [vmem:[%s470 + $0x8] sm:%s463]
                %475 = vst [vmem:[%s471 + $0x10] sm:%s463] %v474
              $region92: #{densenet_forward.9} parent=86 // loop_footer
                %s469 = sadd.s32 1, %s465
              $region93: #{densenet_forward.9} parent=86 // loop_footer_branch
                %464 = sbr.rel target = $region89
              $region94: #{densenet_forward.9} parent=86 // loop_exit
                _
            $region87: #{densenet_forward.9} parent=78 // pred_fallthru
              _
          $region79: #{densenet_forward.9} parent=74 // pred_fallthru
            _
          %492 = vnop
        $region75: #{densenet_forward.9} parent=62 // pred_fallthru
          _
      $region63: #{densenet_forward.9} parent=5 // pred_fallthru
        _
      %p493 = scmp.le.s32.totalorder 2, %s13
      // Predicated region
      $region110: #{densenet_forward.9} parent=5 // pred_check
        %p494 = pneg %p493
      $region111: #{densenet_forward.9} parent=5 // pred_check_branch
        %496 = sbr.rel (%p494) target = $region113
      $region112: #{densenet_forward.9} parent=5 // pred_region
        %s497 = ssub.s32 %s13, 2
        // Predicated region
        $region114: #{densenet_forward.9} parent=112 // pred_check
          %p498 = pneg %p173
        $region115: #{densenet_forward.9} parent=112 // pred_check_branch
          %500 = sbr.rel (%p498) target = $region117
        $region116: #{densenet_forward.9} parent=112 // pred_region
          %s501 = sand.u32 %s158, 1
          %s502 = sand.u32 %s158, 1
          %s503 = smul.addr %s502, 16
          %s504 = scalar_lea.vmem [#allocation5], %s503
        $region117: #{densenet_forward.9} parent=112 // pred_fallthru
          _
      $region113: #{densenet_forward.9} parent=5 // pred_fallthru
        _
    $region6: #{densenet_forward.9} parent=1 // loop_footer
      %s17 = sadd.s32 1, %s13
    $region7: #{densenet_forward.9} parent=1 // loop_footer_branch
      %12 = sbr.rel target = $region3
    $region8: #{densenet_forward.9} parent=1 // loop_exit
      _
    %505 = vsyncpa [#allocation4], 1
    %s506 = scalar_lea.sflag [#allocation4], 1
    %507 = vsyncpa %s506, 1

// kernel: densenet_forward.10
$region0: #{densenet_forward.10}
  #allocation0 [shape = 'u32[]', space=smem, size = 0x4, offset = 0x4, fixed_abs, tag = 'smem constant byte address 0x4 - core index']
  #allocation1 [shape = 'u32[72,128]{1,0:T(1,128)}', space=vmem, size = 0x9000, scoped, tag = 'internal scratch']
  %s0 = inlined_call_operand.vmem [shape: bf16[432,512], index: 0, kind: input, shape index: {}]
  %s1 = inlined_call_operand.vmem [shape: bf16[8,432], index: 1, kind: input, shape index: {}]
  %s2 = inlined_call_operand.vmem [shape: f32[32,512], index: 2, kind: input, shape index: {}, may-alias: {2,3}]
  %s3 = inlined_call_operand.vmem [shape: f32[32,512], index: 3, kind: output, shape index: {}, may-alias: {2,3}]
  %s4 = sld [smem:[#allocation0]]
  $region83: #{densenet_forward.10} parent=0
    _
  %s6 = ssub.s32 1, %s4
  %s7 = scalar_select 0, %s6, %s4
  $region1: #{densenet_forward.10} parent=0
    #allocation2 [shape = 'u8[442368]{0}', space=vmem, size = 0x6c000, scoped, tag = 'input window, operand 0']
    loop: start=0, step=1, limit=4
    $region2: #{densenet_forward.10} parent=1 // loop_pre_header
      _
    $region3: #{densenet_forward.10} parent=1 // loop_header
      %s9 = sphi 0, %s13
      %p10 = scmp.ge.s32.totalorder %s9, 4
      %s19 = sphi 0, %s21
      %s22 = sphi 0, %s19
      %s23 = sphi 0, %s22
      %s39 = sphi 0, %s23
      %s43 = sphi 0, %s43
      %s45 = sphi 0, %s43
      %s46 = sphi 0, %s45
      %s60 = sphi 0, %s46
      %s66 = sphi 0, %s68
      %s69 = sphi 0, %s66
      %s70 = sphi 0, %s69
      %s86 = sphi 0, %s70
      %s92 = sphi 0, %s94
      %s95 = sphi 0, %s92
      %s96 = sphi 0, %s95
      %s112 = sphi 0, %s96
    $region4: #{densenet_forward.10} parent=1 // loop_header_branch
      %12 = sbr.rel (%p10) target = $region8
    $region5: #{densenet_forward.10} parent=1 // loop_body
      %s14 = ssub.s32 %s9, 1
      %s15 = ssub.s32 %s9, 2
      %s16 = sadd.s32 %s9, 1
      %s17 = ssub.s32 %s9, %s16
      %p18 = scmp.eq.s32.totalorder %s17, 0
      %s20 = sadd.s32 %s19, 1
      %s21 = scalar_select %p18, %s19, %s20
      %p24 = pneg %p18
      %p25 = scmp.eq.s32.totalorder %s9, 1
      %p26 = por %p24, %p25
      %p27 = scmp.ne.s32.totalorder %s19, %s22
      %p28 = scmp.eq.s32.totalorder %s9, 0
      %p29 = por %p27, %p28
      %p30 = scmp.ne.s32.totalorder %s19, %s22
      %p31 = scmp.eq.s32.totalorder %s14, 1
      %p32 = por %p30, %p31
      %p33 = scmp.ne.s32.totalorder %s22, %s23
      %p34 = scmp.eq.s32.totalorder %s14, 0
      %p35 = por %p33, %p34
      %p36 = scmp.ne.s32.totalorder %s22, %s23
      %p37 = scmp.eq.s32.totalorder %s15, 1
      %p38 = por %p36, %p37
      %p40 = scmp.ne.s32.totalorder %s23, %s39
      %p41 = scmp.eq.s32.totalorder %s15, 0
      %p42 = por %p40, %p41
      %s44 = sadd.s32 %s43, 1
      %p47 = scmp.eq.s32.totalorder %s9, 1
      %p48 = scmp.ne.s32.totalorder %s43, %s45
      %p49 = scmp.eq.s32.totalorder %s9, 0
      %p50 = por %p48, %p49
      %p51 = scmp.ne.s32.totalorder %s43, %s45
      %p52 = scmp.eq.s32.totalorder %s14, 1
      %p53 = por %p51, %p52
      %p54 = scmp.ne.s32.totalorder %s45, %s46
      %p55 = scmp.eq.s32.totalorder %s14, 0
      %p56 = por %p54, %p55
      %p57 = scmp.ne.s32.totalorder %s45, %s46
      %p58 = scmp.eq.s32.totalorder %s15, 1
      %p59 = por %p57, %p58
      %p61 = scmp.ne.s32.totalorder %s46, %s60
      %p62 = scmp.eq.s32.totalorder %s15, 0
      %p63 = por %p61, %p62
      %s64 = ssub.s32 %s9, %s16
      %p65 = scmp.eq.s32.totalorder %s64, 0
      %s67 = sadd.s32 %s66, 1
      %s68 = scalar_select %p65, %s66, %s67
      %p71 = pneg %p65
      %p72 = scmp.eq.s32.totalorder %s9, 1
      %p73 = por %p71, %p72
      %p74 = scmp.ne.s32.totalorder %s66, %s69
      %p75 = scmp.eq.s32.totalorder %s9, 0
      %p76 = por %p74, %p75
      %p77 = scmp.ne.s32.totalorder %s66, %s69
      %p78 = scmp.eq.s32.totalorder %s14, 1
      %p79 = por %p77, %p78
      %p80 = scmp.ne.s32.totalorder %s69, %s70
      %p81 = scmp.eq.s32.totalorder %s14, 0
      %p82 = por %p80, %p81
      %p83 = scmp.ne.s32.totalorder %s69, %s70
      %p84 = scmp.eq.s32.totalorder %s15, 1
      %p85 = por %p83, %p84
      %p87 = scmp.ne.s32.totalorder %s70, %s86
      %p88 = scmp.eq.s32.totalorder %s15, 0
      %p89 = por %p87, %p88
      %s90 = ssub.s32 %s9, %s16
      %p91 = scmp.eq.s32.totalorder %s90, 0
      %s93 = sadd.s32 %s92, 1
      %s94 = scalar_select %p91, %s92, %s93
      %p97 = pneg %p91
      %p98 = scmp.eq.s32.totalorder %s9, 1
      %p99 = por %p97, %p98
      %p100 = scmp.ne.s32.totalorder %s92, %s95
      %p101 = scmp.eq.s32.totalorder %s9, 0
      %p102 = por %p100, %p101
      %p103 = scmp.ne.s32.totalorder %s92, %s95
      %p104 = scmp.eq.s32.totalorder %s14, 1
      %p105 = por %p103, %p104
      %p106 = scmp.ne.s32.totalorder %s95, %s96
      %p107 = scmp.eq.s32.totalorder %s14, 0
      %p108 = por %p106, %p107
      %p109 = scmp.ne.s32.totalorder %s95, %s96
      %p110 = scmp.eq.s32.totalorder %s15, 1
      %p111 = por %p109, %p110
      %p113 = scmp.ne.s32.totalorder %s96, %s112
      %p114 = scmp.eq.s32.totalorder %s15, 0
      %p115 = por %p113, %p114
      %p116 = scmp.le.s32.totalorder 1, %s9
      %p117 = scmp.lt.s32.totalorder %s9, 3
      %p118 = pnand %p116, %p117
      %p119 = pneg %p118
      // Predicated region
      $region9: #{densenet_forward.10} parent=5 // pred_check
        _
      $region10: #{densenet_forward.10} parent=5 // pred_check_branch
        %121 = sbr.rel (%p118) target = $region12
      $region11: #{densenet_forward.10} parent=5 // pred_region
        %s122 = ssub.s32 %s9, 1
        // Predicated region
        $region13: #{densenet_forward.10} parent=11 // pred_check
          %p123 = pneg %p56
        $region14: #{densenet_forward.10} parent=11 // pred_check_branch
          %125 = sbr.rel (%p123) target = $region16
        $region15: #{densenet_forward.10} parent=11 // pred_region
          _
        $region16: #{densenet_forward.10} parent=11 // pred_fallthru
          _
      $region12: #{densenet_forward.10} parent=5 // pred_fallthru
        _
      %p126 = scmp.lt.s32.totalorder %s9, 2
      // Predicated region
      $region17: #{densenet_forward.10} parent=5 // pred_check
        %p127 = pneg %p126
      $region18: #{densenet_forward.10} parent=5 // pred_check_branch
        %129 = sbr.rel (%p127) target = $region20
      $region19: #{densenet_forward.10} parent=5 // pred_region
        // Predicated region
        $region21: #{densenet_forward.10} parent=19 // pred_check
          %p130 = pneg %p29
        $region22: #{densenet_forward.10} parent=19 // pred_check_branch
          %132 = sbr.rel (%p130) target = $region24
        $region23: #{densenet_forward.10} parent=19 // pred_region
          %s133 = sand.u32 %s19, 1
          %s134 = sand.u32 %s19, 1
          %s135 = smul.addr %s134, 432
          %s136 = scalar_lea.vmem [#allocation2], %s135
          %s137 = smul.u32 2, %s9
          %s138 = smul.addr %s137, 4
          %s139 = scalar_lea.vmem %s0, %s138
          // Predicated region
          $region25: #{densenet_forward.10} parent=23 // pred_check
            _
          $region26: #{densenet_forward.10} parent=23 // pred_check_branch
            %141 = sbr.rel (0) target = $region28
          $region27: #{densenet_forward.10} parent=23 // pred_region
            // Predicated region
            $region29: #{densenet_forward.10} parent=27 // pred_check
              _
            $region30: #{densenet_forward.10} parent=27 // pred_check_branch
              %143 = sbr.rel (0) target = $region32
            $region31: #{densenet_forward.10} parent=27 // pred_region
              // Predicated region
              $region44: #{densenet_forward.10} parent=31 // pred_check
                _
              $region45: #{densenet_forward.10} parent=31 // pred_check_branch
                %265 = sbr.rel (0) target = $region47
              $region46: #{densenet_forward.10} parent=31 // pred_region
                loop: start=0, step=1, limit=1
                $region48: #{densenet_forward.10} parent=46 // loop_pre_header
                  _
                $region49: #{densenet_forward.10} parent=46 // loop_header
                  %s267 = sphi 0, %s271
                  %p268 = scmp.ge.s32.totalorder %s267, 1
                  %s272 = sphi %s139, %s139
                  %s273 = sphi %s136, %s136
                $region50: #{densenet_forward.10} parent=46 // loop_header_branch
                  %270 = sbr.rel (%p268) target = $region54
                $region51: #{densenet_forward.10} parent=46 // loop_body
                  %v274 = vld [vmem:[%s272] sm:$0xff]
                  %275 = vst [vmem:[%s273] sm:$0xff] %v274
                  %v276 = vld [vmem:[%s272 + $0x10] sm:$0xff]
                  %277 = vst [vmem:[%s273 + $0x8] sm:$0xff] %v276
                  %v278 = vld [vmem:[%s272 + $0x20] sm:$0xff]
                  %279 = vst [vmem:[%s273 + $0x10] sm:$0xff] %v278
                  %v280 = vld [vmem:[%s272 + $0x30] sm:$0xff]
                  %281 = vst [vmem:[%s273 + $0x18] sm:$0xff] %v280
                  %v282 = vld [vmem:[%s272 + $0x40] sm:$0xff]
                  %283 = vst [vmem:[%s273 + $0x20] sm:$0xff] %v282
                  %v284 = vld [vmem:[%s272 + $0x50] sm:$0xff]
                  %285 = vst [vmem:[%s273 + $0x28] sm:$0xff] %v284
                  %v286 = vld [vmem:[%s272 + $0x60] sm:$0xff]
                  %287 = vst [vmem:[%s273 + $0x30] sm:$0xff] %v286
                  %v288 = vld [vmem:[%s272 + $0x70] sm:$0xff]
                  %289 = vst [vmem:[%s273 + $0x38] sm:$0xff] %v288
                  %v290 = vld [vmem:[%s272 + $0x80] sm:$0xff]
                  %291 = vst [vmem:[%s273 + $0x40] sm:$0xff] %v290
                  %v292 = vld [vmem:[%s272 + $0x90] sm:$0xff]
                  %293 = vst [vmem:[%s273 + $0x48] sm:$0xff] %v292
                  %v294 = vld [vmem:[%s272 + $0xa0] sm:$0xff]
                  %295 = vst [vmem:[%s273 + $0x50] sm:$0xff] %v294
                  %v296 = vld [vmem:[%s272 + $0xb0] sm:$0xff]
                  %297 = vst [vmem:[%s273 + $0x58] sm:$0xff] %v296
                  %v298 = vld [vmem:[%s272 + $0xc0] sm:$0xff]
                  %299 = vst [vmem:[%s273 + $0x60] sm:$0xff] %v298
                  %v300 = vld [vmem:[%s272 + $0xd0] sm:$0xff]
                  %301 = vst [vmem:[%s273 + $0x68] sm:$0xff] %v300
                  %v302 = vld [vmem:[%s272 + $0xe0] sm:$0xff]
                  %303 = vst [vmem:[%s273 + $0x70] sm:$0xff] %v302
                  %v304 = vld [vmem:[%s272 + $0xf0] sm:$0xff]
                  %305 = vst [vmem:[%s273 + $0x78] sm:$0xff] %v304
                  %v306 = vld [vmem:[%s272 + $0x100] sm:$0xff]
                  %307 = vst [vmem:[%s273 + $0x80] sm:$0xff] %v306
                  %v308 = vld [vmem:[%s272 + $0x110] sm:$0xff]
                  %309 = vst [vmem:[%s273 + $0x88] sm:$0xff] %v308
                  %v310 = vld [vmem:[%s272 + $0x120] sm:$0xff]
                  %311 = vst [vmem:[%s273 + $0x90] sm:$0xff] %v310
                  %v312 = vld [vmem:[%s272 + $0x130] sm:$0xff]
                  %313 = vst [vmem:[%s273 + $0x98] sm:$0xff] %v312
                  %v314 = vld [vmem:[%s272 + $0x140] sm:$0xff]
                  %315 = vst [vmem:[%s273 + $0xa0] sm:$0xff] %v314
                  %v316 = vld [vmem:[%s272 + $0x150] sm:$0xff]
                  %317 = vst [vmem:[%s273 + $0xa8] sm:$0xff] %v316
                  %v318 = vld [vmem:[%s272 + $0x160] sm:$0xff]
                  %319 = vst [vmem:[%s273 + $0xb0] sm:$0xff] %v318
                  %v320 = vld [vmem:[%s272 + $0x170] sm:$0xff]
                  %321 = vst [vmem:[%s273 + $0xb8] sm:$0xff] %v320
                  %v322 = vld [vmem:[%s272 + $0x180] sm:$0xff]
                  %323 = vst [vmem:[%s273 + $0xc0] sm:$0xff] %v322
                  %v324 = vld [vmem:[%s272 + $0x190] sm:$0xff]
                  %325 = vst [vmem:[%s273 + $0xc8] sm:$0xff] %v324
                  %v326 = vld [vmem:[%s272 + $0x1a0] sm:$0xff]
                  %327 = vst [vmem:[%s273 + $0xd0] sm:$0xff] %v326
                  %v328 = vld [vmem:[%s272 + $0x1b0] sm:$0xff]
                  %329 = vst [vmem:[%s273 + $0xd8] sm:$0xff] %v328
                  %v330 = vld [vmem:[%s272 + $0x1c0] sm:$0xff]
                  %331 = vst [vmem:[%s273 + $0xe0] sm:$0xff] %v330
                  %v332 = vld [vmem:[%s272 + $0x1d0] sm:$0xff]
                  %333 = vst [vmem:[%s273 + $0xe8] sm:$0xff] %v332
                  %v334 = vld [vmem:[%s272 + $0x1e0] sm:$0xff]
                  %335 = vst [vmem:[%s273 + $0xf0] sm:$0xff] %v334
                  %v336 = vld [vmem:[%s272 + $0x1f0] sm:$0xff]
                  %337 = vst [vmem:[%s273 + $0xf8] sm:$0xff] %v336
                  %v338 = vld [vmem:[%s272 + $0x200] sm:$0xff]
                  %339 = vst [vmem:[%s273 + $0x100] sm:$0xff] %v338
                  %v340 = vld [vmem:[%s272 + $0x210] sm:$0xff]
                  %341 = vst [vmem:[%s273 + $0x108] sm:$0xff] %v340
                  %v342 = vld [vmem:[%s272 + $0x220] sm:$0xff]
                  %343 = vst [vmem:[%s273 + $0x110] sm:$0xff] %v342
                  %v344 = vld [vmem:[%s272 + $0x230] sm:$0xff]
                  %345 = vst [vmem:[%s273 + $0x118] sm:$0xff] %v344
                  %v346 = vld [vmem:[%s272 + $0x240] sm:$0xff]
                  %347 = vst [vmem:[%s273 + $0x120] sm:$0xff] %v346
                  %v348 = vld [vmem:[%s272 + $0x250] sm:$0xff]
                  %349 = vst [vmem:[%s273 + $0x128] sm:$0xff] %v348
                  %v350 = vld [vmem:[%s272 + $0x260] sm:$0xff]
                  %351 = vst [vmem:[%s273 + $0x130] sm:$0xff] %v350
                  %v352 = vld [vmem:[%s272 + $0x270] sm:$0xff]
                  %353 = vst [vmem:[%s273 + $0x138] sm:$0xff] %v352
                  %v354 = vld [vmem:[%s272 + $0x280] sm:$0xff]
                  %355 = vst [vmem:[%s273 + $0x140] sm:$0xff] %v354
                  %v356 = vld [vmem:[%s272 + $0x290] sm:$0xff]
                  %357 = vst [vmem:[%s273 + $0x148] sm:$0xff] %v356
                  %v358 = vld [vmem:[%s272 + $0x2a0] sm:$0xff]
                  %359 = vst [vmem:[%s273 + $0x150] sm:$0xff] %v358
                  %v360 = vld [vmem:[%s272 + $0x2b0] sm:$0xff]
                  %361 = vst [vmem:[%s273 + $0x158] sm:$0xff] %v360
                  %v362 = vld [vmem:[%s272 + $0x2c0] sm:$0xff]
                  %363 = vst [vmem:[%s273 + $0x160] sm:$0xff] %v362
                  %v364 = vld [vmem:[%s272 + $0x2d0] sm:$0xff]
                  %365 = vst [vmem:[%s273 + $0x168] sm:$0xff] %v364
                  %v366 = vld [vmem:[%s272 + $0x2e0] sm:$0xff]
                  %367 = vst [vmem:[%s273 + $0x170] sm:$0xff] %v366
                  %v368 = vld [vmem:[%s272 + $0x2f0] sm:$0xff]
                  %369 = vst [vmem:[%s273 + $0x178] sm:$0xff] %v368
                  %v370 = vld [vmem:[%s272 + $0x300] sm:$0xff]
                  %371 = vst [vmem:[%s273 + $0x180] sm:$0xff] %v370
                  %v372 = vld [vmem:[%s272 + $0x310] sm:$0xff]
                  %373 = vst [vmem:[%s273 + $0x188] sm:$0xff] %v372
                  %v374 = vld [vmem:[%s272 + $0x320] sm:$0xff]
                  %375 = vst [vmem:[%s273 + $0x190] sm:$0xff] %v374
                  %v376 = vld [vmem:[%s272 + $0x330] sm:$0xff]
                  %377 = vst [vmem:[%s273 + $0x198] sm:$0xff] %v376
                  %v378 = vld [vmem:[%s272 + $0x340] sm:$0xff]
                  %379 = vst [vmem:[%s273 + $0x1a0] sm:$0xff] %v378
                  %v380 = vld [vmem:[%s272 + $0x350] sm:$0xff]
                  %381 = vst [vmem:[%s273 + $0x1a8] sm:$0xff] %v380
                $region52: #{densenet_forward.10} parent=46 // loop_footer
                  %s271 = sadd.s32 1, %s267
                $region53: #{densenet_forward.10} parent=46 // loop_footer_branch
                  %266 = sbr.rel target = $region49
                $region54: #{densenet_forward.10} parent=46 // loop_exit
                  _
              $region47: #{densenet_forward.10} parent=31 // pred_fallthru
                _
              // Predicated region
              $region55: #{densenet_forward.10} parent=31 // pred_check
                _
              $region56: #{densenet_forward.10} parent=31 // pred_check_branch
                %383 = sbr.rel target = $region58
              $region57: #{densenet_forward.10} parent=31 // pred_region
                _
              $region58: #{densenet_forward.10} parent=31 // pred_fallthru
                _
            $region32: #{densenet_forward.10} parent=27 // pred_fallthru
              _
            // Predicated region
            $region33: #{densenet_forward.10} parent=27 // pred_check
              _
            $region34: #{densenet_forward.10} parent=27 // pred_check_branch
              %145 = sbr.rel target = $region36
            $region35: #{densenet_forward.10} parent=27 // pred_region
              %s147 = ssub.s32 256, 1
              loop: start=0, step=1, limit=1
              $region37: #{densenet_forward.10} parent=35 // loop_pre_header
                _
              $region38: #{densenet_forward.10} parent=35 // loop_header
                %s149 = sphi 0, %s153
                %p150 = scmp.ge.s32.totalorder %s149, 1
                %s154 = sphi %s139, %s139
                %s155 = sphi %s136, %s136
              $region39: #{densenet_forward.10} parent=35 // loop_header_branch
                %152 = sbr.rel (%p150) target = $region43
              $region40: #{densenet_forward.10} parent=35 // loop_body
                %v156 = vld [vmem:[%s154] sm:%s147]
                %157 = vst [vmem:[%s155] sm:%s147] %v156
                %v158 = vld [vmem:[%s154 + $0x10] sm:%s147]
                %159 = vst [vmem:[%s155 + $0x8] sm:%s147] %v158
                %v160 = vld [vmem:[%s154 + $0x20] sm:%s147]
                %161 = vst [vmem:[%s155 + $0x10] sm:%s147] %v160
                %v162 = vld [vmem:[%s154 + $0x30] sm:%s147]
                %163 = vst [vmem:[%s155 + $0x18] sm:%s147] %v162
                %v164 = vld [vmem:[%s154 + $0x40] sm:%s147]
                %165 = vst [vmem:[%s155 + $0x20] sm:%s147] %v164
                %v166 = vld [vmem:[%s154 + $0x50] sm:%s147]
                %167 = vst [vmem:[%s155 + $0x28] sm:%s147] %v166
                %v168 = vld [vmem:[%s154 + $0x60] sm:%s147]
                %169 = vst [vmem:[%s155 + $0x30] sm:%s147] %v168
                %v170 = vld [vmem:[%s154 + $0x70] sm:%s147]
                %171 = vst [vmem:[%s155 + $0x38] sm:%s147] %v170
                %v172 = vld [vmem:[%s154 + $0x80] sm:%s147]
                %173 = vst [vmem:[%s155 + $0x40] sm:%s147] %v172
                %v174 = vld [vmem:[%s154 + $0x90] sm:%s147]
                %175 = vst [vmem:[%s155 + $0x48] sm:%s147] %v174
                %v176 = vld [vmem:[%s154 + $0xa0] sm:%s147]
                %177 = vst [vmem:[%s155 + $0x50] sm:%s147] %v176
                %v178 = vld [vmem:[%s154 + $0xb0] sm:%s147]
                %179 = vst [vmem:[%s155 + $0x58] sm:%s147] %v178
                %v180 = vld [vmem:[%s154 + $0xc0] sm:%s147]
                %181 = vst [vmem:[%s155 + $0x60] sm:%s147] %v180
                %v182 = vld [vmem:[%s154 + $0xd0] sm:%s147]
                %183 = vst [vmem:[%s155 + $0x68] sm:%s147] %v182
                %v184 = vld [vmem:[%s154 + $0xe0] sm:%s147]
                %185 = vst [vmem:[%s155 + $0x70] sm:%s147] %v184
                %v186 = vld [vmem:[%s154 + $0xf0] sm:%s147]
                %187 = vst [vmem:[%s155 + $0x78] sm:%s147] %v186
                %v188 = vld [vmem:[%s154 + $0x100] sm:%s147]
                %189 = vst [vmem:[%s155 + $0x80] sm:%s147] %v188
                %v190 = vld [vmem:[%s154 + $0x110] sm:%s147]
                %191 = vst [vmem:[%s155 + $0x88] sm:%s147] %v190
                %v192 = vld [vmem:[%s154 + $0x120] sm:%s147]
                %193 = vst [vmem:[%s155 + $0x90] sm:%s147] %v192
                %v194 = vld [vmem:[%s154 + $0x130] sm:%s147]
                %195 = vst [vmem:[%s155 + $0x98] sm:%s147] %v194
                %v196 = vld [vmem:[%s154 + $0x140] sm:%s147]
                %197 = vst [vmem:[%s155 + $0xa0] sm:%s147] %v196
                %v198 = vld [vmem:[%s154 + $0x150] sm:%s147]
                %199 = vst [vmem:[%s155 + $0xa8] sm:%s147] %v198
                %v200 = vld [vmem:[%s154 + $0x160] sm:%s147]
                %201 = vst [vmem:[%s155 + $0xb0] sm:%s147] %v200
                %v202 = vld [vmem:[%s154 + $0x170] sm:%s147]
                %203 = vst [vmem:[%s155 + $0xb8] sm:%s147] %v202
                %v204 = vld [vmem:[%s154 + $0x180] sm:%s147]
                %205 = vst [vmem:[%s155 + $0xc0] sm:%s147] %v204
                %v206 = vld [vmem:[%s154 + $0x190] sm:%s147]
                %207 = vst [vmem:[%s155 + $0xc8] sm:%s147] %v206
                %v208 = vld [vmem:[%s154 + $0x1a0] sm:%s147]
                %209 = vst [vmem:[%s155 + $0xd0] sm:%s147] %v208
                %v210 = vld [vmem:[%s154 + $0x1b0] sm:%s147]
                %211 = vst [vmem:[%s155 + $0xd8] sm:%s147] %v210
                %v212 = vld [vmem:[%s154 + $0x1c0] sm:%s147]
                %213 = vst [vmem:[%s155 + $0xe0] sm:%s147] %v212
                %v214 = vld [vmem:[%s154 + $0x1d0] sm:%s147]
                %215 = vst [vmem:[%s155 + $0xe8] sm:%s147] %v214
                %v216 = vld [vmem:[%s154 + $0x1e0] sm:%s147]
                %217 = vst [vmem:[%s155 + $0xf0] sm:%s147] %v216
                %v218 = vld [vmem:[%s154 + $0x1f0] sm:%s147]
                %219 = vst [vmem:[%s155 + $0xf8] sm:%s147] %v218
                %v220 = vld [vmem:[%s154 + $0x200] sm:%s147]
                %221 = vst [vmem:[%s155 + $0x100] sm:%s147] %v220
                %v222 = vld [vmem:[%s154 + $0x210] sm:%s147]
                %223 = vst [vmem:[%s155 + $0x108] sm:%s147] %v222
                %v224 = vld [vmem:[%s154 + $0x220] sm:%s147]
                %225 = vst [vmem:[%s155 + $0x110] sm:%s147] %v224
                %v226 = vld [vmem:[%s154 + $0x230] sm:%s147]
                %227 = vst [vmem:[%s155 + $0x118] sm:%s147] %v226
                %v228 = vld [vmem:[%s154 + $0x240] sm:%s147]
                %229 = vst [vmem:[%s155 + $0x120] sm:%s147] %v228
                %v230 = vld [vmem:[%s154 + $0x250] sm:%s147]
                %231 = vst [vmem:[%s155 + $0x128] sm:%s147] %v230
                %v232 = vld [vmem:[%s154 + $0x260] sm:%s147]
                %233 = vst [vmem:[%s155 + $0x130] sm:%s147] %v232
                %v234 = vld [vmem:[%s154 + $0x270] sm:%s147]
                %235 = vst [vmem:[%s155 + $0x138] sm:%s147] %v234
                %v236 = vld [vmem:[%s154 + $0x280] sm:%s147]
                %237 = vst [vmem:[%s155 + $0x140] sm:%s147] %v236
                %v238 = vld [vmem:[%s154 + $0x290] sm:%s147]
                %239 = vst [vmem:[%s155 + $0x148] sm:%s147] %v238
                %v240 = vld [vmem:[%s154 + $0x2a0] sm:%s147]
                %241 = vst [vmem:[%s155 + $0x150] sm:%s147] %v240
                %v242 = vld [vmem:[%s154 + $0x2b0] sm:%s147]
                %243 = vst [vmem:[%s155 + $0x158] sm:%s147] %v242
                %v244 = vld [vmem:[%s154 + $0x2c0] sm:%s147]
                %245 = vst [vmem:[%s155 + $0x160] sm:%s147] %v244
                %v246 = vld [vmem:[%s154 + $0x2d0] sm:%s147]
                %247 = vst [vmem:[%s155 + $0x168] sm:%s147] %v246
                %v248 = vld [vmem:[%s154 + $0x2e0] sm:%s147]
                %249 = vst [vmem:[%s155 + $0x170] sm:%s147] %v248
                %v250 = vld [vmem:[%s154 + $0x2f0] sm:%s147]
                %251 = vst [vmem:[%s155 + $0x178] sm:%s147] %v250
                %v252 = vld [vmem:[%s154 + $0x300] sm:%s147]
                %253 = vst [vmem:[%s155 + $0x180] sm:%s147] %v252
                %v254 = vld [vmem:[%s154 + $0x310] sm:%s147]
                %255 = vst [vmem:[%s155 + $0x188] sm:%s147] %v254
                %v256 = vld [vmem:[%s154 + $0x320] sm:%s147]
                %257 = vst [vmem:[%s155 + $0x190] sm:%s147] %v256
                %v258 = vld [vmem:[%s154 + $0x330] sm:%s147]
                %259 = vst [vmem:[%s155 + $0x198] sm:%s147] %v258
                %v260 = vld [vmem:[%s154 + $0x340] sm:%s147]
                %261 = vst [vmem:[%s155 + $0x1a0] sm:%s147] %v260
                %v262 = vld [vmem:[%s154 + $0x350] sm:%s147]
                %263 = vst [vmem:[%s155 + $0x1a8] sm:%s147] %v262
              $region41: #{densenet_forward.10} parent=35 // loop_footer
                %s153 = sadd.s32 1, %s149
              $region42: #{densenet_forward.10} parent=35 // loop_footer_branch
                %148 = sbr.rel target = $region38
              $region43: #{densenet_forward.10} parent=35 // loop_exit
                _
            $region36: #{densenet_forward.10} parent=27 // pred_fallthru
              _
          $region28: #{densenet_forward.10} parent=23 // pred_fallthru
            _
          %384 = vnop
        $region24: #{densenet_forward.10} parent=19 // pred_fallthru
          _
        // Predicated region
        $region59: #{densenet_forward.10} parent=19 // pred_check
          %p385 = pneg %p76
        $region60: #{densenet_forward.10} parent=19 // pred_check_branch
          %387 = sbr.rel (%p385) target = $region62
        $region61: #{densenet_forward.10} parent=19 // pred_region
          %s388 = smul.u32 2, %s9
          %p389 = scmp.lt.s32.totalorder %s388, 3
          %s390 = scalar_select %p389, %s388, 3
          %s391 = sadd.s32 %s390, 12
          %s392 = smul.addr %s391, 8
          %s393 = scalar_lea.vmem %s2, %s392
          %s394 = smul.u32 2, %s9
        $region62: #{densenet_forward.10} parent=19 // pred_fallthru
          _
      $region20: #{densenet_forward.10} parent=5 // pred_fallthru
        _
      %p395 = scmp.le.s32.totalorder 1, %s9
      %p396 = scmp.lt.s32.totalorder %s9, 3
      %p397 = pnand %p395, %p396
      %p398 = pneg %p397
      // Predicated region
      $region63: #{densenet_forward.10} parent=5 // pred_check
        _
      $region64: #{densenet_forward.10} parent=5 // pred_check_branch
        %400 = sbr.rel (%p397) target = $region66
      $region65: #{densenet_forward.10} parent=5 // pred_region
        %s401 = ssub.s32 %s9, 1
        %s402 = sand.u32 %s22, 1
        %s403 = sand.u32 %s22, 1
        %s404 = smul.addr %s403, 432
        %s405 = scalar_lea.vmem [#allocation2], %s404
        // Predicated region
        $region67: #{densenet_forward.10} parent=65 // pred_check
          %p406 = pneg %p35
        $region68: #{densenet_forward.10} parent=65 // pred_check_branch
          %408 = sbr.rel (%p406) target = $region70
        $region69: #{densenet_forward.10} parent=65 // pred_region
          _
        $region70: #{densenet_forward.10} parent=65 // pred_fallthru
          _
        %s409 = sand.u32 %s22, 1
        %s410 = sand.u32 %s22, 1
        %s411 = smul.addr %s410, 432
        %s412 = scalar_lea.vmem [#allocation2], %s411
        %p413 = pneg %p35
        %p414 = pneg %p32
        %p415 = pneg %p56
        %p416 = pneg %p53
        %s417 = smul.u32 2, %s14
        %p418 = scmp.lt.s32.totalorder %s417, 3
        %s419 = scalar_select %p418, %s417, 3
        %s420 = sadd.s32 %s419, 12
        %s421 = smul.addr %s420, 8
        %s422 = scalar_lea.vmem %s2, %s421
        %p423 = pneg %p82
        %p424 = pneg %p79
        %p425 = pneg %p108
        %p426 = pneg %p105
        %s427 = smul.u32 2, %s14
        %p428 = scmp.lt.s32.totalorder %s427, 3
        %s429 = scalar_select %p428, %s427, 3
        %s430 = sadd.s32 %s429, 12
        %s431 = smul.addr %s430, 8
        %s432 = scalar_lea.vmem %s3, %s431
        %s433 = smul.u32 2, %s14
        %s434 = smul.u32 2, %s14
        %p435 = scmp.lt.s32.totalorder %s434, 3
        %s436 = scalar_select %p435, %s434, 3
        %s437 = sadd.s32 %s436, 12
        %s438 = smul.addr %s437, 8
        %s439 = scalar_lea.vmem %s2, %s438
        %s440 = smul.u32 2, %s14
        %s441 = smul.u32 2, %s14
        %p442 = scmp.lt.s32.totalorder %s441, 3
        %s443 = scalar_select %p442, %s441, 3
        %s444 = sadd.s32 %s443, 12
        %s445 = smul.addr %s444, 8
        %s446 = scalar_lea.vmem %s3, %s445
        %s447 = smul.u32 2, %s14
        %v449 = vld [vmem:[%s405] sm:$0xff]
        %v450 = vld [vmem:[%s405 + $0x8] sm:$0xff]
        %v451 = vld [vmem:[%s405 + $0x10] sm:$0xff]
        %v452 = vld [vmem:[%s405 + $0x18] sm:$0xff]
        %v453 = vld [vmem:[%s405 + $0x20] sm:$0xff]
        %v454 = vld [vmem:[%s405 + $0x28] sm:$0xff]
        %v455 = vld [vmem:[%s405 + $0x30] sm:$0xff]
        %v456 = vld [vmem:[%s405 + $0x38] sm:$0xff]
        %v457 = vld [vmem:[%s405 + $0x40] sm:$0xff]
        %v458 = vld [vmem:[%s405 + $0x48] sm:$0xff]
        %v459 = vld [vmem:[%s405 + $0x50] sm:$0xff]
        %v460 = vld [vmem:[%s405 + $0x58] sm:$0xff]
        %v461 = vld [vmem:[%s405 + $0x60] sm:$0xff]
        %v462 = vld [vmem:[%s405 + $0x68] sm:$0xff]
        %v463 = vld [vmem:[%s405 + $0x70] sm:$0xff]
        %v464 = vld [vmem:[%s405 + $0x78] sm:$0xff]
        %v465 = vld [vmem:[%s405 + $0x80] sm:$0xff]
        %v466 = vld [vmem:[%s405 + $0x88] sm:$0xff]
        %v467 = vld [vmem:[%s405 + $0x90] sm:$0xff]
        %v468 = vld [vmem:[%s405 + $0x98] sm:$0xff]
        %v469 = vld [vmem:[%s405 + $0xa0] sm:$0xff]
        %v470 = vld [vmem:[%s405 + $0xa8] sm:$0xff]
        %v471 = vld [vmem:[%s405 + $0xb0] sm:$0xff]
        %v472 = vld [vmem:[%s405 + $0xb8] sm:$0xff]
        %v473 = vld [vmem:[%s405 + $0xc0] sm:$0xff]
        %v474 = vld [vmem:[%s405 + $0xc8] sm:$0xff]
        %v475 = vld [vmem:[%s405 + $0xd0] sm:$0xff]
        %v476 = vld [vmem:[%s405 + $0xd8] sm:$0xff]
        %v477 = vld [vmem:[%s405 + $0xe0] sm:$0xff]
        %v478 = vld [vmem:[%s405 + $0xe8] sm:$0xff]
        %v479 = vld [vmem:[%s405 + $0xf0] sm:$0xff]
        %v480 = vld [vmem:[%s405 + $0xf8] sm:$0xff]
        %v481 = vld [vmem:[%s405 + $0x100] sm:$0xff]
        %v482 = vld [vmem:[%s405 + $0x108] sm:$0xff]
        %v483 = vld [vmem:[%s405 + $0x110] sm:$0xff]
        %v484 = vld [vmem:[%s405 + $0x118] sm:$0xff]
        %v485 = vld [vmem:[%s405 + $0x120] sm:$0xff]
        %v486 = vld [vmem:[%s405 + $0x128] sm:$0xff]
        %v487 = vld [vmem:[%s405 + $0x130] sm:$0xff]
        %v488 = vld [vmem:[%s405 + $0x138] sm:$0xff]
        %v489 = vld [vmem:[%s405 + $0x140] sm:$0xff]
        %v490 = vld [vmem:[%s405 + $0x148] sm:$0xff]
        %v491 = vld [vmem:[%s405 + $0x150] sm:$0xff]
        %v492 = vld [vmem:[%s405 + $0x158] sm:$0xff]
        %v493 = vld [vmem:[%s405 + $0x160] sm:$0xff]
        %v494 = vld [vmem:[%s405 + $0x168] sm:$0xff]
        %v495 = vld [vmem:[%s405 + $0x170] sm:$0xff]
        %v496 = vld [vmem:[%s405 + $0x178] sm:$0xff]
        %v497 = vld [vmem:[%s405 + $0x180] sm:$0xff]
        %v498 = vld [vmem:[%s405 + $0x188] sm:$0xff]
        %v499 = vld [vmem:[%s405 + $0x190] sm:$0xff]
        %v500 = vld [vmem:[%s405 + $0x198] sm:$0xff]
        %v501 = vld [vmem:[%s405 + $0x1a0] sm:$0xff]
        %v502 = vld [vmem:[%s405 + $0x1a8] sm:$0xff]
        %v503 = vld [vmem:[%s1] sm:$0xff]
        %v504 = vld [vmem:[%s1 + $0x8] sm:$0xff]
        %v507 = vunpack.c.l.b16 %v503
        %v508 = vunpack.c.h.b16 %v503
        %v509 = vunpack.c.l.b16 %v504
        %v510 = vunpack.c.h.b16 %v504
        %v511 = vpack.c.b16 %v507, %v507
        %v512 = vpack.c.b16 %v508, %v508
        %v513 = vpack.c.b16 %v509, %v509
        %v514 = vpack.c.b16 %v510, %v510
        %v572 = vunpack.c.l.b16 %v449
        %v573 = vunpack.c.h.b16 %v449
        %v574 = vunpack.c.l.b16 %v450
        %v575 = vunpack.c.h.b16 %v450
        %v576 = vunpack.c.l.b16 %v451
        %v577 = vunpack.c.h.b16 %v451
        %v578 = vunpack.c.l.b16 %v452
        %v579 = vunpack.c.h.b16 %v452
        %v580 = vunpack.c.l.b16 %v453
        %v581 = vunpack.c.h.b16 %v453
        %v582 = vunpack.c.l.b16 %v454
        %v583 = vunpack.c.h.b16 %v454
        %v584 = vunpack.c.l.b16 %v455
        %v585 = vunpack.c.h.b16 %v455
        %v586 = vunpack.c.l.b16 %v456
        %v587 = vunpack.c.h.b16 %v456
        %v588 = vunpack.c.l.b16 %v457
        %v589 = vunpack.c.h.b16 %v457
        %v590 = vunpack.c.l.b16 %v458
        %v591 = vunpack.c.h.b16 %v458
        %v592 = vunpack.c.l.b16 %v459
        %v593 = vunpack.c.h.b16 %v459
        %v594 = vunpack.c.l.b16 %v460
        %v595 = vunpack.c.h.b16 %v460
        %v596 = vunpack.c.l.b16 %v461
        %v597 = vunpack.c.h.b16 %v461
        %v598 = vunpack.c.l.b16 %v462
        %v599 = vunpack.c.h.b16 %v462
        %v600 = vunpack.c.l.b16 %v463
        %v601 = vunpack.c.h.b16 %v463
        %v602 = vunpack.c.l.b16 %v464
        %v603 = vunpack.c.h.b16 %v464
        %v604 = vunpack.c.l.b16 %v465
        %v605 = vunpack.c.h.b16 %v465
        %v606 = vunpack.c.l.b16 %v466
        %v607 = vunpack.c.h.b16 %v466
        %v608 = vunpack.c.l.b16 %v467
        %v609 = vunpack.c.h.b16 %v467
        %v610 = vunpack.c.l.b16 %v468
        %v611 = vunpack.c.h.b16 %v468
        %v612 = vunpack.c.l.b16 %v469
        %v613 = vunpack.c.h.b16 %v469
        %v614 = vunpack.c.l.b16 %v470
        %v615 = vunpack.c.h.b16 %v470
        %v616 = vunpack.c.l.b16 %v471
        %v617 = vunpack.c.h.b16 %v471
        %v618 = vunpack.c.l.b16 %v472
        %v619 = vunpack.c.h.b16 %v472
        %v620 = vunpack.c.l.b16 %v473
        %v621 = vunpack.c.h.b16 %v473
        %v622 = vunpack.c.l.b16 %v474
        %v623 = vunpack.c.h.b16 %v474
        %v624 = vunpack.c.l.b16 %v475
        %v625 = vunpack.c.h.b16 %v475
        %v626 = vunpack.c.l.b16 %v476
        %v627 = vunpack.c.h.b16 %v476
        %v628 = vunpack.c.l.b16 %v477
        %v629 = vunpack.c.h.b16 %v477
        %v630 = vunpack.c.l.b16 %v478
        %v631 = vunpack.c.h.b16 %v478
        %v632 = vunpack.c.l.b16 %v479
        %v633 = vunpack.c.h.b16 %v479
        %v634 = vunpack.c.l.b16 %v480
        %v635 = vunpack.c.h.b16 %v480
        %v636 = vunpack.c.l.b16 %v481
        %v637 = vunpack.c.h.b16 %v481
        %v638 = vunpack.c.l.b16 %v482
        %v639 = vunpack.c.h.b16 %v482
        %v640 = vunpack.c.l.b16 %v483
        %v641 = vunpack.c.h.b16 %v483
        %v642 = vunpack.c.l.b16 %v484
        %v643 = vunpack.c.h.b16 %v484
        %v644 = vunpack.c.l.b16 %v485
        %v645 = vunpack.c.h.b16 %v485
        %v646 = vunpack.c.l.b16 %v486
        %v647 = vunpack.c.h.b16 %v486
        %v648 = vunpack.c.l.b16 %v487
        %v649 = vunpack.c.h.b16 %v487
        %v650 = vunpack.c.l.b16 %v488
        %v651 = vunpack.c.h.b16 %v488
        %v652 = vunpack.c.l.b16 %v489
        %v653 = vunpack.c.h.b16 %v489
        %v654 = vunpack.c.l.b16 %v490
        %v655 = vunpack.c.h.b16 %v490
        %v656 = vunpack.c.l.b16 %v491
        %v657 = vunpack.c.h.b16 %v491
        %v658 = vunpack.c.l.b16 %v492
        %v659 = vunpack.c.h.b16 %v492
        %v660 = vunpack.c.l.b16 %v493
        %v661 = vunpack.c.h.b16 %v493
        %v662 = vunpack.c.l.b16 %v494
        %v663 = vunpack.c.h.b16 %v494
        %v664 = vunpack.c.l.b16 %v495
        %v665 = vunpack.c.h.b16 %v495
        %v666 = vunpack.c.l.b16 %v496
        %v667 = vunpack.c.h.b16 %v496
        %v668 = vunpack.c.l.b16 %v497
        %v669 = vunpack.c.h.b16 %v497
        %v670 = vunpack.c.l.b16 %v498
        %v671 = vunpack.c.h.b16 %v498
        %v672 = vunpack.c.l.b16 %v499
        %v673 = vunpack.c.h.b16 %v499
        %v674 = vunpack.c.l.b16 %v500
        %v675 = vunpack.c.h.b16 %v500
        %v676 = vunpack.c.l.b16 %v501
        %v677 = vunpack.c.h.b16 %v501
        %v678 = vunpack.c.l.b16 %v502
        %v679 = vunpack.c.h.b16 %v502
        %v680 = vpack.c.b16 %v574, %v572
        %v681 = vpack.c.b16 %v575, %v573
        %v682 = vpack.c.b16 %v578, %v576
        %v683 = vpack.c.b16 %v579, %v577
        %v684 = vpack.c.b16 %v582, %v580
        %v685 = vpack.c.b16 %v583, %v581
        %v686 = vpack.c.b16 %v586, %v584
        %v687 = vpack.c.b16 %v587, %v585
        %v688 = vpack.c.b16 %v590, %v588
        %v689 = vpack.c.b16 %v591, %v589
        %v690 = vpack.c.b16 %v594, %v592
        %v691 = vpack.c.b16 %v595, %v593
        %v692 = vpack.c.b16 %v598, %v596
        %v693 = vpack.c.b16 %v599, %v597
        %v694 = vpack.c.b16 %v602, %v600
        %v695 = vpack.c.b16 %v603, %v601
        %v696 = vpack.c.b16 %v606, %v604
        %v697 = vpack.c.b16 %v607, %v605
        %v698 = vpack.c.b16 %v610, %v608
        %v699 = vpack.c.b16 %v611, %v609
        %v700 = vpack.c.b16 %v614, %v612
        %v701 = vpack.c.b16 %v615, %v613
        %v702 = vpack.c.b16 %v618, %v616
        %v703 = vpack.c.b16 %v619, %v617
        %v704 = vpack.c.b16 %v622, %v620
        %v705 = vpack.c.b16 %v623, %v621
        %v706 = vpack.c.b16 %v626, %v624
        %v707 = vpack.c.b16 %v627, %v625
        %v708 = vpack.c.b16 %v630, %v628
        %v709 = vpack.c.b16 %v631, %v629
        %v710 = vpack.c.b16 %v634, %v632
        %v711 = vpack.c.b16 %v635, %v633
        %v712 = vpack.c.b16 %v638, %v636
        %v713 = vpack.c.b16 %v639, %v637
        %v714 = vpack.c.b16 %v642, %v640
        %v715 = vpack.c.b16 %v643, %v641
        %v716 = vpack.c.b16 %v646, %v644
        %v717 = vpack.c.b16 %v647, %v645
        %v718 = vpack.c.b16 %v650, %v648
        %v719 = vpack.c.b16 %v651, %v649
        %v720 = vpack.c.b16 %v654, %v652
        %v721 = vpack.c.b16 %v655, %v653
        %v722 = vpack.c.b16 %v658, %v656
        %v723 = vpack.c.b16 %v659, %v657
        %v724 = vpack.c.b16 %v662, %v660
        %v725 = vpack.c.b16 %v663, %v661
        %v726 = vpack.c.b16 %v666, %v664
        %v727 = vpack.c.b16 %v667, %v665
        %v728 = vpack.c.b16 %v670, %v668
        %v729 = vpack.c.b16 %v671, %v669
        %v730 = vpack.c.b16 %v674, %v672
        %v731 = vpack.c.b16 %v675, %v673
        %v732 = vpack.c.b16 %v678, %v676
        %v733 = vpack.c.b16 %v679, %v677
        %vm788 = vcmask 392192
        %v790 = vsel %vm788, %v514, 0
        %792 = vmatpush.bf16.msra.mxu0 %v694
        %793 = vmatpush.bf16.msra.mxu0 %v692
        %794 = vmatpush.bf16.msra.mxu0 %v690
        %795 = vmatpush.bf16.msra.mxu0 %v688
        %796 = vmatpush.bf16.msra.mxu0 %v686
        %797 = vmatpush.bf16.msra.mxu0 %v684
        %798 = vmatpush.bf16.msra.mxu0 %v682
        %799 = vmatpush.bf16.msra.mxu0 %v680
        %800 = vmatmul.bf16.gmra.mxu0 %v511
        %v801 = vpop.f32.mrf.mxu0
        %v802 = vadd.f32 0.0, %v801
        %v803 = vpop.f32.mrf.mxu0
        %804 = vdwg.mxu0
        %805 = vmatpush.bf16.msra.mxu0 %v710
        %806 = vmatpush.bf16.msra.mxu0 %v708
        %807 = vmatpush.bf16.msra.mxu0 %v706
        %808 = vmatpush.bf16.msra.mxu0 %v704
        %809 = vmatpush.bf16.msra.mxu0 %v702
        %810 = vmatpush.bf16.msra.mxu0 %v700
        %811 = vmatpush.bf16.msra.mxu0 %v698
        %812 = vmatpush.bf16.msra.mxu0 %v696
        %813 = vmatmul.bf16.gmra.mxu0 %v512
        %v814 = vpop.f32.mrf.mxu0
        %v815 = vadd.f32 %v802, %v814
        %v816 = vpop.f32.mrf.mxu0
        %817 = vdwg.mxu0
        %818 = vmatpush.bf16.msra.mxu0 %v726
        %819 = vmatpush.bf16.msra.mxu0 %v724
        %820 = vmatpush.bf16.msra.mxu0 %v722
        %821 = vmatpush.bf16.msra.mxu0 %v720
        %822 = vmatpush.bf16.msra.mxu0 %v718
        %823 = vmatpush.bf16.msra.mxu0 %v716
        %824 = vmatpush.bf16.msra.mxu0 %v714
        %825 = vmatpush.bf16.msra.mxu0 %v712
        %826 = vmatmul.bf16.gmra.mxu0 %v513
        %v827 = vpop.f32.mrf.mxu0
        %v828 = vadd.f32 %v815, %v827
        %v829 = vpop.f32.mrf.mxu0
        %830 = vdwg.mxu0
        %831 = vmatpush.bf16.msra.mxu0 0
        %832 = vmatpush.bf16.msra.mxu0 0
        %833 = vmatpush.bf16.msra.mxu0 0
        %834 = vmatpush.bf16.msra.mxu0 0
        %835 = vmatpush.bf16.msra.mxu0 0
        %836 = vmatpush.bf16.msra.mxu0 %v732
        %837 = vmatpush.bf16.msra.mxu0 %v730
        %838 = vmatpush.bf16.msra.mxu0 %v728
        %839 = vmatmul.bf16.gmra.mxu0 %v790
        %v840 = vpop.f32.mrf.mxu0
        %v841 = vadd.f32 %v828, %v840
        %v842 = vpop.f32.mrf.mxu0
        %843 = vdwg.mxu0
        %844 = vmatpush.bf16.msra.mxu0 %v695
        %845 = vmatpush.bf16.msra.mxu0 %v693
        %846 = vmatpush.bf16.msra.mxu0 %v691
        %847 = vmatpush.bf16.msra.mxu0 %v689
        %848 = vmatpush.bf16.msra.mxu0 %v687
        %849 = vmatpush.bf16.msra.mxu0 %v685
        %850 = vmatpush.bf16.msra.mxu0 %v683
        %851 = vmatpush.bf16.msra.mxu0 %v681
        %852 = vmatmul.bf16.gmra.mxu0 %v511
        %v853 = vpop.f32.mrf.mxu0
        %v854 = vadd.f32 0.0, %v853
        %v855 = vpop.f32.mrf.mxu0
        %856 = vdwg.mxu0
        %857 = vmatpush.bf16.msra.mxu0 %v711
        %858 = vmatpush.bf16.msra.mxu0 %v709
        %859 = vmatpush.bf16.msra.mxu0 %v707
        %860 = vmatpush.bf16.msra.mxu0 %v705
        %861 = vmatpush.bf16.msra.mxu0 %v703
        %862 = vmatpush.bf16.msra.mxu0 %v701
        %863 = vmatpush.bf16.msra.mxu0 %v699
        %864 = vmatpush.bf16.msra.mxu0 %v697
        %865 = vmatmul.bf16.gmra.mxu0 %v512
        %v866 = vpop.f32.mrf.mxu0
        %v867 = vadd.f32 %v854, %v866
        %v868 = vpop.f32.mrf.mxu0
        %869 = vdwg.mxu0
        %870 = vmatpush.bf16.msra.mxu0 %v727
        %871 = vmatpush.bf16.msra.mxu0 %v725
        %872 = vmatpush.bf16.msra.mxu0 %v723
        %873 = vmatpush.bf16.msra.mxu0 %v721
        %874 = vmatpush.bf16.msra.mxu0 %v719
        %875 = vmatpush.bf16.msra.mxu0 %v717
        %876 = vmatpush.bf16.msra.mxu0 %v715
        %877 = vmatpush.bf16.msra.mxu0 %v713
        %878 = vmatmul.bf16.gmra.mxu0 %v513
        %v879 = vpop.f32.mrf.mxu0
        %v880 = vadd.f32 %v867, %v879
        %v881 = vpop.f32.mrf.mxu0
        %882 = vdwg.mxu0
        %883 = vmatpush.bf16.msra.mxu0 0
        %884 = vmatpush.bf16.msra.mxu0 0
        %885 = vmatpush.bf16.msra.mxu0 0
        %886 = vmatpush.bf16.msra.mxu0 0
        %887 = vmatpush.bf16.msra.mxu0 0
        %888 = vmatpush.bf16.msra.mxu0 %v733
        %889 = vmatpush.bf16.msra.mxu0 %v731
        %890 = vmatpush.bf16.msra.mxu0 %v729
        %891 = vmatmul.bf16.gmra.mxu0 %v790
        %v892 = vpop.f32.mrf.mxu0
        %v893 = vadd.f32 %v880, %v892
        %v894 = vpop.f32.mrf.mxu0
        %895 = vdwg.mxu0
        %896 = vst [vmem:[%s446] sm:$0xff] %v841
        %897 = vst [vmem:[%s446 + $0x8] sm:$0xff] %v893
        %s898 = smul.u32 2, %s14
        %p899 = scmp.lt.s32.totalorder %s898, 3
        %s900 = scalar_select %p899, %s898, 3
        %s901 = sadd.s32 %s900, 12
        %s902 = smul.addr %s901, 8
        %s903 = scalar_lea.vmem %s3, %s902
        // Predicated region
        $region71: #{densenet_forward.10} parent=65 // pred_check
          %p904 = pneg %p105
        $region72: #{densenet_forward.10} parent=65 // pred_check_branch
          %906 = sbr.rel (%p904) target = $region74
        $region73: #{densenet_forward.10} parent=65 // pred_region
          %s907 = smul.u32 2, %s14
        $region74: #{densenet_forward.10} parent=65 // pred_fallthru
          _
      $region66: #{densenet_forward.10} parent=5 // pred_fallthru
        _
      %p908 = scmp.le.s32.totalorder 2, %s9
      // Predicated region
      $region75: #{densenet_forward.10} parent=5 // pred_check
        %p909 = pneg %p908
      $region76: #{densenet_forward.10} parent=5 // pred_check_branch
        %911 = sbr.rel (%p909) target = $region78
      $region77: #{densenet_forward.10} parent=5 // pred_region
        %s912 = ssub.s32 %s9, 2
        // Predicated region
        $region79: #{densenet_forward.10} parent=77 // pred_check
          %p913 = pneg %p111
        $region80: #{densenet_forward.10} parent=77 // pred_check_branch
          %915 = sbr.rel (%p913) target = $region82
        $region81: #{densenet_forward.10} parent=77 // pred_region
          %s916 = smul.u32 2, %s15
          %p917 = scmp.lt.s32.totalorder %s916, 3
          %s918 = scalar_select %p917, %s916, 3
          %s919 = sadd.s32 %s918, 12
          %s920 = smul.addr %s919, 8
          %s921 = scalar_lea.vmem %s3, %s920
        $region82: #{densenet_forward.10} parent=77 // pred_fallthru
          _
      $region78: #{densenet_forward.10} parent=5 // pred_fallthru
        _
    $region6: #{densenet_forward.10} parent=1 // loop_footer
      %s13 = sadd.s32 1, %s9
    $region7: #{densenet_forward.10} parent=1 // loop_footer_branch
      %8 = sbr.rel target = $region3
    $region8: #{densenet_forward.10} parent=1 // loop_exit
      _

// kernel: densenet_forward.11
$region0: #{densenet_forward.11}
  #allocation0 [shape = 'u32[]', space=smem, size = 0x4, offset = 0x4, fixed_abs, tag = 'smem constant byte address 0x4 - core index']
  #allocation1 [shape = 'u32[72,128]{1,0:T(1,128)}', space=vmem, size = 0x9000, scoped, tag = 'internal scratch']
  %s0 = inlined_call_operand.vmem [shape: f32[32,512], index: 0, kind: input, shape index: {}]
  %s1 = inlined_call_operand.vmem [shape: bf16[16,32], index: 1, kind: input, shape index: {}]
  %s2 = inlined_call_operand.vmem [shape: f32[32,1], index: 2, kind: input, shape index: {}]
  %s3 = inlined_call_operand.vmem [shape: f32[32,1], index: 3, kind: input, shape index: {}]
  %s4 = inlined_call_operand.vmem [shape: bf16[16,512], index: 4, kind: output, shape index: {}]
  %s5 = sld [smem:[#allocation0]]
  $region106: #{densenet_forward.11} parent=0
    _
  %s7 = ssub.s32 1, %s5
  %s8 = scalar_select 0, %s7, %s5
  $region1: #{densenet_forward.11} parent=0
    #allocation2 [shape = 'u8[65536]{0}', space=vmem, size = 0x10000, scoped, tag = 'input window, operand 0']
    #allocation3 [shape = 'u8[16384]{0}', space=vmem, size = 0x4000, scoped, tag = 'output window, operand 0']
    loop: start=0, step=1, limit=4
    $region2: #{densenet_forward.11} parent=1 // loop_pre_header
      _
    $region3: #{densenet_forward.11} parent=1 // loop_header
      %s10 = sphi 0, %s14
      %p11 = scmp.ge.s32.totalorder %s10, 4
      %s20 = sphi 0, %s22
      %s23 = sphi 0, %s20
      %s24 = sphi 0, %s23
      %s40 = sphi 0, %s24
      %s44 = sphi 0, %s44
      %s46 = sphi 0, %s44
      %s47 = sphi 0, %s46
      %s61 = sphi 0, %s47
      %s65 = sphi 0, %s65
      %s67 = sphi 0, %s65
      %s68 = sphi 0, %s67
      %s82 = sphi 0, %s68
      %s86 = sphi 0, %s86
      %s88 = sphi 0, %s86
      %s89 = sphi 0, %s88
      %s103 = sphi 0, %s89
      %s109 = sphi 0, %s111
      %s112 = sphi 0, %s109
      %s113 = sphi 0, %s112
      %s129 = sphi 0, %s113
    $region4: #{densenet_forward.11} parent=1 // loop_header_branch
      %13 = sbr.rel (%p11) target = $region8
    $region5: #{densenet_forward.11} parent=1 // loop_body
      %s15 = ssub.s32 %s10, 1
      %s16 = ssub.s32 %s10, 2
      %s17 = sadd.s32 %s10, 1
      %s18 = ssub.s32 %s10, %s17
      %p19 = scmp.eq.s32.totalorder %s18, 0
      %s21 = sadd.s32 %s20, 1
      %s22 = scalar_select %p19, %s20, %s21
      %p25 = pneg %p19
      %p26 = scmp.eq.s32.totalorder %s10, 1
      %p27 = por %p25, %p26
      %p28 = scmp.ne.s32.totalorder %s20, %s23
      %p29 = scmp.eq.s32.totalorder %s10, 0
      %p30 = por %p28, %p29
      %p31 = scmp.ne.s32.totalorder %s20, %s23
      %p32 = scmp.eq.s32.totalorder %s15, 1
      %p33 = por %p31, %p32
      %p34 = scmp.ne.s32.totalorder %s23, %s24
      %p35 = scmp.eq.s32.totalorder %s15, 0
      %p36 = por %p34, %p35
      %p37 = scmp.ne.s32.totalorder %s23, %s24
      %p38 = scmp.eq.s32.totalorder %s16, 1
      %p39 = por %p37, %p38
      %p41 = scmp.ne.s32.totalorder %s24, %s40
      %p42 = scmp.eq.s32.totalorder %s16, 0
      %p43 = por %p41, %p42
      %s45 = sadd.s32 %s44, 1
      %p48 = scmp.eq.s32.totalorder %s10, 1
      %p49 = scmp.ne.s32.totalorder %s44, %s46
      %p50 = scmp.eq.s32.totalorder %s10, 0
      %p51 = por %p49, %p50
      %p52 = scmp.ne.s32.totalorder %s44, %s46
      %p53 = scmp.eq.s32.totalorder %s15, 1
      %p54 = por %p52, %p53
      %p55 = scmp.ne.s32.totalorder %s46, %s47
      %p56 = scmp.eq.s32.totalorder %s15, 0
      %p57 = por %p55, %p56
      %p58 = scmp.ne.s32.totalorder %s46, %s47
      %p59 = scmp.eq.s32.totalorder %s16, 1
      %p60 = por %p58, %p59
      %p62 = scmp.ne.s32.totalorder %s47, %s61
      %p63 = scmp.eq.s32.totalorder %s16, 0
      %p64 = por %p62, %p63
      %s66 = sadd.s32 %s65, 1
      %p69 = scmp.eq.s32.totalorder %s10, 1
      %p70 = scmp.ne.s32.totalorder %s65, %s67
      %p71 = scmp.eq.s32.totalorder %s10, 0
      %p72 = por %p70, %p71
      %p73 = scmp.ne.s32.totalorder %s65, %s67
      %p74 = scmp.eq.s32.totalorder %s15, 1
      %p75 = por %p73, %p74
      %p76 = scmp.ne.s32.totalorder %s67, %s68
      %p77 = scmp.eq.s32.totalorder %s15, 0
      %p78 = por %p76, %p77
      %p79 = scmp.ne.s32.totalorder %s67, %s68
      %p80 = scmp.eq.s32.totalorder %s16, 1
      %p81 = por %p79, %p80
      %p83 = scmp.ne.s32.totalorder %s68, %s82
      %p84 = scmp.eq.s32.totalorder %s16, 0
      %p85 = por %p83, %p84
      %s87 = sadd.s32 %s86, 1
      %p90 = scmp.eq.s32.totalorder %s10, 1
      %p91 = scmp.ne.s32.totalorder %s86, %s88
      %p92 = scmp.eq.s32.totalorder %s10, 0
      %p93 = por %p91, %p92
      %p94 = scmp.ne.s32.totalorder %s86, %s88
      %p95 = scmp.eq.s32.totalorder %s15, 1
      %p96 = por %p94, %p95
      %p97 = scmp.ne.s32.totalorder %s88, %s89
      %p98 = scmp.eq.s32.totalorder %s15, 0
      %p99 = por %p97, %p98
      %p100 = scmp.ne.s32.totalorder %s88, %s89
      %p101 = scmp.eq.s32.totalorder %s16, 1
      %p102 = por %p100, %p101
      %p104 = scmp.ne.s32.totalorder %s89, %s103
      %p105 = scmp.eq.s32.totalorder %s16, 0
      %p106 = por %p104, %p105
      %s107 = ssub.s32 %s10, %s17
      %p108 = scmp.eq.s32.totalorder %s107, 0
      %s110 = sadd.s32 %s109, 1
      %s111 = scalar_select %p108, %s109, %s110
      %p114 = pneg %p108
      %p115 = scmp.eq.s32.totalorder %s10, 1
      %p116 = por %p114, %p115
      %p117 = scmp.ne.s32.totalorder %s109, %s112
      %p118 = scmp.eq.s32.totalorder %s10, 0
      %p119 = por %p117, %p118
      %p120 = scmp.ne.s32.totalorder %s109, %s112
      %p121 = scmp.eq.s32.totalorder %s15, 1
      %p122 = por %p120, %p121
      %p123 = scmp.ne.s32.totalorder %s112, %s113
      %p124 = scmp.eq.s32.totalorder %s15, 0
      %p125 = por %p123, %p124
      %p126 = scmp.ne.s32.totalorder %s112, %s113
      %p127 = scmp.eq.s32.totalorder %s16, 1
      %p128 = por %p126, %p127
      %p130 = scmp.ne.s32.totalorder %s113, %s129
      %p131 = scmp.eq.s32.totalorder %s16, 0
      %p132 = por %p130, %p131
      %p133 = scmp.le.s32.totalorder 1, %s10
      %p134 = scmp.lt.s32.totalorder %s10, 3
      %p135 = pnand %p133, %p134
      %p136 = pneg %p135
      // Predicated region
      $region9: #{densenet_forward.11} parent=5 // pred_check
        _
      $region10: #{densenet_forward.11} parent=5 // pred_check_branch
        %138 = sbr.rel (%p135) target = $region12
      $region11: #{densenet_forward.11} parent=5 // pred_region
        %s139 = ssub.s32 %s10, 1
        // Predicated region
        $region13: #{densenet_forward.11} parent=11 // pred_check
          %p140 = pneg %p57
        $region14: #{densenet_forward.11} parent=11 // pred_check_branch
          %142 = sbr.rel (%p140) target = $region16
        $region15: #{densenet_forward.11} parent=11 // pred_region
          _
        $region16: #{densenet_forward.11} parent=11 // pred_fallthru
          _
        // Predicated region
        $region17: #{densenet_forward.11} parent=11 // pred_check
          %p143 = pneg %p78
        $region18: #{densenet_forward.11} parent=11 // pred_check_branch
          %145 = sbr.rel (%p143) target = $region20
        $region19: #{densenet_forward.11} parent=11 // pred_region
          _
        $region20: #{densenet_forward.11} parent=11 // pred_fallthru
          _
        // Predicated region
        $region21: #{densenet_forward.11} parent=11 // pred_check
          %p146 = pneg %p99
        $region22: #{densenet_forward.11} parent=11 // pred_check_branch
          %148 = sbr.rel (%p146) target = $region24
        $region23: #{densenet_forward.11} parent=11 // pred_region
          _
        $region24: #{densenet_forward.11} parent=11 // pred_fallthru
          _
      $region12: #{densenet_forward.11} parent=5 // pred_fallthru
        _
      %p149 = scmp.lt.s32.totalorder %s10, 2
      // Predicated region
      $region25: #{densenet_forward.11} parent=5 // pred_check
        %p150 = pneg %p149
      $region26: #{densenet_forward.11} parent=5 // pred_check_branch
        %152 = sbr.rel (%p150) target = $region28
      $region27: #{densenet_forward.11} parent=5 // pred_region
        // Predicated region
        $region29: #{densenet_forward.11} parent=27 // pred_check
          %p153 = pneg %p30
        $region30: #{densenet_forward.11} parent=27 // pred_check_branch
          %155 = sbr.rel (%p153) target = $region32
        $region31: #{densenet_forward.11} parent=27 // pred_region
          %s156 = sand.u32 %s20, 1
          %s157 = sand.u32 %s20, 1
          %s158 = smul.addr %s157, 64
          %s159 = scalar_lea.vmem [#allocation2], %s158
          %s160 = smul.u32 2, %s10
          %s161 = smul.addr %s160, 8
          %s162 = scalar_lea.vmem %s0, %s161
          // Predicated region
          $region33: #{densenet_forward.11} parent=31 // pred_check
            _
          $region34: #{densenet_forward.11} parent=31 // pred_check_branch
            %164 = sbr.rel (0) target = $region36
          $region35: #{densenet_forward.11} parent=31 // pred_region
            // Predicated region
            $region37: #{densenet_forward.11} parent=35 // pred_check
              _
            $region38: #{densenet_forward.11} parent=35 // pred_check_branch
              %166 = sbr.rel (0) target = $region40
            $region39: #{densenet_forward.11} parent=35 // pred_region
              loop: start=0, step=1, limit=1
              $region41: #{densenet_forward.11} parent=39 // loop_pre_header
                _
              $region42: #{densenet_forward.11} parent=39 // loop_header
                %s168 = sphi 0, %s172
                %p169 = scmp.ge.s32.totalorder %s168, 1
                %s173 = sphi %s162, %s162
                %s174 = sphi %s159, %s159
              $region43: #{densenet_forward.11} parent=39 // loop_header_branch
                %171 = sbr.rel (%p169) target = $region47
              $region44: #{densenet_forward.11} parent=39 // loop_body
                %v175 = vld [vmem:[%s173] sm:$0xff]
                %176 = vst [vmem:[%s174] sm:$0xff] %v175
                %v177 = vld [vmem:[%s173 + $0x8] sm:$0xff]
                %178 = vst [vmem:[%s174 + $0x8] sm:$0xff] %v177
                %v179 = vld [vmem:[%s173 + $0x20] sm:$0xff]
                %180 = vst [vmem:[%s174 + $0x10] sm:$0xff] %v179
                %v181 = vld [vmem:[%s173 + $0x28] sm:$0xff]
                %182 = vst [vmem:[%s174 + $0x18] sm:$0xff] %v181
                %v183 = vld [vmem:[%s173 + $0x40] sm:$0xff]
                %184 = vst [vmem:[%s174 + $0x20] sm:$0xff] %v183
                %v185 = vld [vmem:[%s173 + $0x48] sm:$0xff]
                %186 = vst [vmem:[%s174 + $0x28] sm:$0xff] %v185
                %v187 = vld [vmem:[%s173 + $0x60] sm:$0xff]
                %188 = vst [vmem:[%s174 + $0x30] sm:$0xff] %v187
                %v189 = vld [vmem:[%s173 + $0x68] sm:$0xff]
                %190 = vst [vmem:[%s174 + $0x38] sm:$0xff] %v189
              $region45: #{densenet_forward.11} parent=39 // loop_footer
                %s172 = sadd.s32 1, %s168
              $region46: #{densenet_forward.11} parent=39 // loop_footer_branch
                %167 = sbr.rel target = $region42
              $region47: #{densenet_forward.11} parent=39 // loop_exit
                _
            $region40: #{densenet_forward.11} parent=35 // pred_fallthru
              _
            // Predicated region
            $region48: #{densenet_forward.11} parent=35 // pred_check
              _
            $region49: #{densenet_forward.11} parent=35 // pred_check_branch
              %192 = sbr.rel target = $region51
            $region50: #{densenet_forward.11} parent=35 // pred_region
              _
            $region51: #{densenet_forward.11} parent=35 // pred_fallthru
              _
          $region36: #{densenet_forward.11} parent=31 // pred_fallthru
            _
          %193 = vnop
        $region32: #{densenet_forward.11} parent=27 // pred_fallthru
          _
      $region28: #{densenet_forward.11} parent=5 // pred_fallthru
        _
      %p194 = scmp.le.s32.totalorder 1, %s10
      %p195 = scmp.lt.s32.totalorder %s10, 3
      %p196 = pnand %p194, %p195
      %p197 = pneg %p196
      // Predicated region
      $region52: #{densenet_forward.11} parent=5 // pred_check
        _
      $region53: #{densenet_forward.11} parent=5 // pred_check_branch
        %199 = sbr.rel (%p196) target = $region55
      $region54: #{densenet_forward.11} parent=5 // pred_region
        %s200 = ssub.s32 %s10, 1
        %s201 = sand.u32 %s23, 1
        %s202 = sand.u32 %s23, 1
        %s203 = smul.addr %s202, 64
        %s204 = scalar_lea.vmem [#allocation2], %s203
        // Predicated region
        $region56: #{densenet_forward.11} parent=54 // pred_check
          %p205 = pneg %p36
        $region57: #{densenet_forward.11} parent=54 // pred_check_branch
          %207 = sbr.rel (%p205) target = $region59
        $region58: #{densenet_forward.11} parent=54 // pred_region
          _
        $region59: #{densenet_forward.11} parent=54 // pred_fallthru
          _
        %s208 = sand.u32 %s23, 1
        %s209 = sand.u32 %s23, 1
        %s210 = smul.addr %s209, 64
        %s211 = scalar_lea.vmem [#allocation2], %s210
        %p212 = pneg %p36
        %p213 = pneg %p33
        %p214 = pneg %p57
        %p215 = pneg %p54
        %p216 = pneg %p78
        %p217 = pneg %p75
        %p218 = pneg %p99
        %p219 = pneg %p96
        %p220 = pneg %p125
        %p221 = pneg %p122
        %s222 = sand.u32 %s112, 1
        %s223 = sand.u32 %s112, 1
        %s224 = smul.addr %s223, 16
        %s225 = scalar_lea.vmem [#allocation3], %s224
        %s226 = smul.u32 2, %s15
        %s227 = smul.u32 2, %s15
        %v229 = vld [vmem:[%s204] sm:$0xff]
        %v230 = vld [vmem:[%s204 + $0x8] sm:$0xff]
        %v231 = vld [vmem:[%s204 + $0x10] sm:$0xff]
        %v232 = vld [vmem:[%s204 + $0x18] sm:$0xff]
        %v233 = vld [vmem:[%s204 + $0x20] sm:$0xff]
        %v234 = vld [vmem:[%s204 + $0x28] sm:$0xff]
        %v235 = vld [vmem:[%s204 + $0x30] sm:$0xff]
        %v236 = vld [vmem:[%s204 + $0x38] sm:$0xff]
        %v237 = vld [vmem:[%s2] sm:$0xff]
        %v238 = vld [vmem:[%s2 + $0x8] sm:$0xff]
        %v239 = vld [vmem:[%s2 + $0x10] sm:$0xff]
        %v240 = vld [vmem:[%s2 + $0x18] sm:$0xff]
        %242 = vset.pattern.permute.xlu0 0
        %243 = vperm.xlu0 %242, %v237
        %v244 = vpop.permute.xlu0 %243
        %247 = vset.pattern.permute.xlu0 0
        %248 = vperm.xlu0 %247, %v238
        %v249 = vpop.permute.xlu0 %248
        %252 = vset.pattern.permute.xlu0 0
        %253 = vperm.xlu0 %252, %v239
        %v254 = vpop.permute.xlu0 %253
        %257 = vset.pattern.permute.xlu0 0
        %258 = vperm.xlu0 %257, %v240
        %v259 = vpop.permute.xlu0 %258
        %v261 = vmul.f32 %v229, %v244
        %v262 = vmul.f32 %v230, %v244
        %v263 = vmul.f32 %v231, %v249
        %v264 = vmul.f32 %v232, %v249
        %v265 = vmul.f32 %v233, %v254
        %v266 = vmul.f32 %v234, %v254
        %v267 = vmul.f32 %v235, %v259
        %v268 = vmul.f32 %v236, %v259
        %v269 = vld [vmem:[%s3] sm:$0xff]
        %v270 = vld [vmem:[%s3 + $0x8] sm:$0xff]
        %v271 = vld [vmem:[%s3 + $0x10] sm:$0xff]
        %v272 = vld [vmem:[%s3 + $0x18] sm:$0xff]
        %274 = vset.pattern.permute.xlu0 0
        %275 = vperm.xlu0 %274, %v269
        %v276 = vpop.permute.xlu0 %275
        %279 = vset.pattern.permute.xlu0 0
        %280 = vperm.xlu0 %279, %v270
        %v281 = vpop.permute.xlu0 %280
        %284 = vset.pattern.permute.xlu0 0
        %285 = vperm.xlu0 %284, %v271
        %v286 = vpop.permute.xlu0 %285
        %289 = vset.pattern.permute.xlu0 0
        %290 = vperm.xlu0 %289, %v272
        %v291 = vpop.permute.xlu0 %290
        %v293 = vadd.f32 %v261, %v276
        %v294 = vadd.f32 %v262, %v276
        %v295 = vadd.f32 %v263, %v281
        %v296 = vadd.f32 %v264, %v281
        %v297 = vadd.f32 %v265, %v286
        %v298 = vadd.f32 %v266, %v286
        %v299 = vadd.f32 %v267, %v291
        %v300 = vadd.f32 %v268, %v291
        %v301 = vmax.f32 %v293, 0.0
        %v302 = vmax.f32 %v294, 0.0
        %v303 = vmax.f32 %v295, 0.0
        %v304 = vmax.f32 %v296, 0.0
        %v305 = vmax.f32 %v297, 0.0
        %v306 = vmax.f32 %v298, 0.0
        %v307 = vmax.f32 %v299, 0.0
        %v308 = vmax.f32 %v300, 0.0
        %v309 = vld [vmem:[%s1] sm:$0xf]
        %v310 = vld [vmem:[%s1 + $0x4] sm:$0xf]
        %v311 = vpack.c.bf16 %v303, %v301
        %v312 = vpack.c.bf16 %v304, %v302
        %v313 = vpack.c.bf16 %v307, %v305
        %v314 = vpack.c.bf16 %v308, %v306
        %v317 = vunpack.c.l.b16 %v309
        %v318 = vunpack.c.l.b16 %v310
        %v319 = vpack.c.b16 %v318, %v317
        %vm320 = vcmask 261120
        %v322 = vsel %vm320, %v319, 0
        %324 = vmatpush.bf16.msra.mxu0 0
        %325 = vmatpush.bf16.msra.mxu0 0
        %326 = vmatpush.bf16.msra.mxu0 0
        %327 = vmatpush.bf16.msra.mxu0 0
        %328 = vmatpush.bf16.msra.mxu0 0
        %329 = vmatpush.bf16.msra.mxu0 0
        %330 = vmatpush.bf16.msra.mxu0 %v313
        %331 = vmatpush.bf16.msra.mxu0 %v311
        %332 = vmatmul.bf16.gmra.mxu0 %v322
        %v333 = vpop.f32.mrf.mxu0
        %v334 = vadd.f32 0.0, %v333
        %v335 = vpop.f32.mrf.mxu0
        %v336 = vadd.f32 0.0, %v335
        %337 = vdwg.mxu0
        %338 = vmatpush.bf16.msra.mxu0 0
        %339 = vmatpush.bf16.msra.mxu0 0
        %340 = vmatpush.bf16.msra.mxu0 0
        %341 = vmatpush.bf16.msra.mxu0 0
        %342 = vmatpush.bf16.msra.mxu0 0
        %343 = vmatpush.bf16.msra.mxu0 0
        %344 = vmatpush.bf16.msra.mxu0 %v314
        %345 = vmatpush.bf16.msra.mxu0 %v312
        %346 = vmatmul.bf16.gmra.mxu0 %v322
        %v347 = vpop.f32.mrf.mxu0
        %v348 = vadd.f32 0.0, %v347
        %v349 = vpop.f32.mrf.mxu0
        %v350 = vadd.f32 0.0, %v349
        %351 = vdwg.mxu0
        %v352 = vpack.c.bf16 %v348, %v334
        %v353 = vpack.c.bf16 %v350, %v336
        %354 = vst [vmem:[%s225] sm:$0xff] %v352
        %355 = vst [vmem:[%s225 + $0x8] sm:$0xff] %v353
        %s356 = sand.u32 %s112, 1
        %s357 = sand.u32 %s112, 1
        %s358 = smul.addr %s357, 16
        %s359 = scalar_lea.vmem [#allocation3], %s358
        // Predicated region
        $region60: #{densenet_forward.11} parent=54 // pred_check
          %p360 = pneg %p122
        $region61: #{densenet_forward.11} parent=54 // pred_check_branch
          %362 = sbr.rel (%p360) target = $region63
        $region62: #{densenet_forward.11} parent=54 // pred_region
          %s363 = smul.u32 2, %s15
          %s364 = smul.addr %s363, 4
          %s365 = scalar_lea.vmem %s4, %s364
          // Predicated region
          $region64: #{densenet_forward.11} parent=62 // pred_check
            _
          $region65: #{densenet_forward.11} parent=62 // pred_check_branch
            %367 = sbr.rel (0) target = $region67
          $region66: #{densenet_forward.11} parent=62 // pred_region
            // Predicated region
            $region68: #{densenet_forward.11} parent=66 // pred_check
              _
            $region69: #{densenet_forward.11} parent=66 // pred_check_branch
              %369 = sbr.rel (0) target = $region71
            $region70: #{densenet_forward.11} parent=66 // pred_region
              // Predicated region
              $region83: #{densenet_forward.11} parent=70 // pred_check
                _
              $region84: #{densenet_forward.11} parent=70 // pred_check_branch
                %387 = sbr.rel (0) target = $region86
              $region85: #{densenet_forward.11} parent=70 // pred_region
                loop: start=0, step=1, limit=1
                $region87: #{densenet_forward.11} parent=85 // loop_pre_header
                  _
                $region88: #{densenet_forward.11} parent=85 // loop_header
                  %s389 = sphi 0, %s393
                  %p390 = scmp.ge.s32.totalorder %s389, 1
                  %s394 = sphi %s359, %s359
                  %s395 = sphi %s365, %s365
                $region89: #{densenet_forward.11} parent=85 // loop_header_branch
                  %392 = sbr.rel (%p390) target = $region93
                $region90: #{densenet_forward.11} parent=85 // loop_body
                  %v396 = vld [vmem:[%s394] sm:$0xff]
                  %397 = vst [vmem:[%s395] sm:$0xff] %v396
                  %v398 = vld [vmem:[%s394 + $0x8] sm:$0xff]
                  %399 = vst [vmem:[%s395 + $0x10] sm:$0xff] %v398
                $region91: #{densenet_forward.11} parent=85 // loop_footer
                  %s393 = sadd.s32 1, %s389
                $region92: #{densenet_forward.11} parent=85 // loop_footer_branch
                  %388 = sbr.rel target = $region88
                $region93: #{densenet_forward.11} parent=85 // loop_exit
                  _
              $region86: #{densenet_forward.11} parent=70 // pred_fallthru
                _
              // Predicated region
              $region94: #{densenet_forward.11} parent=70 // pred_check
                _
              $region95: #{densenet_forward.11} parent=70 // pred_check_branch
                %401 = sbr.rel target = $region97
              $region96: #{densenet_forward.11} parent=70 // pred_region
                _
              $region97: #{densenet_forward.11} parent=70 // pred_fallthru
                _
            $region71: #{densenet_forward.11} parent=66 // pred_fallthru
              _
            // Predicated region
            $region72: #{densenet_forward.11} parent=66 // pred_check
              _
            $region73: #{densenet_forward.11} parent=66 // pred_check_branch
              %371 = sbr.rel target = $region75
            $region74: #{densenet_forward.11} parent=66 // pred_region
              %s373 = ssub.s32 256, 1
              loop: start=0, step=1, limit=1
              $region76: #{densenet_forward.11} parent=74 // loop_pre_header
                _
              $region77: #{densenet_forward.11} parent=74 // loop_header
                %s375 = sphi 0, %s379
                %p376 = scmp.ge.s32.totalorder %s375, 1
                %s380 = sphi %s359, %s359
                %s381 = sphi %s365, %s365
              $region78: #{densenet_forward.11} parent=74 // loop_header_branch
                %378 = sbr.rel (%p376) target = $region82
              $region79: #{densenet_forward.11} parent=74 // loop_body
                %v382 = vld [vmem:[%s380] sm:%s373]
                %383 = vst [vmem:[%s381] sm:%s373] %v382
                %v384 = vld [vmem:[%s380 + $0x8] sm:%s373]
                %385 = vst [vmem:[%s381 + $0x10] sm:%s373] %v384
              $region80: #{densenet_forward.11} parent=74 // loop_footer
                %s379 = sadd.s32 1, %s375
              $region81: #{densenet_forward.11} parent=74 // loop_footer_branch
                %374 = sbr.rel target = $region77
              $region82: #{densenet_forward.11} parent=74 // loop_exit
                _
            $region75: #{densenet_forward.11} parent=66 // pred_fallthru
              _
          $region67: #{densenet_forward.11} parent=62 // pred_fallthru
            _
          %402 = vnop
        $region63: #{densenet_forward.11} parent=54 // pred_fallthru
          _
      $region55: #{densenet_forward.11} parent=5 // pred_fallthru
        _
      %p403 = scmp.le.s32.totalorder 2, %s10
      // Predicated region
      $region98: #{densenet_forward.11} parent=5 // pred_check
        %p404 = pneg %p403
      $region99: #{densenet_forward.11} parent=5 // pred_check_branch
        %406 = sbr.rel (%p404) target = $region101
      $region100: #{densenet_forward.11} parent=5 // pred_region
        %s407 = ssub.s32 %s10, 2
        // Predicated region
        $region102: #{densenet_forward.11} parent=100 // pred_check
          %p408 = pneg %p128
        $region103: #{densenet_forward.11} parent=100 // pred_check_branch
          %410 = sbr.rel (%p408) target = $region105
        $region104: #{densenet_forward.11} parent=100 // pred_region
          %s411 = sand.u32 %s113, 1
          %s412 = sand.u32 %s113, 1
          %s413 = smul.addr %s412, 16
          %s414 = scalar_lea.vmem [#allocation3], %s413
        $region105: #{densenet_forward.11} parent=100 // pred_fallthru
          _
      $region101: #{densenet_forward.11} parent=5 // pred_fallthru
        _
    $region6: #{densenet_forward.11} parent=1 // loop_footer
      %s14 = sadd.s32 1, %s10
    $region7: #{densenet_forward.11} parent=1 // loop_footer_branch
      %9 = sbr.rel target = $region3
    $region8: #{densenet_forward.11} parent=1 // loop_exit
      _

// kernel: reverse
$region0: #{reverse}
  #allocation0 [shape = 's32[1]{0}', space=sflag, size = 0x4, scoped, tag = 'scoped memory for reverse']
  %s0 = inlined_call_operand.vmem [shape: bf16[432,16,3,3,3], index: 0, kind: input, shape index: {}]
  %s1 = inlined_call_operand.vmem [shape: bf16[432,16,3,3,3], index: 1, kind: output, shape index: {}]
  %s2 = scalar_lea.vmem %s0, 832
  %v3 = vld [vmem:[%s2] sm:$0xf]
  %v4 = vunpack.c.l.bf16 %v3
  %v5 = vunpack.c.h.bf16 %v3
  %s6 = scalar_lea.vmem %s0, 544
  %v7 = vld [vmem:[%s6] sm:$0xf]
  %v8 = vunpack.c.l.bf16 %v7
  %v9 = vunpack.c.h.bf16 %v7
  %s10 = scalar_lea.vmem %s1, 288
  %s11 = scalar_lea.vmem %s0, 256
  %v12 = vld [vmem:[%s11] sm:$0xf]
  %v13 = vunpack.c.l.bf16 %v12
  %v14 = vunpack.c.h.bf16 %v12
  %s15 = scalar_lea.vmem %s1, 576
  %s16 = scalar_lea.vmem %s0, 736
  %v17 = vld [vmem:[%s16] sm:$0xf]
  %v18 = vunpack.c.l.bf16 %v17
  %v19 = vunpack.c.h.bf16 %v17
  %s20 = scalar_lea.vmem %s1, 96
  %s21 = scalar_lea.vmem %s0, 448
  %v22 = vld [vmem:[%s21] sm:$0xf]
  %v23 = vunpack.c.l.bf16 %v22
  %v24 = vunpack.c.h.bf16 %v22
  %s25 = scalar_lea.vmem %s1, 384
  %s26 = scalar_lea.vmem %s0, 160
  %v27 = vld [vmem:[%s26] sm:$0xf]
  %v28 = vunpack.c.l.bf16 %v27
  %v29 = vunpack.c.h.bf16 %v27
  %s30 = scalar_lea.vmem %s1, 672
  %s31 = scalar_lea.vmem %s0, 640
  %v32 = vld [vmem:[%s31] sm:$0xf]
  %v33 = vunpack.c.l.bf16 %v32
  %v34 = vunpack.c.h.bf16 %v32
  %s35 = scalar_lea.vmem %s1, 192
  %s36 = scalar_lea.vmem %s0, 352
  %v37 = vld [vmem:[%s36] sm:$0xf]
  %v38 = vunpack.c.l.bf16 %v37
  %v39 = vunpack.c.h.bf16 %v37
  %s40 = scalar_lea.vmem %s1, 480
  %s41 = scalar_lea.vmem %s0, 64
  %v42 = vld [vmem:[%s41] sm:$0xf]
  %v43 = vunpack.c.l.bf16 %v42
  %v44 = vunpack.c.h.bf16 %v42
  %s45 = scalar_lea.vmem %s1, 768
  %s46 = scalar_lea.vmem %s0, 800
  %v47 = vld [vmem:[%s46] sm:$0xf]
  %v48 = vunpack.c.l.bf16 %v47
  %v49 = vunpack.c.h.bf16 %v47
  %s50 = scalar_lea.vmem %s1, 32
  %s51 = scalar_lea.vmem %s0, 512
  %v52 = vld [vmem:[%s51] sm:$0xf]
  %v53 = vunpack.c.l.bf16 %v52
  %v54 = vunpack.c.h.bf16 %v52
  %s55 = scalar_lea.vmem %s1, 320
  %s56 = scalar_lea.vmem %s0, 224
  %v57 = vld [vmem:[%s56] sm:$0xf]
  %v58 = vunpack.c.l.bf16 %v57
  %v59 = vunpack.c.h.bf16 %v57
  %s60 = scalar_lea.vmem %s1, 608
  %s61 = scalar_lea.vmem %s0, 704
  %v62 = vld [vmem:[%s61] sm:$0xf]
  %v63 = vunpack.c.l.bf16 %v62
  %v64 = vunpack.c.h.bf16 %v62
  %s65 = scalar_lea.vmem %s1, 128
  %s66 = scalar_lea.vmem %s0, 416
  %v67 = vld [vmem:[%s66] sm:$0xf]
  %v68 = vunpack.c.l.bf16 %v67
  %v69 = vunpack.c.h.bf16 %v67
  %s70 = scalar_lea.vmem %s1, 416
  %s71 = scalar_lea.vmem %s0, 128
  %v72 = vld [vmem:[%s71] sm:$0xf]
  %v73 = vunpack.c.l.bf16 %v72
  %v74 = vunpack.c.h.bf16 %v72
  %s75 = scalar_lea.vmem %s1, 704
  %s76 = scalar_lea.vmem %s0, 608
  %v77 = vld [vmem:[%s76] sm:$0xf]
  %v78 = vunpack.c.l.bf16 %v77
  %v79 = vunpack.c.h.bf16 %v77
  %s80 = scalar_lea.vmem %s1, 224
  %s81 = scalar_lea.vmem %s0, 320
  %v82 = vld [vmem:[%s81] sm:$0xf]
  %v83 = vunpack.c.l.bf16 %v82
  %v84 = vunpack.c.h.bf16 %v82
  %s85 = scalar_lea.vmem %s1, 512
  %s86 = scalar_lea.vmem %s0, 32
  %v87 = vld [vmem:[%s86] sm:$0xf]
  %v88 = vunpack.c.l.bf16 %v87
  %v89 = vunpack.c.h.bf16 %v87
  %s90 = scalar_lea.vmem %s1, 800
  %s91 = scalar_lea.vmem %s0, 768
  %v92 = vld [vmem:[%s91] sm:$0xf]
  %v93 = vunpack.c.l.bf16 %v92
  %v94 = vunpack.c.h.bf16 %v92
  %s95 = scalar_lea.vmem %s1, 64
  %s96 = scalar_lea.vmem %s0, 480
  %v97 = vld [vmem:[%s96] sm:$0xf]
  %v98 = vunpack.c.l.bf16 %v97
  %v99 = vunpack.c.h.bf16 %v97
  %s100 = scalar_lea.vmem %s1, 352
  %s101 = scalar_lea.vmem %s0, 192
  %v102 = vld [vmem:[%s101] sm:$0xf]
  %v103 = vunpack.c.l.bf16 %v102
  %v104 = vunpack.c.h.bf16 %v102
  %s105 = scalar_lea.vmem %s1, 640
  %s106 = scalar_lea.vmem %s0, 672
  %v107 = vld [vmem:[%s106] sm:$0xf]
  %v108 = vunpack.c.l.bf16 %v107
  %v109 = vunpack.c.h.bf16 %v107
  %s110 = scalar_lea.vmem %s1, 160
  %s111 = scalar_lea.vmem %s0, 384
  %v112 = vld [vmem:[%s111] sm:$0xf]
  %v113 = vunpack.c.l.bf16 %v112
  %v114 = vunpack.c.h.bf16 %v112
  %s115 = scalar_lea.vmem %s1, 448
  %s116 = scalar_lea.vmem %s0, 96
  %v117 = vld [vmem:[%s116] sm:$0xf]
  %v118 = vunpack.c.l.bf16 %v117
  %v119 = vunpack.c.h.bf16 %v117
  %s120 = scalar_lea.vmem %s1, 736
  %s121 = scalar_lea.vmem %s0, 576
  %v122 = vld [vmem:[%s121] sm:$0xf]
  %v123 = vunpack.c.l.bf16 %v122
  %v124 = vunpack.c.h.bf16 %v122
  %s125 = scalar_lea.vmem %s1, 256
  %s126 = scalar_lea.vmem %s0, 288
  %v127 = vld [vmem:[%s126] sm:$0xf]
  %v128 = vunpack.c.l.bf16 %v127
  %v129 = vunpack.c.h.bf16 %v127
  %s130 = scalar_lea.vmem %s1, 544
  %v131 = vld [vmem:[%s0] sm:$0xf]
  %v132 = vunpack.c.l.bf16 %v131
  %v133 = vunpack.c.h.bf16 %v131
  %s134 = scalar_lea.vmem %s1, 832
  %s135 = scalar_lea.vmem %s0, 848
  %v136 = vld [vmem:[%s135] sm:$0xf]
  %v137 = vunpack.c.l.bf16 %v136
  %v138 = vunpack.c.h.bf16 %v136
  %s139 = scalar_lea.vmem %s1, 16
  %s140 = scalar_lea.vmem %s0, 560
  %v141 = vld [vmem:[%s140] sm:$0xf]
  %v142 = vunpack.c.l.bf16 %v141
  %v143 = vunpack.c.h.bf16 %v141
  %s144 = scalar_lea.vmem %s1, 304
  %s145 = scalar_lea.vmem %s0, 272
  %v146 = vld [vmem:[%s145] sm:$0xf]
  %v147 = vunpack.c.l.bf16 %v146
  %v148 = vunpack.c.h.bf16 %v146
  %s149 = scalar_lea.vmem %s1, 592
  %s150 = scalar_lea.vmem %s0, 752
  %v151 = vld [vmem:[%s150] sm:$0xf]
  %v152 = vunpack.c.l.bf16 %v151
  %v153 = vunpack.c.h.bf16 %v151
  %s154 = scalar_lea.vmem %s1, 112
  %s155 = scalar_lea.vmem %s0, 464
  %v156 = vld [vmem:[%s155] sm:$0xf]
  %v157 = vunpack.c.l.bf16 %v156
  %v158 = vunpack.c.h.bf16 %v156
  %s159 = scalar_lea.vmem %s1, 400
  %s160 = scalar_lea.vmem %s0, 176
  %v161 = vld [vmem:[%s160] sm:$0xf]
  %v162 = vunpack.c.l.bf16 %v161
  %v163 = vunpack.c.h.bf16 %v161
  %s164 = scalar_lea.vmem %s1, 688
  %s165 = scalar_lea.vmem %s0, 656
  %v166 = vld [vmem:[%s165] sm:$0xf]
  %v167 = vunpack.c.l.bf16 %v166
  %v168 = vunpack.c.h.bf16 %v166
  %s169 = scalar_lea.vmem %s1, 208
  %s170 = scalar_lea.vmem %s0, 368
  %v171 = vld [vmem:[%s170] sm:$0xf]
  %v172 = vunpack.c.l.bf16 %v171
  %v173 = vunpack.c.h.bf16 %v171
  %s174 = scalar_lea.vmem %s1, 496
  %s175 = scalar_lea.vmem %s0, 80
  %v176 = vld [vmem:[%s175] sm:$0xf]
  %v177 = vunpack.c.l.bf16 %v176
  %v178 = vunpack.c.h.bf16 %v176
  %s179 = scalar_lea.vmem %s1, 784
  %s180 = scalar_lea.vmem %s0, 816
  %v181 = vld [vmem:[%s180] sm:$0xf]
  %v182 = vunpack.c.l.bf16 %v181
  %v183 = vunpack.c.h.bf16 %v181
  %s184 = scalar_lea.vmem %s1, 48
  %s185 = scalar_lea.vmem %s0, 528
  %v186 = vld [vmem:[%s185] sm:$0xf]
  %v187 = vunpack.c.l.bf16 %v186
  %v188 = vunpack.c.h.bf16 %v186
  %s189 = scalar_lea.vmem %s1, 336
  %s190 = scalar_lea.vmem %s0, 240
  %v191 = vld [vmem:[%s190] sm:$0xf]
  %v192 = vunpack.c.l.bf16 %v191
  %v193 = vunpack.c.h.bf16 %v191
  %s194 = scalar_lea.vmem %s1, 624
  %s195 = scalar_lea.vmem %s0, 720
  %v196 = vld [vmem:[%s195] sm:$0xf]
  %v197 = vunpack.c.l.bf16 %v196
  %v198 = vunpack.c.h.bf16 %v196
  %s199 = scalar_lea.vmem %s1, 144
  %s200 = scalar_lea.vmem %s0, 432
  %v201 = vld [vmem:[%s200] sm:$0xf]
  %v202 = vunpack.c.l.bf16 %v201
  %v203 = vunpack.c.h.bf16 %v201
  %s204 = scalar_lea.vmem %s1, 432
  %s205 = scalar_lea.vmem %s0, 144
  %v206 = vld [vmem:[%s205] sm:$0xf]
  %v207 = vunpack.c.l.bf16 %v206
  %v208 = vunpack.c.h.bf16 %v206
  %s209 = scalar_lea.vmem %s1, 720
  %s210 = scalar_lea.vmem %s0, 624
  %v211 = vld [vmem:[%s210] sm:$0xf]
  %v212 = vunpack.c.l.bf16 %v211
  %v213 = vunpack.c.h.bf16 %v211
  %s214 = scalar_lea.vmem %s1, 240
  %s215 = scalar_lea.vmem %s0, 336
  %v216 = vld [vmem:[%s215] sm:$0xf]
  %v217 = vunpack.c.l.bf16 %v216
  %v218 = vunpack.c.h.bf16 %v216
  %s219 = scalar_lea.vmem %s1, 528
  %s220 = scalar_lea.vmem %s0, 48
  %v221 = vld [vmem:[%s220] sm:$0xf]
  %v222 = vunpack.c.l.bf16 %v221
  %v223 = vunpack.c.h.bf16 %v221
  %s224 = scalar_lea.vmem %s1, 816
  %s225 = scalar_lea.vmem %s0, 784
  %v226 = vld [vmem:[%s225] sm:$0xf]
  %v227 = vunpack.c.l.bf16 %v226
  %v228 = vunpack.c.h.bf16 %v226
  %s229 = scalar_lea.vmem %s1, 80
  %s230 = scalar_lea.vmem %s0, 496
  %v231 = vld [vmem:[%s230] sm:$0xf]
  %v232 = vunpack.c.l.bf16 %v231
  %v233 = vunpack.c.h.bf16 %v231
  %s234 = scalar_lea.vmem %s1, 368
  %s235 = scalar_lea.vmem %s0, 208
  %v236 = vld [vmem:[%s235] sm:$0xf]
  %v237 = vunpack.c.l.bf16 %v236
  %v238 = vunpack.c.h.bf16 %v236
  %s239 = scalar_lea.vmem %s1, 656
  %s240 = scalar_lea.vmem %s0, 688
  %v241 = vld [vmem:[%s240] sm:$0xf]
  %v242 = vunpack.c.l.bf16 %v241
  %v243 = vunpack.c.h.bf16 %v241
  %s244 = scalar_lea.vmem %s1, 176
  %s245 = scalar_lea.vmem %s0, 400
  %v246 = vld [vmem:[%s245] sm:$0xf]
  %v247 = vunpack.c.l.bf16 %v246
  %v248 = vunpack.c.h.bf16 %v246
  %s249 = scalar_lea.vmem %s1, 464
  %s250 = scalar_lea.vmem %s0, 112
  %v251 = vld [vmem:[%s250] sm:$0xf]
  %v252 = vunpack.c.l.bf16 %v251
  %v253 = vunpack.c.h.bf16 %v251
  %s254 = scalar_lea.vmem %s1, 752
  %s255 = scalar_lea.vmem %s0, 592
  %v256 = vld [vmem:[%s255] sm:$0xf]
  %v257 = vunpack.c.l.bf16 %v256
  %v258 = vunpack.c.h.bf16 %v256
  %s259 = scalar_lea.vmem %s1, 272
  %s260 = scalar_lea.vmem %s0, 304
  %v261 = vld [vmem:[%s260] sm:$0xf]
  %v262 = vunpack.c.l.bf16 %v261
  %v263 = vunpack.c.h.bf16 %v261
  %s264 = scalar_lea.vmem %s1, 560
  %s265 = scalar_lea.vmem %s0, 16
  %v266 = vld [vmem:[%s265] sm:$0xf]
  %v267 = vunpack.c.l.bf16 %v266
  %v268 = vunpack.c.h.bf16 %v266
  %s269 = scalar_lea.vmem %s1, 848
  %s270 = scalar_lea.vmem %s0, 836
  %v271 = vld [vmem:[%s270] sm:$0xf]
  %v272 = vunpack.c.l.bf16 %v271
  %v273 = vunpack.c.h.bf16 %v271
  %s274 = scalar_lea.vmem %s1, 4
  %s275 = scalar_lea.vmem %s274, 4294967292
  %v276 = vpack.c.bf16 %v272, %v4
  %277 = vst [vmem:[%s275] sm:$0xff] %v276
  %s278 = scalar_lea.vmem %s0, 548
  %v279 = vld [vmem:[%s278] sm:$0xf]
  %v280 = vunpack.c.l.bf16 %v279
  %v281 = vunpack.c.h.bf16 %v279
  %s282 = scalar_lea.vmem %s1, 292
  %s283 = scalar_lea.vmem %s282, 4294967292
  %v284 = vpack.c.bf16 %v280, %v8
  %285 = vst [vmem:[%s283] sm:$0xff] %v284
  %s286 = scalar_lea.vmem %s0, 260
  %v287 = vld [vmem:[%s286] sm:$0xf]
  %v288 = vunpack.c.l.bf16 %v287
  %v289 = vunpack.c.h.bf16 %v287
  %s290 = scalar_lea.vmem %s1, 580
  %s291 = scalar_lea.vmem %s290, 4294967292
  %v292 = vpack.c.bf16 %v288, %v13
  %293 = vst [vmem:[%s291] sm:$0xff] %v292
  %s294 = scalar_lea.vmem %s0, 740
  %v295 = vld [vmem:[%s294] sm:$0xf]
  %v296 = vunpack.c.l.bf16 %v295
  %v297 = vunpack.c.h.bf16 %v295
  %s298 = scalar_lea.vmem %s1, 100
  %s299 = scalar_lea.vmem %s298, 4294967292
  %v300 = vpack.c.bf16 %v296, %v18
  %301 = vst [vmem:[%s299] sm:$0xff] %v300
  %s302 = scalar_lea.vmem %s0, 452
  %v303 = vld [vmem:[%s302] sm:$0xf]
  %v304 = vunpack.c.l.bf16 %v303
  %v305 = vunpack.c.h.bf16 %v303
  %s306 = scalar_lea.vmem %s1, 388
  %s307 = scalar_lea.vmem %s306, 4294967292
  %v308 = vpack.c.bf16 %v304, %v23
  %309 = vst [vmem:[%s307] sm:$0xff] %v308
  %s310 = scalar_lea.vmem %s0, 164
  %v311 = vld [vmem:[%s310] sm:$0xf]
  %v312 = vunpack.c.l.bf16 %v311
  %v313 = vunpack.c.h.bf16 %v311
  %s314 = scalar_lea.vmem %s1, 676
  %s315 = scalar_lea.vmem %s314, 4294967292
  %v316 = vpack.c.bf16 %v312, %v28
  %317 = vst [vmem:[%s315] sm:$0xff] %v316
  %s318 = scalar_lea.vmem %s0, 644
  %v319 = vld [vmem:[%s318] sm:$0xf]
  %v320 = vunpack.c.l.bf16 %v319
  %v321 = vunpack.c.h.bf16 %v319
  %s322 = scalar_lea.vmem %s1, 196
  %s323 = scalar_lea.vmem %s322, 4294967292
  %v324 = vpack.c.bf16 %v320, %v33
  %325 = vst [vmem:[%s323] sm:$0xff] %v324
  %s326 = scalar_lea.vmem %s0, 356
  %v327 = vld [vmem:[%s326] sm:$0xf]
  %v328 = vunpack.c.l.bf16 %v327
  %v329 = vunpack.c.h.bf16 %v327
  %s330 = scalar_lea.vmem %s1, 484
  %s331 = scalar_lea.vmem %s330, 4294967292
  %v332 = vpack.c.bf16 %v328, %v38
  %333 = vst [vmem:[%s331] sm:$0xff] %v332
  %s334 = scalar_lea.vmem %s0, 68
  %v335 = vld [vmem:[%s334] sm:$0xf]
  %v336 = vunpack.c.l.bf16 %v335
  %v337 = vunpack.c.h.bf16 %v335
  %s338 = scalar_lea.vmem %s1, 772
  %s339 = scalar_lea.vmem %s338, 4294967292
  %v340 = vpack.c.bf16 %v336, %v43
  %341 = vst [vmem:[%s339] sm:$0xff] %v340
  %s342 = scalar_lea.vmem %s0, 804
  %v343 = vld [vmem:[%s342] sm:$0xf]
  %v344 = vunpack.c.l.bf16 %v343
  %v345 = vunpack.c.h.bf16 %v343
  %s346 = scalar_lea.vmem %s1, 36
  %s347 = scalar_lea.vmem %s346, 4294967292
  %v348 = vpack.c.bf16 %v344, %v48
  %349 = vst [vmem:[%s347] sm:$0xff] %v348
  %s350 = scalar_lea.vmem %s0, 516
  %v351 = vld [vmem:[%s350] sm:$0xf]
  %v352 = vunpack.c.l.bf16 %v351
  %v353 = vunpack.c.h.bf16 %v351
  %s354 = scalar_lea.vmem %s1, 324
  %s355 = scalar_lea.vmem %s354, 4294967292
  %v356 = vpack.c.bf16 %v352, %v53
  %357 = vst [vmem:[%s355] sm:$0xff] %v356
  %s358 = scalar_lea.vmem %s0, 228
  %v359 = vld [vmem:[%s358] sm:$0xf]
  %v360 = vunpack.c.l.bf16 %v359
  %v361 = vunpack.c.h.bf16 %v359
  %s362 = scalar_lea.vmem %s1, 612
  %s363 = scalar_lea.vmem %s362, 4294967292
  %v364 = vpack.c.bf16 %v360, %v58
  %365 = vst [vmem:[%s363] sm:$0xff] %v364
  %s366 = scalar_lea.vmem %s0, 708
  %v367 = vld [vmem:[%s366] sm:$0xf]
  %v368 = vunpack.c.l.bf16 %v367
  %v369 = vunpack.c.h.bf16 %v367
  %s370 = scalar_lea.vmem %s1, 132
  %s371 = scalar_lea.vmem %s370, 4294967292
  %v372 = vpack.c.bf16 %v368, %v63
  %373 = vst [vmem:[%s371] sm:$0xff] %v372
  %s374 = scalar_lea.vmem %s0, 420
  %v375 = vld [vmem:[%s374] sm:$0xf]
  %v376 = vunpack.c.l.bf16 %v375
  %v377 = vunpack.c.h.bf16 %v375
  %s378 = scalar_lea.vmem %s1, 420
  %s379 = scalar_lea.vmem %s378, 4294967292
  %v380 = vpack.c.bf16 %v376, %v68
  %381 = vst [vmem:[%s379] sm:$0xff] %v380
  %s382 = scalar_lea.vmem %s0, 132
  %v383 = vld [vmem:[%s382] sm:$0xf]
  %v384 = vunpack.c.l.bf16 %v383
  %v385 = vunpack.c.h.bf16 %v383
  %s386 = scalar_lea.vmem %s1, 708
  %s387 = scalar_lea.vmem %s386, 4294967292
  %v388 = vpack.c.bf16 %v384, %v73
  %389 = vst [vmem:[%s387] sm:$0xff] %v388
  %s390 = scalar_lea.vmem %s0, 612
  %v391 = vld [vmem:[%s390] sm:$0xf]
  %v392 = vunpack.c.l.bf16 %v391
  %v393 = vunpack.c.h.bf16 %v391
  %s394 = scalar_lea.vmem %s1, 228
  %s395 = scalar_lea.vmem %s394, 4294967292
  %v396 = vpack.c.bf16 %v392, %v78
  %397 = vst [vmem:[%s395] sm:$0xff] %v396
  %s398 = scalar_lea.vmem %s0, 324
  %v399 = vld [vmem:[%s398] sm:$0xf]
  %v400 = vunpack.c.l.bf16 %v399
  %v401 = vunpack.c.h.bf16 %v399
  %s402 = scalar_lea.vmem %s1, 516
  %s403 = scalar_lea.vmem %s402, 4294967292
  %v404 = vpack.c.bf16 %v400, %v83
  %405 = vst [vmem:[%s403] sm:$0xff] %v404
  %s406 = scalar_lea.vmem %s0, 36
  %v407 = vld [vmem:[%s406] sm:$0xf]
  %v408 = vunpack.c.l.bf16 %v407
  %v409 = vunpack.c.h.bf16 %v407
  %s410 = scalar_lea.vmem %s1, 804
  %s411 = scalar_lea.vmem %s410, 4294967292
  %v412 = vpack.c.bf16 %v408, %v88
  %413 = vst [vmem:[%s411] sm:$0xff] %v412
  %s414 = scalar_lea.vmem %s0, 772
  %v415 = vld [vmem:[%s414] sm:$0xf]
  %v416 = vunpack.c.l.bf16 %v415
  %v417 = vunpack.c.h.bf16 %v415
  %s418 = scalar_lea.vmem %s1, 68
  %s419 = scalar_lea.vmem %s418, 4294967292
  %v420 = vpack.c.bf16 %v416, %v93
  %421 = vst [vmem:[%s419] sm:$0xff] %v420
  %s422 = scalar_lea.vmem %s0, 484
  %v423 = vld [vmem:[%s422] sm:$0xf]
  %v424 = vunpack.c.l.bf16 %v423
  %v425 = vunpack.c.h.bf16 %v423
  %s426 = scalar_lea.vmem %s1, 356
  %s427 = scalar_lea.vmem %s426, 4294967292
  %v428 = vpack.c.bf16 %v424, %v98
  %429 = vst [vmem:[%s427] sm:$0xff] %v428
  %s430 = scalar_lea.vmem %s0, 196
  %v431 = vld [vmem:[%s430] sm:$0xf]
  %v432 = vunpack.c.l.bf16 %v431
  %v433 = vunpack.c.h.bf16 %v431
  %s434 = scalar_lea.vmem %s1, 644
  %s435 = scalar_lea.vmem %s434, 4294967292
  %v436 = vpack.c.bf16 %v432, %v103
  %437 = vst [vmem:[%s435] sm:$0xff] %v436
  %s438 = scalar_lea.vmem %s0, 676
  %v439 = vld [vmem:[%s438] sm:$0xf]
  %v440 = vunpack.c.l.bf16 %v439
  %v441 = vunpack.c.h.bf16 %v439
  %s442 = scalar_lea.vmem %s1, 164
  %s443 = scalar_lea.vmem %s442, 4294967292
  %v444 = vpack.c.bf16 %v440, %v108
  %445 = vst [vmem:[%s443] sm:$0xff] %v444
  %s446 = scalar_lea.vmem %s0, 388
  %v447 = vld [vmem:[%s446] sm:$0xf]
  %v448 = vunpack.c.l.bf16 %v447
  %v449 = vunpack.c.h.bf16 %v447
  %s450 = scalar_lea.vmem %s1, 452
  %s451 = scalar_lea.vmem %s450, 4294967292
  %v452 = vpack.c.bf16 %v448, %v113
  %453 = vst [vmem:[%s451] sm:$0xff] %v452
  %s454 = scalar_lea.vmem %s0, 100
  %v455 = vld [vmem:[%s454] sm:$0xf]
  %v456 = vunpack.c.l.bf16 %v455
  %v457 = vunpack.c.h.bf16 %v455
  %s458 = scalar_lea.vmem %s1, 740
  %s459 = scalar_lea.vmem %s458, 4294967292
  %v460 = vpack.c.bf16 %v456, %v118
  %461 = vst [vmem:[%s459] sm:$0xff] %v460
  %s462 = scalar_lea.vmem %s0, 580
  %v463 = vld [vmem:[%s462] sm:$0xf]
  %v464 = vunpack.c.l.bf16 %v463
  %v465 = vunpack.c.h.bf16 %v463
  %s466 = scalar_lea.vmem %s1, 260
  %s467 = scalar_lea.vmem %s466, 4294967292
  %v468 = vpack.c.bf16 %v464, %v123
  %469 = vst [vmem:[%s467] sm:$0xff] %v468
  %s470 = scalar_lea.vmem %s0, 292
  %v471 = vld [vmem:[%s470] sm:$0xf]
  %v472 = vunpack.c.l.bf16 %v471
  %v473 = vunpack.c.h.bf16 %v471
  %s474 = scalar_lea.vmem %s1, 548
  %s475 = scalar_lea.vmem %s474, 4294967292
  %v476 = vpack.c.bf16 %v472, %v128
  %477 = vst [vmem:[%s475] sm:$0xff] %v476
  %s478 = scalar_lea.vmem %s0, 4
  %v479 = vld [vmem:[%s478] sm:$0xf]
  %v480 = vunpack.c.l.bf16 %v479
  %v481 = vunpack.c.h.bf16 %v479
  %s482 = scalar_lea.vmem %s1, 836
  %s483 = scalar_lea.vmem %s482, 4294967292
  %v484 = vpack.c.bf16 %v480, %v132
  %485 = vst [vmem:[%s483] sm:$0xff] %v484
  %s486 = scalar_lea.vmem %s0, 852
  %v487 = vld [vmem:[%s486] sm:$0xf]
  %v488 = vunpack.c.l.bf16 %v487
  %v489 = vunpack.c.h.bf16 %v487
  %s490 = scalar_lea.vmem %s1, 20
  %s491 = scalar_lea.vmem %s490, 4294967292
  %v492 = vpack.c.bf16 %v488, %v137
  %493 = vst [vmem:[%s491] sm:$0xff] %v492
  %s494 = scalar_lea.vmem %s0, 564
  %v495 = vld [vmem:[%s494] sm:$0xf]
  %v496 = vunpack.c.l.bf16 %v495
  %v497 = vunpack.c.h.bf16 %v495
  %s498 = scalar_lea.vmem %s1, 308
  %s499 = scalar_lea.vmem %s498, 4294967292
  %v500 = vpack.c.bf16 %v496, %v142
  %501 = vst [vmem:[%s499] sm:$0xff] %v500
  %s502 = scalar_lea.vmem %s0, 276
  %v503 = vld [vmem:[%s502] sm:$0xf]
  %v504 = vunpack.c.l.bf16 %v503
  %v505 = vunpack.c.h.bf16 %v503
  %s506 = scalar_lea.vmem %s1, 596
  %s507 = scalar_lea.vmem %s506, 4294967292
  %v508 = vpack.c.bf16 %v504, %v147
  %509 = vst [vmem:[%s507] sm:$0xff] %v508
  %s510 = scalar_lea.vmem %s0, 756
  %v511 = vld [vmem:[%s510] sm:$0xf]
  %v512 = vunpack.c.l.bf16 %v511
  %v513 = vunpack.c.h.bf16 %v511
  %s514 = scalar_lea.vmem %s1, 116
  %s515 = scalar_lea.vmem %s514, 4294967292
  %v516 = vpack.c.bf16 %v512, %v152
  %517 = vst [vmem:[%s515] sm:$0xff] %v516
  %s518 = scalar_lea.vmem %s0, 468
  %v519 = vld [vmem:[%s518] sm:$0xf]
  %v520 = vunpack.c.l.bf16 %v519
  %v521 = vunpack.c.h.bf16 %v519
  %s522 = scalar_lea.vmem %s1, 404
  %s523 = scalar_lea.vmem %s522, 4294967292
  %v524 = vpack.c.bf16 %v520, %v157
  %525 = vst [vmem:[%s523] sm:$0xff] %v524
  %s526 = scalar_lea.vmem %s0, 180
  %v527 = vld [vmem:[%s526] sm:$0xf]
  %v528 = vunpack.c.l.bf16 %v527
  %v529 = vunpack.c.h.bf16 %v527
  %s530 = scalar_lea.vmem %s1, 692
  %s531 = scalar_lea.vmem %s530, 4294967292
  %v532 = vpack.c.bf16 %v528, %v162
  %533 = vst [vmem:[%s531] sm:$0xff] %v532
  %s534 = scalar_lea.vmem %s0, 660
  %v535 = vld [vmem:[%s534] sm:$0xf]
  %v536 = vunpack.c.l.bf16 %v535
  %v537 = vunpack.c.h.bf16 %v535
  %s538 = scalar_lea.vmem %s1, 212
  %s539 = scalar_lea.vmem %s538, 4294967292
  %v540 = vpack.c.bf16 %v536, %v167
  %541 = vst [vmem:[%s539] sm:$0xff] %v540
  %s542 = scalar_lea.vmem %s0, 372
  %v543 = vld [vmem:[%s542] sm:$0xf]
  %v544 = vunpack.c.l.bf16 %v543
  %v545 = vunpack.c.h.bf16 %v543
  %s546 = scalar_lea.vmem %s1, 500
  %s547 = scalar_lea.vmem %s546, 4294967292
  %v548 = vpack.c.bf16 %v544, %v172
  %549 = vst [vmem:[%s547] sm:$0xff] %v548
  %s550 = scalar_lea.vmem %s0, 84
  %v551 = vld [vmem:[%s550] sm:$0xf]
  %v552 = vunpack.c.l.bf16 %v551
  %v553 = vunpack.c.h.bf16 %v551
  %s554 = scalar_lea.vmem %s1, 788
  %s555 = scalar_lea.vmem %s554, 4294967292
  %v556 = vpack.c.bf16 %v552, %v177
  %557 = vst [vmem:[%s555] sm:$0xff] %v556
  %s558 = scalar_lea.vmem %s0, 820
  %v559 = vld [vmem:[%s558] sm:$0xf]
  %v560 = vunpack.c.l.bf16 %v559
  %v561 = vunpack.c.h.bf16 %v559
  %s562 = scalar_lea.vmem %s1, 52
  %s563 = scalar_lea.vmem %s562, 4294967292
  %v564 = vpack.c.bf16 %v560, %v182
  %565 = vst [vmem:[%s563] sm:$0xff] %v564
  %s566 = scalar_lea.vmem %s0, 532
  %v567 = vld [vmem:[%s566] sm:$0xf]
  %v568 = vunpack.c.l.bf16 %v567
  %v569 = vunpack.c.h.bf16 %v567
  %s570 = scalar_lea.vmem %s1, 340
  %s571 = scalar_lea.vmem %s570, 4294967292
  %v572 = vpack.c.bf16 %v568, %v187
  %573 = vst [vmem:[%s571] sm:$0xff] %v572
  %s574 = scalar_lea.vmem %s0, 244
  %v575 = vld [vmem:[%s574] sm:$0xf]
  %v576 = vunpack.c.l.bf16 %v575
  %v577 = vunpack.c.h.bf16 %v575
  %s578 = scalar_lea.vmem %s1, 628
  %s579 = scalar_lea.vmem %s578, 4294967292
  %v580 = vpack.c.bf16 %v576, %v192
  %581 = vst [vmem:[%s579] sm:$0xff] %v580
  %s582 = scalar_lea.vmem %s0, 724
  %v583 = vld [vmem:[%s582] sm:$0xf]
  %v584 = vunpack.c.l.bf16 %v583
  %v585 = vunpack.c.h.bf16 %v583
  %s586 = scalar_lea.vmem %s1, 148
  %s587 = scalar_lea.vmem %s586, 4294967292
  %v588 = vpack.c.bf16 %v584, %v197
  %589 = vst [vmem:[%s587] sm:$0xff] %v588
  %s590 = scalar_lea.vmem %s0, 436
  %v591 = vld [vmem:[%s590] sm:$0xf]
  %v592 = vunpack.c.l.bf16 %v591
  %v593 = vunpack.c.h.bf16 %v591
  %s594 = scalar_lea.vmem %s1, 436
  %s595 = scalar_lea.vmem %s594, 4294967292
  %v596 = vpack.c.bf16 %v592, %v202
  %597 = vst [vmem:[%s595] sm:$0xff] %v596
  %s598 = scalar_lea.vmem %s0, 148
  %v599 = vld [vmem:[%s598] sm:$0xf]
  %v600 = vunpack.c.l.bf16 %v599
  %v601 = vunpack.c.h.bf16 %v599
  %s602 = scalar_lea.vmem %s1, 724
  %s603 = scalar_lea.vmem %s602, 4294967292
  %v604 = vpack.c.bf16 %v600, %v207
  %605 = vst [vmem:[%s603] sm:$0xff] %v604
  %s606 = scalar_lea.vmem %s0, 628
  %v607 = vld [vmem:[%s606] sm:$0xf]
  %v608 = vunpack.c.l.bf16 %v607
  %v609 = vunpack.c.h.bf16 %v607
  %s610 = scalar_lea.vmem %s1, 244
  %s611 = scalar_lea.vmem %s610, 4294967292
  %v612 = vpack.c.bf16 %v608, %v212
  %613 = vst [vmem:[%s611] sm:$0xff] %v612
  %s614 = scalar_lea.vmem %s0, 340
  %v615 = vld [vmem:[%s614] sm:$0xf]
  %v616 = vunpack.c.l.bf16 %v615
  %v617 = vunpack.c.h.bf16 %v615
  %s618 = scalar_lea.vmem %s1, 532
  %s619 = scalar_lea.vmem %s618, 4294967292
  %v620 = vpack.c.bf16 %v616, %v217
  %621 = vst [vmem:[%s619] sm:$0xff] %v620
  %s622 = scalar_lea.vmem %s0, 52
  %v623 = vld [vmem:[%s622] sm:$0xf]
  %v624 = vunpack.c.l.bf16 %v623
  %v625 = vunpack.c.h.bf16 %v623
  %s626 = scalar_lea.vmem %s1, 820
  %s627 = scalar_lea.vmem %s626, 4294967292
  %v628 = vpack.c.bf16 %v624, %v222
  %629 = vst [vmem:[%s627] sm:$0xff] %v628
  %s630 = scalar_lea.vmem %s0, 788
  %v631 = vld [vmem:[%s630] sm:$0xf]
  %v632 = vunpack.c.l.bf16 %v631
  %v633 = vunpack.c.h.bf16 %v631
  %s634 = scalar_lea.vmem %s1, 84
  %s635 = scalar_lea.vmem %s634, 4294967292
  %v636 = vpack.c.bf16 %v632, %v227
  %637 = vst [vmem:[%s635] sm:$0xff] %v636
  %s638 = scalar_lea.vmem %s0, 500
  %v639 = vld [vmem:[%s638] sm:$0xf]
  %v640 = vunpack.c.l.bf16 %v639
  %v641 = vunpack.c.h.bf16 %v639
  %s642 = scalar_lea.vmem %s1, 372
  %s643 = scalar_lea.vmem %s642, 4294967292
  %v644 = vpack.c.bf16 %v640, %v232
  %645 = vst [vmem:[%s643] sm:$0xff] %v644
  %s646 = scalar_lea.vmem %s0, 212
  %v647 = vld [vmem:[%s646] sm:$0xf]
  %v648 = vunpack.c.l.bf16 %v647
  %v649 = vunpack.c.h.bf16 %v647
  %s650 = scalar_lea.vmem %s1, 660
  %s651 = scalar_lea.vmem %s650, 4294967292
  %v652 = vpack.c.bf16 %v648, %v237
  %653 = vst [vmem:[%s651] sm:$0xff] %v652
  %s654 = scalar_lea.vmem %s0, 692
  %v655 = vld [vmem:[%s654] sm:$0xf]
  %v656 = vunpack.c.l.bf16 %v655
  %v657 = vunpack.c.h.bf16 %v655
  %s658 = scalar_lea.vmem %s1, 180
  %s659 = scalar_lea.vmem %s658, 4294967292
  %v660 = vpack.c.bf16 %v656, %v242
  %661 = vst [vmem:[%s659] sm:$0xff] %v660
  %s662 = scalar_lea.vmem %s0, 404
  %v663 = vld [vmem:[%s662] sm:$0xf]
  %v664 = vunpack.c.l.bf16 %v663
  %v665 = vunpack.c.h.bf16 %v663
  %s666 = scalar_lea.vmem %s1, 468
  %s667 = scalar_lea.vmem %s666, 4294967292
  %v668 = vpack.c.bf16 %v664, %v247
  %669 = vst [vmem:[%s667] sm:$0xff] %v668
  %s670 = scalar_lea.vmem %s0, 116
  %v671 = vld [vmem:[%s670] sm:$0xf]
  %v672 = vunpack.c.l.bf16 %v671
  %v673 = vunpack.c.h.bf16 %v671
  %s674 = scalar_lea.vmem %s1, 756
  %s675 = scalar_lea.vmem %s674, 4294967292
  %v676 = vpack.c.bf16 %v672, %v252
  %677 = vst [vmem:[%s675] sm:$0xff] %v676
  %s678 = scalar_lea.vmem %s0, 596
  %v679 = vld [vmem:[%s678] sm:$0xf]
  %v680 = vunpack.c.l.bf16 %v679
  %v681 = vunpack.c.h.bf16 %v679
  %s682 = scalar_lea.vmem %s1, 276
  %s683 = scalar_lea.vmem %s682, 4294967292
  %v684 = vpack.c.bf16 %v680, %v257
  %685 = vst [vmem:[%s683] sm:$0xff] %v684
  %s686 = scalar_lea.vmem %s0, 308
  %v687 = vld [vmem:[%s686] sm:$0xf]
  %v688 = vunpack.c.l.bf16 %v687
  %v689 = vunpack.c.h.bf16 %v687
  %s690 = scalar_lea.vmem %s1, 564
  %s691 = scalar_lea.vmem %s690, 4294967292
  %v692 = vpack.c.bf16 %v688, %v262
  %693 = vst [vmem:[%s691] sm:$0xff] %v692
  %s694 = scalar_lea.vmem %s0, 20
  %v695 = vld [vmem:[%s694] sm:$0xf]
  %v696 = vunpack.c.l.bf16 %v695
  %v697 = vunpack.c.h.bf16 %v695
  %s698 = scalar_lea.vmem %s1, 852
  %s699 = scalar_lea.vmem %s698, 4294967292
  %v700 = vpack.c.bf16 %v696, %v267
  %701 = vst [vmem:[%s699] sm:$0xff] %v700
  %s702 = scalar_lea.vmem %s0, 840
  %v703 = vld [vmem:[%s702] sm:$0xf]
  %v704 = vunpack.c.l.bf16 %v703
  %v705 = vunpack.c.h.bf16 %v703
  %s706 = scalar_lea.vmem %s1, 8
  %s707 = scalar_lea.vmem %s0, 552
  %v708 = vld [vmem:[%s707] sm:$0xf]
  %v709 = vunpack.c.l.bf16 %v708
  %v710 = vunpack.c.h.bf16 %v708
  %s711 = scalar_lea.vmem %s1, 296
  %s712 = scalar_lea.vmem %s0, 264
  %v713 = vld [vmem:[%s712] sm:$0xf]
  %v714 = vunpack.c.l.bf16 %v713
  %v715 = vunpack.c.h.bf16 %v713
  %s716 = scalar_lea.vmem %s1, 584
  %s717 = scalar_lea.vmem %s0, 744
  %v718 = vld [vmem:[%s717] sm:$0xf]
  %v719 = vunpack.c.l.bf16 %v718
  %v720 = vunpack.c.h.bf16 %v718
  %s721 = scalar_lea.vmem %s1, 104
  %s722 = scalar_lea.vmem %s0, 456
  %v723 = vld [vmem:[%s722] sm:$0xf]
  %v724 = vunpack.c.l.bf16 %v723
  %v725 = vunpack.c.h.bf16 %v723
  %s726 = scalar_lea.vmem %s1, 392
  %s727 = scalar_lea.vmem %s0, 168
  %v728 = vld [vmem:[%s727] sm:$0xf]
  %v729 = vunpack.c.l.bf16 %v728
  %v730 = vunpack.c.h.bf16 %v728
  %s731 = scalar_lea.vmem %s1, 680
  %s732 = scalar_lea.vmem %s0, 648
  %v733 = vld [vmem:[%s732] sm:$0xf]
  %v734 = vunpack.c.l.bf16 %v733
  %v735 = vunpack.c.h.bf16 %v733
  %s736 = scalar_lea.vmem %s1, 200
  %s737 = scalar_lea.vmem %s0, 360
  %v738 = vld [vmem:[%s737] sm:$0xf]
  %v739 = vunpack.c.l.bf16 %v738
  %v740 = vunpack.c.h.bf16 %v738
  %s741 = scalar_lea.vmem %s1, 488
  %s742 = scalar_lea.vmem %s0, 72
  %v743 = vld [vmem:[%s742] sm:$0xf]
  %v744 = vunpack.c.l.bf16 %v743
  %v745 = vunpack.c.h.bf16 %v743
  %s746 = scalar_lea.vmem %s1, 776
  %s747 = scalar_lea.vmem %s0, 808
  %v748 = vld [vmem:[%s747] sm:$0xf]
  %v749 = vunpack.c.l.bf16 %v748
  %v750 = vunpack.c.h.bf16 %v748
  %s751 = scalar_lea.vmem %s1, 40
  %s752 = scalar_lea.vmem %s0, 520
  %v753 = vld [vmem:[%s752] sm:$0xf]
  %v754 = vunpack.c.l.bf16 %v753
  %v755 = vunpack.c.h.bf16 %v753
  %s756 = scalar_lea.vmem %s1, 328
  %s757 = scalar_lea.vmem %s0, 232
  %v758 = vld [vmem:[%s757] sm:$0xf]
  %v759 = vunpack.c.l.bf16 %v758
  %v760 = vunpack.c.h.bf16 %v758
  %s761 = scalar_lea.vmem %s1, 616
  %s762 = scalar_lea.vmem %s0, 712
  %v763 = vld [vmem:[%s762] sm:$0xf]
  %v764 = vunpack.c.l.bf16 %v763
  %v765 = vunpack.c.h.bf16 %v763
  %s766 = scalar_lea.vmem %s1, 136
  %s767 = scalar_lea.vmem %s0, 424
  %v768 = vld [vmem:[%s767] sm:$0xf]
  %v769 = vunpack.c.l.bf16 %v768
  %v770 = vunpack.c.h.bf16 %v768
  %s771 = scalar_lea.vmem %s1, 424
  %s772 = scalar_lea.vmem %s0, 136
  %v773 = vld [vmem:[%s772] sm:$0xf]
  %v774 = vunpack.c.l.bf16 %v773
  %v775 = vunpack.c.h.bf16 %v773
  %s776 = scalar_lea.vmem %s1, 712
  %s777 = scalar_lea.vmem %s0, 616
  %v778 = vld [vmem:[%s777] sm:$0xf]
  %v779 = vunpack.c.l.bf16 %v778
  %v780 = vunpack.c.h.bf16 %v778
  %s781 = scalar_lea.vmem %s1, 232
  %s782 = scalar_lea.vmem %s0, 328
  %v783 = vld [vmem:[%s782] sm:$0xf]
  %v784 = vunpack.c.l.bf16 %v783
  %v785 = vunpack.c.h.bf16 %v783
  %s786 = scalar_lea.vmem %s1, 520
  %s787 = scalar_lea.vmem %s0, 40
  %v788 = vld [vmem:[%s787] sm:$0xf]
  %v789 = vunpack.c.l.bf16 %v788
  %v790 = vunpack.c.h.bf16 %v788
  %s791 = scalar_lea.vmem %s1, 808
  %s792 = scalar_lea.vmem %s0, 776
  %v793 = vld [vmem:[%s792] sm:$0xf]
  %v794 = vunpack.c.l.bf16 %v793
  %v795 = vunpack.c.h.bf16 %v793
  %s796 = scalar_lea.vmem %s1, 72
  %s797 = scalar_lea.vmem %s0, 488
  %v798 = vld [vmem:[%s797] sm:$0xf]
  %v799 = vunpack.c.l.bf16 %v798
  %v800 = vunpack.c.h.bf16 %v798
  %s801 = scalar_lea.vmem %s1, 360
  %s802 = scalar_lea.vmem %s0, 200
  %v803 = vld [vmem:[%s802] sm:$0xf]
  %v804 = vunpack.c.l.bf16 %v803
  %v805 = vunpack.c.h.bf16 %v803
  %s806 = scalar_lea.vmem %s1, 648
  %s807 = scalar_lea.vmem %s0, 680
  %v808 = vld [vmem:[%s807] sm:$0xf]
  %v809 = vunpack.c.l.bf16 %v808
  %v810 = vunpack.c.h.bf16 %v808
  %s811 = scalar_lea.vmem %s1, 168
  %s812 = scalar_lea.vmem %s0, 392
  %v813 = vld [vmem:[%s812] sm:$0xf]
  %v814 = vunpack.c.l.bf16 %v813
  %v815 = vunpack.c.h.bf16 %v813
  %s816 = scalar_lea.vmem %s1, 456
  %s817 = scalar_lea.vmem %s0, 104
  %v818 = vld [vmem:[%s817] sm:$0xf]
  %v819 = vunpack.c.l.bf16 %v818
  %v820 = vunpack.c.h.bf16 %v818
  %s821 = scalar_lea.vmem %s1, 744
  %s822 = scalar_lea.vmem %s0, 584
  %v823 = vld [vmem:[%s822] sm:$0xf]
  %v824 = vunpack.c.l.bf16 %v823
  %v825 = vunpack.c.h.bf16 %v823
  %s826 = scalar_lea.vmem %s1, 264
  %s827 = scalar_lea.vmem %s0, 296
  %v828 = vld [vmem:[%s827] sm:$0xf]
  %v829 = vunpack.c.l.bf16 %v828
  %v830 = vunpack.c.h.bf16 %v828
  %s831 = scalar_lea.vmem %s1, 552
  %s832 = scalar_lea.vmem %s0, 8
  %v833 = vld [vmem:[%s832] sm:$0xf]
  %v834 = vunpack.c.l.bf16 %v833
  %v835 = vunpack.c.h.bf16 %v833
  %s836 = scalar_lea.vmem %s1, 840
  %s837 = scalar_lea.vmem %s0, 856
  %v838 = vld [vmem:[%s837] sm:$0xf]
  %v839 = vunpack.c.l.bf16 %v838
  %v840 = vunpack.c.h.bf16 %v838
  %s841 = scalar_lea.vmem %s1, 24
  %s842 = scalar_lea.vmem %s0, 568
  %v843 = vld [vmem:[%s842] sm:$0xf]
  %v844 = vunpack.c.l.bf16 %v843
  %v845 = vunpack.c.h.bf16 %v843
  %s846 = scalar_lea.vmem %s1, 312
  %s847 = scalar_lea.vmem %s0, 280
  %v848 = vld [vmem:[%s847] sm:$0xf]
  %v849 = vunpack.c.l.bf16 %v848
  %v850 = vunpack.c.h.bf16 %v848
  %s851 = scalar_lea.vmem %s1, 600
  %s852 = scalar_lea.vmem %s0, 760
  %v853 = vld [vmem:[%s852] sm:$0xf]
  %v854 = vunpack.c.l.bf16 %v853
  %v855 = vunpack.c.h.bf16 %v853
  %s856 = scalar_lea.vmem %s1, 120
  %s857 = scalar_lea.vmem %s0, 472
  %v858 = vld [vmem:[%s857] sm:$0xf]
  %v859 = vunpack.c.l.bf16 %v858
  %v860 = vunpack.c.h.bf16 %v858
  %s861 = scalar_lea.vmem %s1, 408
  %s862 = scalar_lea.vmem %s0, 184
  %v863 = vld [vmem:[%s862] sm:$0xf]
  %v864 = vunpack.c.l.bf16 %v863
  %v865 = vunpack.c.h.bf16 %v863
  %s866 = scalar_lea.vmem %s1, 696
  %s867 = scalar_lea.vmem %s0, 664
  %v868 = vld [vmem:[%s867] sm:$0xf]
  %v869 = vunpack.c.l.bf16 %v868
  %v870 = vunpack.c.h.bf16 %v868
  %s871 = scalar_lea.vmem %s1, 216
  %s872 = scalar_lea.vmem %s0, 376
  %v873 = vld [vmem:[%s872] sm:$0xf]
  %v874 = vunpack.c.l.bf16 %v873
  %v875 = vunpack.c.h.bf16 %v873
  %s876 = scalar_lea.vmem %s1, 504
  %s877 = scalar_lea.vmem %s0, 88
  %v878 = vld [vmem:[%s877] sm:$0xf]
  %v879 = vunpack.c.l.bf16 %v878
  %v880 = vunpack.c.h.bf16 %v878
  %s881 = scalar_lea.vmem %s1, 792
  %s882 = scalar_lea.vmem %s0, 824
  %v883 = vld [vmem:[%s882] sm:$0xf]
  %v884 = vunpack.c.l.bf16 %v883
  %v885 = vunpack.c.h.bf16 %v883
  %s886 = scalar_lea.vmem %s1, 56
  %s887 = scalar_lea.vmem %s0, 536
  %v888 = vld [vmem:[%s887] sm:$0xf]
  %v889 = vunpack.c.l.bf16 %v888
  %v890 = vunpack.c.h.bf16 %v888
  %s891 = scalar_lea.vmem %s1, 344
  %s892 = scalar_lea.vmem %s0, 248
  %v893 = vld [vmem:[%s892] sm:$0xf]
  %v894 = vunpack.c.l.bf16 %v893
  %v895 = vunpack.c.h.bf16 %v893
  %s896 = scalar_lea.vmem %s1, 632
  %s897 = scalar_lea.vmem %s0, 728
  %v898 = vld [vmem:[%s897] sm:$0xf]
  %v899 = vunpack.c.l.bf16 %v898
  %v900 = vunpack.c.h.bf16 %v898
  %s901 = scalar_lea.vmem %s1, 152
  %s902 = scalar_lea.vmem %s0, 440
  %v903 = vld [vmem:[%s902] sm:$0xf]
  %v904 = vunpack.c.l.bf16 %v903
  %v905 = vunpack.c.h.bf16 %v903
  %s906 = scalar_lea.vmem %s1, 440
  %s907 = scalar_lea.vmem %s0, 152
  %v908 = vld [vmem:[%s907] sm:$0xf]
  %v909 = vunpack.c.l.bf16 %v908
  %v910 = vunpack.c.h.bf16 %v908
  %s911 = scalar_lea.vmem %s1, 728
  %s912 = scalar_lea.vmem %s0, 632
  %v913 = vld [vmem:[%s912] sm:$0xf]
  %v914 = vunpack.c.l.bf16 %v913
  %v915 = vunpack.c.h.bf16 %v913
  %s916 = scalar_lea.vmem %s1, 248
  %s917 = scalar_lea.vmem %s0, 344
  %v918 = vld [vmem:[%s917] sm:$0xf]
  %v919 = vunpack.c.l.bf16 %v918
  %v920 = vunpack.c.h.bf16 %v918
  %s921 = scalar_lea.vmem %s1, 536
  %s922 = scalar_lea.vmem %s0, 56
  %v923 = vld [vmem:[%s922] sm:$0xf]
  %v924 = vunpack.c.l.bf16 %v923
  %v925 = vunpack.c.h.bf16 %v923
  %s926 = scalar_lea.vmem %s1, 824
  %s927 = scalar_lea.vmem %s0, 792
  %v928 = vld [vmem:[%s927] sm:$0xf]
  %v929 = vunpack.c.l.bf16 %v928
  %v930 = vunpack.c.h.bf16 %v928
  %s931 = scalar_lea.vmem %s1, 88
  %s932 = scalar_lea.vmem %s0, 504
  %v933 = vld [vmem:[%s932] sm:$0xf]
  %v934 = vunpack.c.l.bf16 %v933
  %v935 = vunpack.c.h.bf16 %v933
  %s936 = scalar_lea.vmem %s1, 376
  %s937 = scalar_lea.vmem %s0, 216
  %v938 = vld [vmem:[%s937] sm:$0xf]
  %v939 = vunpack.c.l.bf16 %v938
  %v940 = vunpack.c.h.bf16 %v938
  %s941 = scalar_lea.vmem %s1, 664
  %s942 = scalar_lea.vmem %s0, 696
  %v943 = vld [vmem:[%s942] sm:$0xf]
  %v944 = vunpack.c.l.bf16 %v943
  %v945 = vunpack.c.h.bf16 %v943
  %s946 = scalar_lea.vmem %s1, 184
  %s947 = scalar_lea.vmem %s0, 408
  %v948 = vld [vmem:[%s947] sm:$0xf]
  %v949 = vunpack.c.l.bf16 %v948
  %v950 = vunpack.c.h.bf16 %v948
  %s951 = scalar_lea.vmem %s1, 472
  %s952 = scalar_lea.vmem %s0, 120
  %v953 = vld [vmem:[%s952] sm:$0xf]
  %v954 = vunpack.c.l.bf16 %v953
  %v955 = vunpack.c.h.bf16 %v953
  %s956 = scalar_lea.vmem %s1, 760
  %s957 = scalar_lea.vmem %s0, 600
  %v958 = vld [vmem:[%s957] sm:$0xf]
  %v959 = vunpack.c.l.bf16 %v958
  %v960 = vunpack.c.h.bf16 %v958
  %s961 = scalar_lea.vmem %s1, 280
  %s962 = scalar_lea.vmem %s0, 312
  %v963 = vld [vmem:[%s962] sm:$0xf]
  %v964 = vunpack.c.l.bf16 %v963
  %v965 = vunpack.c.h.bf16 %v963
  %s966 = scalar_lea.vmem %s1, 568
  %s967 = scalar_lea.vmem %s0, 24
  %v968 = vld [vmem:[%s967] sm:$0xf]
  %v969 = vunpack.c.l.bf16 %v968
  %v970 = vunpack.c.h.bf16 %v968
  %s971 = scalar_lea.vmem %s1, 856
  %s972 = scalar_lea.vmem %s0, 844
  %v973 = vld [vmem:[%s972] sm:$0xf]
  %v974 = vunpack.c.l.bf16 %v973
  %v975 = vunpack.c.h.bf16 %v973
  %s976 = scalar_lea.vmem %s1, 12
  %s977 = scalar_lea.vmem %s976, 4294967292
  %v978 = vpack.c.bf16 %v974, %v704
  %979 = vst [vmem:[%s977] sm:$0xff] %v978
  %s980 = scalar_lea.vmem %s0, 556
  %v981 = vld [vmem:[%s980] sm:$0xf]
  %v982 = vunpack.c.l.bf16 %v981
  %v983 = vunpack.c.h.bf16 %v981
  %s984 = scalar_lea.vmem %s1, 300
  %s985 = scalar_lea.vmem %s984, 4294967292
  %v986 = vpack.c.bf16 %v982, %v709
  %987 = vst [vmem:[%s985] sm:$0xff] %v986
  %s988 = scalar_lea.vmem %s0, 268
  %v989 = vld [vmem:[%s988] sm:$0xf]
  %v990 = vunpack.c.l.bf16 %v989
  %v991 = vunpack.c.h.bf16 %v989
  %s992 = scalar_lea.vmem %s1, 588
  %s993 = scalar_lea.vmem %s992, 4294967292
  %v994 = vpack.c.bf16 %v990, %v714
  %995 = vst [vmem:[%s993] sm:$0xff] %v994
  %s996 = scalar_lea.vmem %s0, 748
  %v997 = vld [vmem:[%s996] sm:$0xf]
  %v998 = vunpack.c.l.bf16 %v997
  %v999 = vunpack.c.h.bf16 %v997
  %s1000 = scalar_lea.vmem %s1, 108
  %s1001 = scalar_lea.vmem %s1000, 4294967292
  %v1002 = vpack.c.bf16 %v998, %v719
  %1003 = vst [vmem:[%s1001] sm:$0xff] %v1002
  %s1004 = scalar_lea.vmem %s0, 460
  %v1005 = vld [vmem:[%s1004] sm:$0xf]
  %v1006 = vunpack.c.l.bf16 %v1005
  %v1007 = vunpack.c.h.bf16 %v1005
  %s1008 = scalar_lea.vmem %s1, 396
  %s1009 = scalar_lea.vmem %s1008, 4294967292
  %v1010 = vpack.c.bf16 %v1006, %v724
  %1011 = vst [vmem:[%s1009] sm:$0xff] %v1010
  %s1012 = scalar_lea.vmem %s0, 172
  %v1013 = vld [vmem:[%s1012] sm:$0xf]
  %v1014 = vunpack.c.l.bf16 %v1013
  %v1015 = vunpack.c.h.bf16 %v1013
  %s1016 = scalar_lea.vmem %s1, 684
  %s1017 = scalar_lea.vmem %s1016, 4294967292
  %v1018 = vpack.c.bf16 %v1014, %v729
  %1019 = vst [vmem:[%s1017] sm:$0xff] %v1018
  %s1020 = scalar_lea.vmem %s0, 652
  %v1021 = vld [vmem:[%s1020] sm:$0xf]
  %v1022 = vunpack.c.l.bf16 %v1021
  %v1023 = vunpack.c.h.bf16 %v1021
  %s1024 = scalar_lea.vmem %s1, 204
  %s1025 = scalar_lea.vmem %s1024, 4294967292
  %v1026 = vpack.c.bf16 %v1022, %v734
  %1027 = vst [vmem:[%s1025] sm:$0xff] %v1026
  %s1028 = scalar_lea.vmem %s0, 364
  %v1029 = vld [vmem:[%s1028] sm:$0xf]
  %v1030 = vunpack.c.l.bf16 %v1029
  %v1031 = vunpack.c.h.bf16 %v1029
  %s1032 = scalar_lea.vmem %s1, 492
  %s1033 = scalar_lea.vmem %s1032, 4294967292
  %v1034 = vpack.c.bf16 %v1030, %v739
  %1035 = vst [vmem:[%s1033] sm:$0xff] %v1034
  %s1036 = scalar_lea.vmem %s0, 76
  %v1037 = vld [vmem:[%s1036] sm:$0xf]
  %v1038 = vunpack.c.l.bf16 %v1037
  %v1039 = vunpack.c.h.bf16 %v1037
  %s1040 = scalar_lea.vmem %s1, 780
  %s1041 = scalar_lea.vmem %s1040, 4294967292
  %v1042 = vpack.c.bf16 %v1038, %v744
  %1043 = vst [vmem:[%s1041] sm:$0xff] %v1042
  %s1044 = scalar_lea.vmem %s0, 812
  %v1045 = vld [vmem:[%s1044] sm:$0xf]
  %v1046 = vunpack.c.l.bf16 %v1045
  %v1047 = vunpack.c.h.bf16 %v1045
  %s1048 = scalar_lea.vmem %s1, 44
  %s1049 = scalar_lea.vmem %s1048, 4294967292
  %v1050 = vpack.c.bf16 %v1046, %v749
  %1051 = vst [vmem:[%s1049] sm:$0xff] %v1050
  %s1052 = scalar_lea.vmem %s0, 524
  %v1053 = vld [vmem:[%s1052] sm:$0xf]
  %v1054 = vunpack.c.l.bf16 %v1053
  %v1055 = vunpack.c.h.bf16 %v1053
  %s1056 = scalar_lea.vmem %s1, 332
  %s1057 = scalar_lea.vmem %s1056, 4294967292
  %v1058 = vpack.c.bf16 %v1054, %v754
  %1059 = vst [vmem:[%s1057] sm:$0xff] %v1058
  %s1060 = scalar_lea.vmem %s0, 236
  %v1061 = vld [vmem:[%s1060] sm:$0xf]
  %v1062 = vunpack.c.l.bf16 %v1061
  %v1063 = vunpack.c.h.bf16 %v1061
  %s1064 = scalar_lea.vmem %s1, 620
  %s1065 = scalar_lea.vmem %s1064, 4294967292
  %v1066 = vpack.c.bf16 %v1062, %v759
  %1067 = vst [vmem:[%s1065] sm:$0xff] %v1066
  %s1068 = scalar_lea.vmem %s0, 716
  %v1069 = vld [vmem:[%s1068] sm:$0xf]
  %v1070 = vunpack.c.l.bf16 %v1069
  %v1071 = vunpack.c.h.bf16 %v1069
  %s1072 = scalar_lea.vmem %s1, 140
  %s1073 = scalar_lea.vmem %s1072, 4294967292
  %v1074 = vpack.c.bf16 %v1070, %v764
  %1075 = vst [vmem:[%s1073] sm:$0xff] %v1074
  %s1076 = scalar_lea.vmem %s0, 428
  %v1077 = vld [vmem:[%s1076] sm:$0xf]
  %v1078 = vunpack.c.l.bf16 %v1077
  %v1079 = vunpack.c.h.bf16 %v1077
  %s1080 = scalar_lea.vmem %s1, 428
  %s1081 = scalar_lea.vmem %s1080, 4294967292
  %v1082 = vpack.c.bf16 %v1078, %v769
  %1083 = vst [vmem:[%s1081] sm:$0xff] %v1082
  %s1084 = scalar_lea.vmem %s0, 140
  %v1085 = vld [vmem:[%s1084] sm:$0xf]
  %v1086 = vunpack.c.l.bf16 %v1085
  %v1087 = vunpack.c.h.bf16 %v1085
  %s1088 = scalar_lea.vmem %s1, 716
  %s1089 = scalar_lea.vmem %s1088, 4294967292
  %v1090 = vpack.c.bf16 %v1086, %v774
  %1091 = vst [vmem:[%s1089] sm:$0xff] %v1090
  %s1092 = scalar_lea.vmem %s0, 620
  %v1093 = vld [vmem:[%s1092] sm:$0xf]
  %v1094 = vunpack.c.l.bf16 %v1093
  %v1095 = vunpack.c.h.bf16 %v1093
  %s1096 = scalar_lea.vmem %s1, 236
  %s1097 = scalar_lea.vmem %s1096, 4294967292
  %v1098 = vpack.c.bf16 %v1094, %v779
  %1099 = vst [vmem:[%s1097] sm:$0xff] %v1098
  %s1100 = scalar_lea.vmem %s0, 332
  %v1101 = vld [vmem:[%s1100] sm:$0xf]
  %v1102 = vunpack.c.l.bf16 %v1101
  %v1103 = vunpack.c.h.bf16 %v1101
  %s1104 = scalar_lea.vmem %s1, 524
  %s1105 = scalar_lea.vmem %s1104, 4294967292
  %v1106 = vpack.c.bf16 %v1102, %v784
  %1107 = vst [vmem:[%s1105] sm:$0xff] %v1106
  %s1108 = scalar_lea.vmem %s0, 44
  %v1109 = vld [vmem:[%s1108] sm:$0xf]
  %v1110 = vunpack.c.l.bf16 %v1109
  %v1111 = vunpack.c.h.bf16 %v1109
  %s1112 = scalar_lea.vmem %s1, 812
  %s1113 = scalar_lea.vmem %s1112, 4294967292
  %v1114 = vpack.c.bf16 %v1110, %v789
  %1115 = vst [vmem:[%s1113] sm:$0xff] %v1114
  %s1116 = scalar_lea.vmem %s0, 780
  %v1117 = vld [vmem:[%s1116] sm:$0xf]
  %v1118 = vunpack.c.l.bf16 %v1117
  %v1119 = vunpack.c.h.bf16 %v1117
  %s1120 = scalar_lea.vmem %s1, 76
  %s1121 = scalar_lea.vmem %s1120, 4294967292
  %v1122 = vpack.c.bf16 %v1118, %v794
  %1123 = vst [vmem:[%s1121] sm:$0xff] %v1122
  %s1124 = scalar_lea.vmem %s0, 492
  %v1125 = vld [vmem:[%s1124] sm:$0xf]
  %v1126 = vunpack.c.l.bf16 %v1125
  %v1127 = vunpack.c.h.bf16 %v1125
  %s1128 = scalar_lea.vmem %s1, 364
  %s1129 = scalar_lea.vmem %s1128, 4294967292
  %v1130 = vpack.c.bf16 %v1126, %v799
  %1131 = vst [vmem:[%s1129] sm:$0xff] %v1130
  %s1132 = scalar_lea.vmem %s0, 204
  %v1133 = vld [vmem:[%s1132] sm:$0xf]
  %v1134 = vunpack.c.l.bf16 %v1133
  %v1135 = vunpack.c.h.bf16 %v1133
  %s1136 = scalar_lea.vmem %s1, 652
  %s1137 = scalar_lea.vmem %s1136, 4294967292
  %v1138 = vpack.c.bf16 %v1134, %v804
  %1139 = vst [vmem:[%s1137] sm:$0xff] %v1138
  %s1140 = scalar_lea.vmem %s0, 684
  %v1141 = vld [vmem:[%s1140] sm:$0xf]
  %v1142 = vunpack.c.l.bf16 %v1141
  %v1143 = vunpack.c.h.bf16 %v1141
  %s1144 = scalar_lea.vmem %s1, 172
  %s1145 = scalar_lea.vmem %s1144, 4294967292
  %v1146 = vpack.c.bf16 %v1142, %v809
  %1147 = vst [vmem:[%s1145] sm:$0xff] %v1146
  %s1148 = scalar_lea.vmem %s0, 396
  %v1149 = vld [vmem:[%s1148] sm:$0xf]
  %v1150 = vunpack.c.l.bf16 %v1149
  %v1151 = vunpack.c.h.bf16 %v1149
  %s1152 = scalar_lea.vmem %s1, 460
  %s1153 = scalar_lea.vmem %s1152, 4294967292
  %v1154 = vpack.c.bf16 %v1150, %v814
  %1155 = vst [vmem:[%s1153] sm:$0xff] %v1154
  %s1156 = scalar_lea.vmem %s0, 108
  %v1157 = vld [vmem:[%s1156] sm:$0xf]
  %v1158 = vunpack.c.l.bf16 %v1157
  %v1159 = vunpack.c.h.bf16 %v1157
  %s1160 = scalar_lea.vmem %s1, 748
  %s1161 = scalar_lea.vmem %s1160, 4294967292
  %v1162 = vpack.c.bf16 %v1158, %v819
  %1163 = vst [vmem:[%s1161] sm:$0xff] %v1162
  %s1164 = scalar_lea.vmem %s0, 588
  %v1165 = vld [vmem:[%s1164] sm:$0xf]
  %v1166 = vunpack.c.l.bf16 %v1165
  %v1167 = vunpack.c.h.bf16 %v1165
  %s1168 = scalar_lea.vmem %s1, 268
  %s1169 = scalar_lea.vmem %s1168, 4294967292
  %v1170 = vpack.c.bf16 %v1166, %v824
  %1171 = vst [vmem:[%s1169] sm:$0xff] %v1170
  %s1172 = scalar_lea.vmem %s0, 300
  %v1173 = vld [vmem:[%s1172] sm:$0xf]
  %v1174 = vunpack.c.l.bf16 %v1173
  %v1175 = vunpack.c.h.bf16 %v1173
  %s1176 = scalar_lea.vmem %s1, 556
  %s1177 = scalar_lea.vmem %s1176, 4294967292
  %v1178 = vpack.c.bf16 %v1174, %v829
  %1179 = vst [vmem:[%s1177] sm:$0xff] %v1178
  %s1180 = scalar_lea.vmem %s0, 12
  %v1181 = vld [vmem:[%s1180] sm:$0xf]
  %v1182 = vunpack.c.l.bf16 %v1181
  %v1183 = vunpack.c.h.bf16 %v1181
  %s1184 = scalar_lea.vmem %s1, 844
  %s1185 = scalar_lea.vmem %s1184, 4294967292
  %v1186 = vpack.c.bf16 %v1182, %v834
  %1187 = vst [vmem:[%s1185] sm:$0xff] %v1186
  %s1188 = scalar_lea.vmem %s0, 860
  %v1189 = vld [vmem:[%s1188] sm:$0xf]
  %v1190 = vunpack.c.l.bf16 %v1189
  %v1191 = vunpack.c.h.bf16 %v1189
  %s1192 = scalar_lea.vmem %s1, 28
  %s1193 = scalar_lea.vmem %s1192, 4294967292
  %v1194 = vpack.c.bf16 %v1190, %v839
  %1195 = vst [vmem:[%s1193] sm:$0xff] %v1194
  %s1196 = scalar_lea.vmem %s0, 572
  %v1197 = vld [vmem:[%s1196] sm:$0xf]
  %v1198 = vunpack.c.l.bf16 %v1197
  %v1199 = vunpack.c.h.bf16 %v1197
  %s1200 = scalar_lea.vmem %s1, 316
  %s1201 = scalar_lea.vmem %s1200, 4294967292
  %v1202 = vpack.c.bf16 %v1198, %v844
  %1203 = vst [vmem:[%s1201] sm:$0xff] %v1202
  %s1204 = scalar_lea.vmem %s0, 284
  %v1205 = vld [vmem:[%s1204] sm:$0xf]
  %v1206 = vunpack.c.l.bf16 %v1205
  %v1207 = vunpack.c.h.bf16 %v1205
  %s1208 = scalar_lea.vmem %s1, 604
  %s1209 = scalar_lea.vmem %s1208, 4294967292
  %v1210 = vpack.c.bf16 %v1206, %v849
  %1211 = vst [vmem:[%s1209] sm:$0xff] %v1210
  %s1212 = scalar_lea.vmem %s0, 764
  %v1213 = vld [vmem:[%s1212] sm:$0xf]
  %v1214 = vunpack.c.l.bf16 %v1213
  %v1215 = vunpack.c.h.bf16 %v1213
  %s1216 = scalar_lea.vmem %s1, 124
  %s1217 = scalar_lea.vmem %s1216, 4294967292
  %v1218 = vpack.c.bf16 %v1214, %v854
  %1219 = vst [vmem:[%s1217] sm:$0xff] %v1218
  %s1220 = scalar_lea.vmem %s0, 476
  %v1221 = vld [vmem:[%s1220] sm:$0xf]
  %v1222 = vunpack.c.l.bf16 %v1221
  %v1223 = vunpack.c.h.bf16 %v1221
  %s1224 = scalar_lea.vmem %s1, 412
  %s1225 = scalar_lea.vmem %s1224, 4294967292
  %v1226 = vpack.c.bf16 %v1222, %v859
  %1227 = vst [vmem:[%s1225] sm:$0xff] %v1226
  %s1228 = scalar_lea.vmem %s0, 188
  %v1229 = vld [vmem:[%s1228] sm:$0xf]
  %v1230 = vunpack.c.l.bf16 %v1229
  %v1231 = vunpack.c.h.bf16 %v1229
  %s1232 = scalar_lea.vmem %s1, 700
  %s1233 = scalar_lea.vmem %s1232, 4294967292
  %v1234 = vpack.c.bf16 %v1230, %v864
  %1235 = vst [vmem:[%s1233] sm:$0xff] %v1234
  %s1236 = scalar_lea.vmem %s0, 668
  %v1237 = vld [vmem:[%s1236] sm:$0xf]
  %v1238 = vunpack.c.l.bf16 %v1237
  %v1239 = vunpack.c.h.bf16 %v1237
  %s1240 = scalar_lea.vmem %s1, 220
  %s1241 = scalar_lea.vmem %s1240, 4294967292
  %v1242 = vpack.c.bf16 %v1238, %v869
  %1243 = vst [vmem:[%s1241] sm:$0xff] %v1242
  %s1244 = scalar_lea.vmem %s0, 380
  %v1245 = vld [vmem:[%s1244] sm:$0xf]
  %v1246 = vunpack.c.l.bf16 %v1245
  %v1247 = vunpack.c.h.bf16 %v1245
  %s1248 = scalar_lea.vmem %s1, 508
  %s1249 = scalar_lea.vmem %s1248, 4294967292
  %v1250 = vpack.c.bf16 %v1246, %v874
  %1251 = vst [vmem:[%s1249] sm:$0xff] %v1250
  %s1252 = scalar_lea.vmem %s0, 92
  %v1253 = vld [vmem:[%s1252] sm:$0xf]
  %v1254 = vunpack.c.l.bf16 %v1253
  %v1255 = vunpack.c.h.bf16 %v1253
  %s1256 = scalar_lea.vmem %s1, 796
  %s1257 = scalar_lea.vmem %s1256, 4294967292
  %v1258 = vpack.c.bf16 %v1254, %v879
  %1259 = vst [vmem:[%s1257] sm:$0xff] %v1258
  %s1260 = scalar_lea.vmem %s0, 828
  %v1261 = vld [vmem:[%s1260] sm:$0xf]
  %v1262 = vunpack.c.l.bf16 %v1261
  %v1263 = vunpack.c.h.bf16 %v1261
  %s1264 = scalar_lea.vmem %s1, 60
  %s1265 = scalar_lea.vmem %s1264, 4294967292
  %v1266 = vpack.c.bf16 %v1262, %v884
  %1267 = vst [vmem:[%s1265] sm:$0xff] %v1266
  %s1268 = scalar_lea.vmem %s0, 540
  %v1269 = vld [vmem:[%s1268] sm:$0xf]
  %v1270 = vunpack.c.l.bf16 %v1269
  %v1271 = vunpack.c.h.bf16 %v1269
  %s1272 = scalar_lea.vmem %s1, 348
  %s1273 = scalar_lea.vmem %s1272, 4294967292
  %v1274 = vpack.c.bf16 %v1270, %v889
  %1275 = vst [vmem:[%s1273] sm:$0xff] %v1274
  %s1276 = scalar_lea.vmem %s0, 252
  %v1277 = vld [vmem:[%s1276] sm:$0xf]
  %v1278 = vunpack.c.l.bf16 %v1277
  %v1279 = vunpack.c.h.bf16 %v1277
  %s1280 = scalar_lea.vmem %s1, 636
  %s1281 = scalar_lea.vmem %s1280, 4294967292
  %v1282 = vpack.c.bf16 %v1278, %v894
  %1283 = vst [vmem:[%s1281] sm:$0xff] %v1282
  %s1284 = scalar_lea.vmem %s0, 732
  %v1285 = vld [vmem:[%s1284] sm:$0xf]
  %v1286 = vunpack.c.l.bf16 %v1285
  %v1287 = vunpack.c.h.bf16 %v1285
  %s1288 = scalar_lea.vmem %s1, 156
  %s1289 = scalar_lea.vmem %s1288, 4294967292
  %v1290 = vpack.c.bf16 %v1286, %v899
  %1291 = vst [vmem:[%s1289] sm:$0xff] %v1290
  %s1292 = scalar_lea.vmem %s0, 444
  %v1293 = vld [vmem:[%s1292] sm:$0xf]
  %v1294 = vunpack.c.l.bf16 %v1293
  %v1295 = vunpack.c.h.bf16 %v1293
  %s1296 = scalar_lea.vmem %s1, 444
  %s1297 = scalar_lea.vmem %s1296, 4294967292
  %v1298 = vpack.c.bf16 %v1294, %v904
  %1299 = vst [vmem:[%s1297] sm:$0xff] %v1298
  %s1300 = scalar_lea.vmem %s0, 156
  %v1301 = vld [vmem:[%s1300] sm:$0xf]
  %v1302 = vunpack.c.l.bf16 %v1301
  %v1303 = vunpack.c.h.bf16 %v1301
  %s1304 = scalar_lea.vmem %s1, 732
  %s1305 = scalar_lea.vmem %s1304, 4294967292
  %v1306 = vpack.c.bf16 %v1302, %v909
  %1307 = vst [vmem:[%s1305] sm:$0xff] %v1306
  %s1308 = scalar_lea.vmem %s0, 636
  %v1309 = vld [vmem:[%s1308] sm:$0xf]
  %v1310 = vunpack.c.l.bf16 %v1309
  %v1311 = vunpack.c.h.bf16 %v1309
  %s1312 = scalar_lea.vmem %s1, 252
  %s1313 = scalar_lea.vmem %s1312, 4294967292
  %v1314 = vpack.c.bf16 %v1310, %v914
  %1315 = vst [vmem:[%s1313] sm:$0xff] %v1314
  %s1316 = scalar_lea.vmem %s0, 348
  %v1317 = vld [vmem:[%s1316] sm:$0xf]
  %v1318 = vunpack.c.l.bf16 %v1317
  %v1319 = vunpack.c.h.bf16 %v1317
  %s1320 = scalar_lea.vmem %s1, 540
  %s1321 = scalar_lea.vmem %s1320, 4294967292
  %v1322 = vpack.c.bf16 %v1318, %v919
  %1323 = vst [vmem:[%s1321] sm:$0xff] %v1322
  %s1324 = scalar_lea.vmem %s0, 60
  %v1325 = vld [vmem:[%s1324] sm:$0xf]
  %v1326 = vunpack.c.l.bf16 %v1325
  %v1327 = vunpack.c.h.bf16 %v1325
  %s1328 = scalar_lea.vmem %s1, 828
  %s1329 = scalar_lea.vmem %s1328, 4294967292
  %v1330 = vpack.c.bf16 %v1326, %v924
  %1331 = vst [vmem:[%s1329] sm:$0xff] %v1330
  %s1332 = scalar_lea.vmem %s0, 796
  %v1333 = vld [vmem:[%s1332] sm:$0xf]
  %v1334 = vunpack.c.l.bf16 %v1333
  %v1335 = vunpack.c.h.bf16 %v1333
  %s1336 = scalar_lea.vmem %s1, 92
  %s1337 = scalar_lea.vmem %s1336, 4294967292
  %v1338 = vpack.c.bf16 %v1334, %v929
  %1339 = vst [vmem:[%s1337] sm:$0xff] %v1338
  %s1340 = scalar_lea.vmem %s0, 508
  %v1341 = vld [vmem:[%s1340] sm:$0xf]
  %v1342 = vunpack.c.l.bf16 %v1341
  %v1343 = vunpack.c.h.bf16 %v1341
  %s1344 = scalar_lea.vmem %s1, 380
  %s1345 = scalar_lea.vmem %s1344, 4294967292
  %v1346 = vpack.c.bf16 %v1342, %v934
  %1347 = vst [vmem:[%s1345] sm:$0xff] %v1346
  %s1348 = scalar_lea.vmem %s0, 220
  %v1349 = vld [vmem:[%s1348] sm:$0xf]
  %v1350 = vunpack.c.l.bf16 %v1349
  %v1351 = vunpack.c.h.bf16 %v1349
  %s1352 = scalar_lea.vmem %s1, 668
  %s1353 = scalar_lea.vmem %s1352, 4294967292
  %v1354 = vpack.c.bf16 %v1350, %v939
  %1355 = vst [vmem:[%s1353] sm:$0xff] %v1354
  %s1356 = scalar_lea.vmem %s0, 700
  %v1357 = vld [vmem:[%s1356] sm:$0xf]
  %v1358 = vunpack.c.l.bf16 %v1357
  %v1359 = vunpack.c.h.bf16 %v1357
  %s1360 = scalar_lea.vmem %s1, 188
  %s1361 = scalar_lea.vmem %s1360, 4294967292
  %v1362 = vpack.c.bf16 %v1358, %v944
  %1363 = vst [vmem:[%s1361] sm:$0xff] %v1362
  %s1364 = scalar_lea.vmem %s0, 412
  %v1365 = vld [vmem:[%s1364] sm:$0xf]
  %v1366 = vunpack.c.l.bf16 %v1365
  %v1367 = vunpack.c.h.bf16 %v1365
  %s1368 = scalar_lea.vmem %s1, 476
  %s1369 = scalar_lea.vmem %s1368, 4294967292
  %v1370 = vpack.c.bf16 %v1366, %v949
  %1371 = vst [vmem:[%s1369] sm:$0xff] %v1370
  %s1372 = scalar_lea.vmem %s0, 124
  %v1373 = vld [vmem:[%s1372] sm:$0xf]
  %v1374 = vunpack.c.l.bf16 %v1373
  %v1375 = vunpack.c.h.bf16 %v1373
  %s1376 = scalar_lea.vmem %s1, 764
  %s1377 = scalar_lea.vmem %s1376, 4294967292
  %v1378 = vpack.c.bf16 %v1374, %v954
  %1379 = vst [vmem:[%s1377] sm:$0xff] %v1378
  %s1380 = scalar_lea.vmem %s0, 604
  %v1381 = vld [vmem:[%s1380] sm:$0xf]
  %v1382 = vunpack.c.l.bf16 %v1381
  %v1383 = vunpack.c.h.bf16 %v1381
  %s1384 = scalar_lea.vmem %s1, 284
  %s1385 = scalar_lea.vmem %s1384, 4294967292
  %v1386 = vpack.c.bf16 %v1382, %v959
  %1387 = vst [vmem:[%s1385] sm:$0xff] %v1386
  %s1388 = scalar_lea.vmem %s0, 316
  %v1389 = vld [vmem:[%s1388] sm:$0xf]
  %v1390 = vunpack.c.l.bf16 %v1389
  %v1391 = vunpack.c.h.bf16 %v1389
  %s1392 = scalar_lea.vmem %s1, 572
  %s1393 = scalar_lea.vmem %s1392, 4294967292
  %v1394 = vpack.c.bf16 %v1390, %v964
  %1395 = vst [vmem:[%s1393] sm:$0xff] %v1394
  %s1396 = scalar_lea.vmem %s0, 28
  %v1397 = vld [vmem:[%s1396] sm:$0xf]
  %v1398 = vunpack.c.l.bf16 %v1397
  %v1399 = vunpack.c.h.bf16 %v1397
  %s1400 = scalar_lea.vmem %s1, 860
  %s1401 = scalar_lea.vmem %s1400, 4294967292
  %v1402 = vpack.c.bf16 %v1398, %v969
  %1403 = vst [vmem:[%s1401] sm:$0xff] %v1402

</llo_original>
